<compile_context>
chip_gen: v6e
topology: v6e:2x2x1
jax: 0.10.0
libtpu: 0.0.40
codegen_flags: <defaults>
</compile_context>

<pallas_src>
import functools

import jax
import jax.numpy as jnp
from jax import lax
from jax.experimental import pallas as pl
from jax.experimental.pallas import tpu as pltpu

MXU_DTYPE = jnp.bfloat16   # matmul operand dtype; accumulation stays f32


# ----------------------------- Pallas kernels ------------------------------

def _fused_matmul_kernel(a_ref, w_ref, rows_ref, *stats_ref, act):
    """(tm, K) @ (K, C) on the MXU with a fused epilogue.

    Optional epilogue outputs per-tile column sum / sum-of-squares (BatchNorm
    partial reductions) and/or applies tanh before the store.
    """
    acc = jnp.dot(a_ref[...], w_ref[...], preferred_element_type=jnp.float32)
    if stats_ref:                                   # BN layers: partial stats
        s_ref, = stats_ref
        s1 = jnp.sum(acc, axis=0, keepdims=True)
        s2 = jnp.sum(acc * acc, axis=0, keepdims=True)
        s_ref[...] = jnp.concatenate([s1, s2], axis=0)[None]
    if act == "tanh":                               # final layer: fused tanh
        acc = jnp.tanh(acc)
    rows_ref[...] = acc


def _affine_relu_kernel(x_ref, s_ref, b_ref, o_ref):
    y = x_ref[...] * s_ref[...] + b_ref[...]        # f32 math
    o_ref[...] = jnp.maximum(y, 0.0).astype(o_ref.dtype)


def _pick_row_tile(m, cap=512):
    """Largest row tile <= cap that divides m (so no pad / ragged blocks)."""
    if m <= cap:
        return m
    for t in range(cap, 7, -1):
        if m % t == 0 and t % 8 == 0:
            return t
    return m   # fallback: single block


def fused_matmul(a, w, *, with_stats, act, tm_cap=512):
    """rows = act(a @ w), plus optional per-tile (sum, sum^2) column stats.

    a: (M, K), w: (K, C) (bf16).  Returns rows (M, C) f32 and, if with_stats,
    stats (G, 2, C) f32 where G = number of row tiles.
    """
    m, k = a.shape
    kw, c = w.shape
    assert k == kw
    tm = _pick_row_tile(m, tm_cap)
    grid = (m // tm,)

    if with_stats:
        out_shape = (jax.ShapeDtypeStruct((m, c), jnp.float32),
                     jax.ShapeDtypeStruct((grid[0], 2, c), jnp.float32))
        out_specs = (pl.BlockSpec((tm, c), lambda i: (i, 0)),
                     pl.BlockSpec((1, 2, c), lambda i: (i, 0, 0)))
    else:
        out_shape = jax.ShapeDtypeStruct((m, c), jnp.float32)
        out_specs = pl.BlockSpec((tm, c), lambda i: (i, 0))

    cost = pl.CostEstimate(
        flops=2 * m * k * c,
        transcendentals=m * c if act == "tanh" else 0,
        bytes_accessed=int(a.size * a.dtype.itemsize
                           + w.size * w.dtype.itemsize + m * c * 4))

    out = pl.pallas_call(
        functools.partial(_fused_matmul_kernel, act=act),
        out_shape=out_shape,
        grid=grid,
        in_specs=[pl.BlockSpec((tm, k), lambda i: (i, 0)),
                  pl.BlockSpec((k, c), lambda i: (0, 0))],
        out_specs=out_specs,
        compiler_params=pltpu.CompilerParams(
            dimension_semantics=("parallel",)),
        cost_estimate=cost,
    )(a, w)
    if with_stats:
        return out[0], out[1]
    return out, None


def affine_relu(rows, scale, bias, out_dtype=MXU_DTYPE, tm_cap=512):
    """y = relu(rows * scale + bias); rows (M, C) f32, scale/bias (C,) f32."""
    m, c = rows.shape
    tm = _pick_row_tile(m, tm_cap)
    return pl.pallas_call(
        _affine_relu_kernel,
        out_shape=jax.ShapeDtypeStruct((m, c), out_dtype),
        grid=(m // tm,),
        in_specs=[pl.BlockSpec((tm, c), lambda i: (i, 0)),
                  pl.BlockSpec((1, c), lambda i: (0, 0)),
                  pl.BlockSpec((1, c), lambda i: (0, 0))],
        out_specs=pl.BlockSpec((tm, c), lambda i: (i, 0)),
        compiler_params=pltpu.CompilerParams(
            dimension_semantics=("parallel",)),
    )(rows, scale.reshape(1, c), bias.reshape(1, c))


# ------------------------------- JAX glue ----------------------------------
# Pure data-movement helpers (weight folding, 3x3 patch gather, phase
# interleave) stay in XLA; all FLOPs run inside the Pallas kernels above.

def _fold_stride1_weight(w):
    """ConvTranspose2d(k=4, s=1, p=0) on a 1x1 input: (Cin, 16*Cout) matmul.

    Column layout: (oh, ow, cout) with cout fastest.
    """
    cin, cout = w.shape[0], w.shape[1]
    return w.transpose(0, 2, 3, 1).reshape(cin, 16 * cout)


def _fold_stride2_weight(w):
    """Sub-pixel decomposition of ConvTranspose2d(k=4, s=2, p=1).

    Output element y[2m+r, 2n+s, co] = sum_{a,b in {0,1}, ci}
        x_pad[m+r+a, n+s+b, ci] * w[ci, co, 3-r-2a, 3-s-2b]
    Returns (9*Cin, 4*Cout): rows ordered (dy, dx, cin) over the 3x3 window of
    the 1-padded input, columns ordered (r, s, cout) over the 4 output phases.
    """
    cin, cout = w.shape[0], w.shape[1]
    wm = jnp.zeros((9 * cin, 4 * cout), w.dtype)
    for r in range(2):
        for s in range(2):
            p = r * 2 + s
            for a in range(2):
                for b in range(2):
                    dy, dx = r + a, s + b
                    ky, kx = 3 - r - 2 * a, 3 - s - 2 * b
                    wm = wm.at[(dy * 3 + dx) * cin:(dy * 3 + dx + 1) * cin,
                               p * cout:(p + 1) * cout].set(w[:, :, ky, kx])
    return wm


def _stride2_patches(x):
    """x: (N, H, W, Cin) NHWC -> (N*H*W, 9*Cin), K ordered (dy, dx, cin)."""
    n, h, w_, c = x.shape
    xp = jnp.pad(x, ((0, 0), (1, 1), (1, 1), (0, 0)))
    taps = [xp[:, dy:dy + h, dx:dx + w_, :]
            for dy in range(3) for dx in range(3)]
    return jnp.concatenate(taps, axis=-1).reshape(n * h * w_, 9 * c)


def _interleave_phases(rows, n, h, w_, cout):
    """rows (N*H*W, 4*Cout), columns (r, s, cout) -> (N, 2H, 2W, Cout)."""
    y = rows.reshape(n, h, w_, 2, 2, cout)
    y = y.transpose(0, 1, 3, 2, 4, 5)
    return y.reshape(n, 2 * h, 2 * w_, cout)


def _bn_scale_bias(stats, gamma, beta, count, eps=1e-5):
    """Finish training-mode BatchNorm from fused partial sums.

    stats: (G, 2, phases*Cout); count = N*OH*OW samples per channel.
    """
    cout = gamma.shape[0]
    tot = stats.sum(axis=0)                           # (2, phases*Cout)
    s1 = tot[0].reshape(-1, cout).sum(axis=0)         # (Cout,)
    s2 = tot[1].reshape(-1, cout).sum(axis=0)
    mean = s1 / count
    var = jnp.maximum(s2 / count - mean * mean, 0.0)  # biased variance
    scale_c = gamma * lax.rsqrt(var + eps)
    bias_c = beta - mean * scale_c
    return scale_c, bias_c


def generator_specs(nz=16, ngf=8, nc=3):
    # (Cin, Cout, stride, has_batchnorm) — the img64_flag=True Generator stack.
    return [
        (nz,      ngf * 8, 1, True),
        (ngf * 8, ngf * 4, 2, True),
        (ngf * 4, ngf * 2, 2, True),
        (ngf * 2, ngf,     2, True),
        (ngf,     nc,      2, False),
    ]


def init_generator_params(key, specs):
    layers = []
    for (cin, cout, stride, bn) in specs:
        key, wk = jax.random.split(key)
        # deterministic DCGAN-style init: N(0, 0.02)
        w = jax.random.normal(wk, (cin, cout, 4, 4), jnp.float32) * 0.02
        wm = _fold_stride1_weight(w) if stride == 1 else _fold_stride2_weight(w)
        lyr = {"wm": wm.astype(MXU_DTYPE)}
        if bn:
            lyr["gamma"] = jnp.ones((cout,), jnp.float32)
            lyr["beta"] = jnp.zeros((cout,), jnp.float32)
        layers.append(lyr)
    return {"layers": layers}


def generator_forward(params, z_nchw, *, specs):
    """z_nchw: (N, nz, 1, 1) -> (N, nc, 64, 64), matching Generator.forward."""
    n = z_nchw.shape[0]
    x = None                                  # NHWC activation (bf16)
    h_in = w_in = 1
    for lyr, (cin, cout, stride, bn) in zip(params["layers"], specs):
        if stride == 1:                       # 1x1 -> 4x4 head layer
            a = z_nchw.reshape(n, -1).astype(MXU_DTYPE)
            oh = ow = 4
            phases = 16
        else:                                 # k=4, s=2, p=1 deconv
            _, h_in, w_in, _ = x.shape
            a = _stride2_patches(x)
            oh, ow = 2 * h_in, 2 * w_in
            phases = 4

        rows, stats = fused_matmul(a, lyr["wm"], with_stats=bn,
                                   act=("none" if bn else "tanh"))
        if bn:
            scale_c, bias_c = _bn_scale_bias(stats, lyr["gamma"], lyr["beta"],
                                             count=n * oh * ow)
            rows = affine_relu(rows, jnp.tile(scale_c, phases),
                               jnp.tile(bias_c, phases), out_dtype=MXU_DTYPE)

        if stride == 1:
            x = rows.reshape(n, 4, 4, cout)   # columns were (oh, ow, cout)
        else:
            x = _interleave_phases(rows, n, h_in, w_in, cout)

    # single layout conversion back to PyTorch NCHW at the very end
    return x.transpose(0, 3, 1, 2)


if __name__ == "__main__":
    key = jax.random.PRNGKey(0)
    pkey, zkey = jax.random.split(key)

    # small shapes consistent with the module: nz=16, ngf=8, nc=3, batch=2
    nz, ngf, nc, batch = 16, 8, 3, 2
    specs = generator_specs(nz=nz, ngf=ngf, nc=nc)
    params = init_generator_params(pkey, specs)
    z = jax.random.normal(zkey, (batch, nz, 1, 1), jnp.float32)

    fwd = jax.jit(functools.partial(generator_forward, specs=specs))
    out = jax.block_until_ready(fwd(params, z))

    assert out.shape == (batch, nc, 64, 64), out.shape
    assert bool(jnp.all(jnp.isfinite(out)))
    assert bool(jnp.all(jnp.abs(out) <= 1.0 + 1e-6))  # tanh range
    print("KERNEL_OK")
</pallas_src>

<mosaic_0001>
module attributes {stable_mosaic.version = 11 : i64} {
  func.func @_fused_matmul_kernel(%arg0: i32, %arg1: memref<2x16xbf16, #tpu.memory_space<vmem>>, %arg2: memref<16x1024xbf16, #tpu.memory_space<vmem>>, %arg3: memref<2x1024xf32, #tpu.memory_space<vmem>>, %arg4: memref<1x2x1024xf32, #tpu.memory_space<vmem>>) attributes {dimension_semantics = [#tpu.dimension_semantics<parallel>], iteration_bounds = array<i64: 1>, scalar_prefetch = 0 : i64, scratch_operands = 0 : i64, tpu.core_type = #tpu.core_type<tc>, window_params = [{transform_indices = @transform_0, window_bounds = array<i64: 2, 16>}, {pipeline_mode = #tpu.pipeline_mode<synchronous>, transform_indices = @transform_1, window_bounds = array<i64: 16, 1024>}, {transform_indices = @transform_2, window_bounds = array<i64: 2, 1024>}, {transform_indices = @transform_3, window_bounds = array<i64: 1, 2, 1024>}]} {
    %c0 = arith.constant 0 : index
    %c0_0 = arith.constant 0 : index
    %0 = vector.load %arg1[%c0, %c0_0] : memref<2x16xbf16, #tpu.memory_space<vmem>>, vector<2x16xbf16>
    %c0_1 = arith.constant 0 : index
    %c0_2 = arith.constant 0 : index
    %1 = vector.load %arg2[%c0_1, %c0_2] : memref<16x1024xbf16, #tpu.memory_space<vmem>>, vector<16x1024xbf16>
    %cst = arith.constant dense<0.000000e+00> : vector<2x1024xf32>
    %2 = tpu.matmul %0, %1, %cst {dimension_numbers = #tpu.dot_dimension_numbers<[1], [0], [0], [1], [0, 0, 1, 1], [], []>} : vector<2x16xbf16>, vector<16x1024xbf16>, vector<2x1024xf32> -> vector<2x1024xf32>
    %cst_3 = arith.constant dense<0.000000e+00> : vector<1024xf32>
    %3 = vector.multi_reduction <add>, %2, %cst_3 [0] : vector<2x1024xf32> to vector<1024xf32>
    %4 = vector.shape_cast %3 : vector<1024xf32> to vector<1x1024xf32>
    %5 = arith.mulf %2, %2 : vector<2x1024xf32>
    %cst_4 = arith.constant dense<0.000000e+00> : vector<1024xf32>
    %6 = vector.multi_reduction <add>, %5, %cst_4 [0] : vector<2x1024xf32> to vector<1024xf32>
    %7 = vector.shape_cast %6 : vector<1024xf32> to vector<1x1024xf32>
    %8 = tpu.concatenate %4, %7 in 0 : vector<1x1024xf32>, vector<1x1024xf32> -> vector<2x1024xf32>
    %9 = vector.shape_cast %8 : vector<2x1024xf32> to vector<1x2x1024xf32>
    %c0_5 = arith.constant 0 : index
    %c0_6 = arith.constant 0 : index
    %c0_7 = arith.constant 0 : index
    %10 = vector.load %arg4[%c0_5, %c0_6, %c0_7] : memref<1x2x1024xf32, #tpu.memory_space<vmem>>, vector<1x2x1024xf32>
    tpu.vector_store %arg4[%c0_5, %c0_6, %c0_7], %9 {strides = array<i32>} : memref<1x2x1024xf32, #tpu.memory_space<vmem>>, vector<1x2x1024xf32>,
    %c0_8 = arith.constant 0 : index
    %c0_9 = arith.constant 0 : index
    %11 = vector.load %arg3[%c0_8, %c0_9] : memref<2x1024xf32, #tpu.memory_space<vmem>>, vector<2x1024xf32>
    tpu.vector_store %arg3[%c0_8, %c0_9], %2 {strides = array<i32>} : memref<2x1024xf32, #tpu.memory_space<vmem>>, vector<2x1024xf32>,
    return
  }
  func.func @transform_0(%arg0: i32) -> (i32, i32) {
    %c0_i32 = arith.constant 0 : i32
    %c0_i32_0 = arith.constant 0 : i32
    return %arg0, %c0_i32 : i32, i32
  }
  func.func @transform_1(%arg0: i32) -> (i32, i32) {
    %c0_i32 = arith.constant 0 : i32
    %c0_i32_0 = arith.constant 0 : i32
    %c0_i32_1 = arith.constant 0 : i32
    return %c0_i32, %c0_i32_0 : i32, i32
  }
  func.func @transform_2(%arg0: i32) -> (i32, i32) {
    %c0_i32 = arith.constant 0 : i32
    %c0_i32_0 = arith.constant 0 : i32
    return %arg0, %c0_i32 : i32, i32
  }
  func.func @transform_3(%arg0: i32) -> (i32, i32, i32) {
    %c0_i32 = arith.constant 0 : i32
    %c0_i32_0 = arith.constant 0 : i32
    %c0_i32_1 = arith.constant 0 : i32
    return %arg0, %c0_i32, %c0_i32_0 : i32, i32, i32
  }
}

module attributes {stable_mosaic.version = 11 : i64} {
  func.func @_affine_relu_kernel(%arg0: i32, %arg1: memref<2x1024xf32, #tpu.memory_space<vmem>>, %arg2: memref<1x1024xf32, #tpu.memory_space<vmem>>, %arg3: memref<1x1024xf32, #tpu.memory_space<vmem>>, %arg4: memref<2x1024xbf16, #tpu.memory_space<vmem>>) attributes {dimension_semantics = [#tpu.dimension_semantics<parallel>], iteration_bounds = array<i64: 1>, scalar_prefetch = 0 : i64, scratch_operands = 0 : i64, tpu.core_type = #tpu.core_type<tc>, window_params = [{transform_indices = @transform_0, window_bounds = array<i64: 2, 1024>}, {pipeline_mode = #tpu.pipeline_mode<synchronous>, transform_indices = @transform_1, window_bounds = array<i64: 1, 1024>}, {pipeline_mode = #tpu.pipeline_mode<synchronous>, transform_indices = @transform_2, window_bounds = array<i64: 1, 1024>}, {transform_indices = @transform_3, window_bounds = array<i64: 2, 1024>}]} {
    %c0 = arith.constant 0 : index
    %c0_0 = arith.constant 0 : index
    %0 = vector.load %arg1[%c0, %c0_0] : memref<2x1024xf32, #tpu.memory_space<vmem>>, vector<2x1024xf32>
    %c0_1 = arith.constant 0 : index
    %c0_2 = arith.constant 0 : index
    %1 = vector.load %arg2[%c0_1, %c0_2] : memref<1x1024xf32, #tpu.memory_space<vmem>>, vector<1x1024xf32>
    %2 = vector.broadcast %1 : vector<1x1024xf32> to vector<2x1024xf32>
    %3 = arith.mulf %0, %2 : vector<2x1024xf32>
    %c0_3 = arith.constant 0 : index
    %c0_4 = arith.constant 0 : index
    %4 = vector.load %arg3[%c0_3, %c0_4] : memref<1x1024xf32, #tpu.memory_space<vmem>>, vector<1x1024xf32>
    %5 = vector.broadcast %4 : vector<1x1024xf32> to vector<2x1024xf32>
    %6 = arith.addf %3, %5 : vector<2x1024xf32>
    %cst = arith.constant 0.000000e+00 : f32
    %7 = vector.broadcast %cst : f32 to vector<2x1024xf32>
    %8 = arith.maximumf %6, %7 : vector<2x1024xf32>
    %9 = arith.truncf %8 : vector<2x1024xf32> to vector<2x1024xbf16>
    %c0_5 = arith.constant 0 : index
    %c0_6 = arith.constant 0 : index
    %10 = vector.load %arg4[%c0_5, %c0_6] : memref<2x1024xbf16, #tpu.memory_space<vmem>>, vector<2x1024xbf16>
    tpu.vector_store %arg4[%c0_5, %c0_6], %9 {strides = array<i32>} : memref<2x1024xbf16, #tpu.memory_space<vmem>>, vector<2x1024xbf16>,
    return
  }
  func.func @transform_0(%arg0: i32) -> (i32, i32) {
    %c0_i32 = arith.constant 0 : i32
    %c0_i32_0 = arith.constant 0 : i32
    return %arg0, %c0_i32 : i32, i32
  }
  func.func @transform_1(%arg0: i32) -> (i32, i32) {
    %c0_i32 = arith.constant 0 : i32
    %c0_i32_0 = arith.constant 0 : i32
    %c0_i32_1 = arith.constant 0 : i32
    return %c0_i32, %c0_i32_0 : i32, i32
  }
  func.func @transform_2(%arg0: i32) -> (i32, i32) {
    %c0_i32 = arith.constant 0 : i32
    %c0_i32_0 = arith.constant 0 : i32
    %c0_i32_1 = arith.constant 0 : i32
    return %c0_i32, %c0_i32_0 : i32, i32
  }
  func.func @transform_3(%arg0: i32) -> (i32, i32) {
    %c0_i32 = arith.constant 0 : i32
    %c0_i32_0 = arith.constant 0 : i32
    return %arg0, %c0_i32 : i32, i32
  }
}

module attributes {stable_mosaic.version = 11 : i64} {
  func.func @_fused_matmul_kernel(%arg0: i32, %arg1: memref<32x576xbf16, #tpu.memory_space<vmem>>, %arg2: memref<576x128xbf16, #tpu.memory_space<vmem>>, %arg3: memref<32x128xf32, #tpu.memory_space<vmem>>, %arg4: memref<1x2x128xf32, #tpu.memory_space<vmem>>) attributes {dimension_semantics = [#tpu.dimension_semantics<parallel>], iteration_bounds = array<i64: 1>, scalar_prefetch = 0 : i64, scratch_operands = 0 : i64, tpu.core_type = #tpu.core_type<tc>, window_params = [{transform_indices = @transform_0, window_bounds = array<i64: 32, 576>}, {pipeline_mode = #tpu.pipeline_mode<synchronous>, transform_indices = @transform_1, window_bounds = array<i64: 576, 128>}, {transform_indices = @transform_2, window_bounds = array<i64: 32, 128>}, {transform_indices = @transform_3, window_bounds = array<i64: 1, 2, 128>}]} {
    %c0 = arith.constant 0 : index
    %c0_0 = arith.constant 0 : index
    %0 = vector.load %arg1[%c0, %c0_0] : memref<32x576xbf16, #tpu.memory_space<vmem>>, vector<32x576xbf16>
    %c0_1 = arith.constant 0 : index
    %c0_2 = arith.constant 0 : index
    %1 = vector.load %arg2[%c0_1, %c0_2] : memref<576x128xbf16, #tpu.memory_space<vmem>>, vector<576x128xbf16>
    %cst = arith.constant dense<0.000000e+00> : vector<32x128xf32>
    %2 = tpu.matmul %0, %1, %cst {dimension_numbers = #tpu.dot_dimension_numbers<[1], [0], [0], [1], [0, 0, 1, 1], [], []>} : vector<32x576xbf16>, vector<576x128xbf16>, vector<32x128xf32> -> vector<32x128xf32>
    %cst_3 = arith.constant dense<0.000000e+00> : vector<128xf32>
    %3 = vector.multi_reduction <add>, %2, %cst_3 [0] : vector<32x128xf32> to vector<128xf32>
    %4 = vector.shape_cast %3 : vector<128xf32> to vector<1x128xf32>
    %5 = arith.mulf %2, %2 : vector<32x128xf32>
    %cst_4 = arith.constant dense<0.000000e+00> : vector<128xf32>
    %6 = vector.multi_reduction <add>, %5, %cst_4 [0] : vector<32x128xf32> to vector<128xf32>
    %7 = vector.shape_cast %6 : vector<128xf32> to vector<1x128xf32>
    %8 = tpu.concatenate %4, %7 in 0 : vector<1x128xf32>, vector<1x128xf32> -> vector<2x128xf32>
    %9 = vector.shape_cast %8 : vector<2x128xf32> to vector<1x2x128xf32>
    %c0_5 = arith.constant 0 : index
    %c0_6 = arith.constant 0 : index
    %c0_7 = arith.constant 0 : index
    %10 = vector.load %arg4[%c0_5, %c0_6, %c0_7] : memref<1x2x128xf32, #tpu.memory_space<vmem>>, vector<1x2x128xf32>
    tpu.vector_store %arg4[%c0_5, %c0_6, %c0_7], %9 {strides = array<i32>} : memref<1x2x128xf32, #tpu.memory_space<vmem>>, vector<1x2x128xf32>,
    %c0_8 = arith.constant 0 : index
    %c0_9 = arith.constant 0 : index
    %11 = vector.load %arg3[%c0_8, %c0_9] : memref<32x128xf32, #tpu.memory_space<vmem>>, vector<32x128xf32>
    tpu.vector_store %arg3[%c0_8, %c0_9], %2 {strides = array<i32>} : memref<32x128xf32, #tpu.memory_space<vmem>>, vector<32x128xf32>,
    return
  }
  func.func @transform_0(%arg0: i32) -> (i32, i32) {
    %c0_i32 = arith.constant 0 : i32
    %c0_i32_0 = arith.constant 0 : i32
    return %arg0, %c0_i32 : i32, i32
  }
  func.func @transform_1(%arg0: i32) -> (i32, i32) {
    %c0_i32 = arith.constant 0 : i32
    %c0_i32_0 = arith.constant 0 : i32
    %c0_i32_1 = arith.constant 0 : i32
    return %c0_i32, %c0_i32_0 : i32, i32
  }
  func.func @transform_2(%arg0: i32) -> (i32, i32) {
    %c0_i32 = arith.constant 0 : i32
    %c0_i32_0 = arith.constant 0 : i32
    return %arg0, %c0_i32 : i32, i32
  }
  func.func @transform_3(%arg0: i32) -> (i32, i32, i32) {
    %c0_i32 = arith.constant 0 : i32
    %c0_i32_0 = arith.constant 0 : i32
    %c0_i32_1 = arith.constant 0 : i32
    return %arg0, %c0_i32, %c0_i32_0 : i32, i32, i32
  }
}

module attributes {stable_mosaic.version = 11 : i64} {
  func.func @_affine_relu_kernel(%arg0: i32, %arg1: memref<32x128xf32, #tpu.memory_space<vmem>>, %arg2: memref<1x128xf32, #tpu.memory_space<vmem>>, %arg3: memref<1x128xf32, #tpu.memory_space<vmem>>, %arg4: memref<32x128xbf16, #tpu.memory_space<vmem>>) attributes {dimension_semantics = [#tpu.dimension_semantics<parallel>], iteration_bounds = array<i64: 1>, scalar_prefetch = 0 : i64, scratch_operands = 0 : i64, tpu.core_type = #tpu.core_type<tc>, window_params = [{transform_indices = @transform_0, window_bounds = array<i64: 32, 128>}, {pipeline_mode = #tpu.pipeline_mode<synchronous>, transform_indices = @transform_1, window_bounds = array<i64: 1, 128>}, {pipeline_mode = #tpu.pipeline_mode<synchronous>, transform_indices = @transform_2, window_bounds = array<i64: 1, 128>}, {transform_indices = @transform_3, window_bounds = array<i64: 32, 128>}]} {
    %c0 = arith.constant 0 : index
    %c0_0 = arith.constant 0 : index
    %0 = vector.load %arg1[%c0, %c0_0] : memref<32x128xf32, #tpu.memory_space<vmem>>, vector<32x128xf32>
    %c0_1 = arith.constant 0 : index
    %c0_2 = arith.constant 0 : index
    %1 = vector.load %arg2[%c0_1, %c0_2] : memref<1x128xf32, #tpu.memory_space<vmem>>, vector<1x128xf32>
    %2 = vector.broadcast %1 : vector<1x128xf32> to vector<32x128xf32>
    %3 = arith.mulf %0, %2 : vector<32x128xf32>
    %c0_3 = arith.constant 0 : index
    %c0_4 = arith.constant 0 : index
    %4 = vector.load %arg3[%c0_3, %c0_4] : memref<1x128xf32, #tpu.memory_space<vmem>>, vector<1x128xf32>
    %5 = vector.broadcast %4 : vector<1x128xf32> to vector<32x128xf32>
    %6 = arith.addf %3, %5 : vector<32x128xf32>
    %cst = arith.constant 0.000000e+00 : f32
    %7 = vector.broadcast %cst : f32 to vector<32x128xf32>
    %8 = arith.maximumf %6, %7 : vector<32x128xf32>
    %9 = arith.truncf %8 : vector<32x128xf32> to vector<32x128xbf16>
    %c0_5 = arith.constant 0 : index
    %c0_6 = arith.constant 0 : index
    %10 = vector.load %arg4[%c0_5, %c0_6] : memref<32x128xbf16, #tpu.memory_space<vmem>>, vector<32x128xbf16>
    tpu.vector_store %arg4[%c0_5, %c0_6], %9 {strides = array<i32>} : memref<32x128xbf16, #tpu.memory_space<vmem>>, vector<32x128xbf16>,
    return
  }
  func.func @transform_0(%arg0: i32) -> (i32, i32) {
    %c0_i32 = arith.constant 0 : i32
    %c0_i32_0 = arith.constant 0 : i32
    return %arg0, %c0_i32 : i32, i32
  }
  func.func @transform_1(%arg0: i32) -> (i32, i32) {
    %c0_i32 = arith.constant 0 : i32
    %c0_i32_0 = arith.constant 0 : i32
    %c0_i32_1 = arith.constant 0 : i32
    return %c0_i32, %c0_i32_0 : i32, i32
  }
  func.func @transform_2(%arg0: i32) -> (i32, i32) {
    %c0_i32 = arith.constant 0 : i32
    %c0_i32_0 = arith.constant 0 : i32
    %c0_i32_1 = arith.constant 0 : i32
    return %c0_i32, %c0_i32_0 : i32, i32
  }
  func.func @transform_3(%arg0: i32) -> (i32, i32) {
    %c0_i32 = arith.constant 0 : i32
    %c0_i32_0 = arith.constant 0 : i32
    return %arg0, %c0_i32 : i32, i32
  }
}

module attributes {stable_mosaic.version = 11 : i64} {
  func.func @_fused_matmul_kernel(%arg0: i32, %arg1: memref<128x288xbf16, #tpu.memory_space<vmem>>, %arg2: memref<288x64xbf16, #tpu.memory_space<vmem>>, %arg3: memref<128x64xf32, #tpu.memory_space<vmem>>, %arg4: memref<1x2x64xf32, #tpu.memory_space<vmem>>) attributes {dimension_semantics = [#tpu.dimension_semantics<parallel>], iteration_bounds = array<i64: 1>, scalar_prefetch = 0 : i64, scratch_operands = 0 : i64, tpu.core_type = #tpu.core_type<tc>, window_params = [{transform_indices = @transform_0, window_bounds = array<i64: 128, 288>}, {pipeline_mode = #tpu.pipeline_mode<synchronous>, transform_indices = @transform_1, window_bounds = array<i64: 288, 64>}, {transform_indices = @transform_2, window_bounds = array<i64: 128, 64>}, {transform_indices = @transform_3, window_bounds = array<i64: 1, 2, 64>}]} {
    %c0 = arith.constant 0 : index
    %c0_0 = arith.constant 0 : index
    %0 = vector.load %arg1[%c0, %c0_0] : memref<128x288xbf16, #tpu.memory_space<vmem>>, vector<128x288xbf16>
    %c0_1 = arith.constant 0 : index
    %c0_2 = arith.constant 0 : index
    %1 = vector.load %arg2[%c0_1, %c0_2] : memref<288x64xbf16, #tpu.memory_space<vmem>>, vector<288x64xbf16>
    %cst = arith.constant dense<0.000000e+00> : vector<128x64xf32>
    %2 = tpu.matmul %0, %1, %cst {dimension_numbers = #tpu.dot_dimension_numbers<[1], [0], [0], [1], [0, 0, 1, 1], [], []>} : vector<128x288xbf16>, vector<288x64xbf16>, vector<128x64xf32> -> vector<128x64xf32>
    %cst_3 = arith.constant dense<0.000000e+00> : vector<64xf32>
    %3 = vector.multi_reduction <add>, %2, %cst_3 [0] : vector<128x64xf32> to vector<64xf32>
    %4 = vector.shape_cast %3 : vector<64xf32> to vector<1x64xf32>
    %5 = arith.mulf %2, %2 : vector<128x64xf32>
    %cst_4 = arith.constant dense<0.000000e+00> : vector<64xf32>
    %6 = vector.multi_reduction <add>, %5, %cst_4 [0] : vector<128x64xf32> to vector<64xf32>
    %7 = vector.shape_cast %6 : vector<64xf32> to vector<1x64xf32>
    %8 = tpu.concatenate %4, %7 in 0 : vector<1x64xf32>, vector<1x64xf32> -> vector<2x64xf32>
    %9 = vector.shape_cast %8 : vector<2x64xf32> to vector<1x2x64xf32>
    %c0_5 = arith.constant 0 : index
    %c0_6 = arith.constant 0 : index
    %c0_7 = arith.constant 0 : index
    %10 = vector.load %arg4[%c0_5, %c0_6, %c0_7] : memref<1x2x64xf32, #tpu.memory_space<vmem>>, vector<1x2x64xf32>
    tpu.vector_store %arg4[%c0_5, %c0_6, %c0_7], %9 {strides = array<i32>} : memref<1x2x64xf32, #tpu.memory_space<vmem>>, vector<1x2x64xf32>,
    %c0_8 = arith.constant 0 : index
    %c0_9 = arith.constant 0 : index
    %11 = vector.load %arg3[%c0_8, %c0_9] : memref<128x64xf32, #tpu.memory_space<vmem>>, vector<128x64xf32>
    tpu.vector_store %arg3[%c0_8, %c0_9], %2 {strides = array<i32>} : memref<128x64xf32, #tpu.memory_space<vmem>>, vector<128x64xf32>,
    return
  }
  func.func @transform_0(%arg0: i32) -> (i32, i32) {
    %c0_i32 = arith.constant 0 : i32
    %c0_i32_0 = arith.constant 0 : i32
    return %arg0, %c0_i32 : i32, i32
  }
  func.func @transform_1(%arg0: i32) -> (i32, i32) {
    %c0_i32 = arith.constant 0 : i32
    %c0_i32_0 = arith.constant 0 : i32
    %c0_i32_1 = arith.constant 0 : i32
    return %c0_i32, %c0_i32_0 : i32, i32
  }
  func.func @transform_2(%arg0: i32) -> (i32, i32) {
    %c0_i32 = arith.constant 0 : i32
    %c0_i32_0 = arith.constant 0 : i32
    return %arg0, %c0_i32 : i32, i32
  }
  func.func @transform_3(%arg0: i32) -> (i32, i32, i32) {
    %c0_i32 = arith.constant 0 : i32
    %c0_i32_0 = arith.constant 0 : i32
    %c0_i32_1 = arith.constant 0 : i32
    return %arg0, %c0_i32, %c0_i32_0 : i32, i32, i32
  }
}

module attributes {stable_mosaic.version = 11 : i64} {
  func.func @_affine_relu_kernel(%arg0: i32, %arg1: memref<128x64xf32, #tpu.memory_space<vmem>>, %arg2: memref<1x64xf32, #tpu.memory_space<vmem>>, %arg3: memref<1x64xf32, #tpu.memory_space<vmem>>, %arg4: memref<128x64xbf16, #tpu.memory_space<vmem>>) attributes {dimension_semantics = [#tpu.dimension_semantics<parallel>], iteration_bounds = array<i64: 1>, scalar_prefetch = 0 : i64, scratch_operands = 0 : i64, tpu.core_type = #tpu.core_type<tc>, window_params = [{transform_indices = @transform_0, window_bounds = array<i64: 128, 64>}, {pipeline_mode = #tpu.pipeline_mode<synchronous>, transform_indices = @transform_1, window_bounds = array<i64: 1, 64>}, {pipeline_mode = #tpu.pipeline_mode<synchronous>, transform_indices = @transform_2, window_bounds = array<i64: 1, 64>}, {transform_indices = @transform_3, window_bounds = array<i64: 128, 64>}]} {
    %c0 = arith.constant 0 : index
    %c0_0 = arith.constant 0 : index
    %0 = vector.load %arg1[%c0, %c0_0] : memref<128x64xf32, #tpu.memory_space<vmem>>, vector<128x64xf32>
    %c0_1 = arith.constant 0 : index
    %c0_2 = arith.constant 0 : index
    %1 = vector.load %arg2[%c0_1, %c0_2] : memref<1x64xf32, #tpu.memory_space<vmem>>, vector<1x64xf32>
    %2 = vector.broadcast %1 : vector<1x64xf32> to vector<128x64xf32>
    %3 = arith.mulf %0, %2 : vector<128x64xf32>
    %c0_3 = arith.constant 0 : index
    %c0_4 = arith.constant 0 : index
    %4 = vector.load %arg3[%c0_3, %c0_4] : memref<1x64xf32, #tpu.memory_space<vmem>>, vector<1x64xf32>
    %5 = vector.broadcast %4 : vector<1x64xf32> to vector<128x64xf32>
    %6 = arith.addf %3, %5 : vector<128x64xf32>
    %cst = arith.constant 0.000000e+00 : f32
    %7 = vector.broadcast %cst : f32 to vector<128x64xf32>
    %8 = arith.maximumf %6, %7 : vector<128x64xf32>
    %9 = arith.truncf %8 : vector<128x64xf32> to vector<128x64xbf16>
    %c0_5 = arith.constant 0 : index
    %c0_6 = arith.constant 0 : index
    %10 = vector.load %arg4[%c0_5, %c0_6] : memref<128x64xbf16, #tpu.memory_space<vmem>>, vector<128x64xbf16>
    tpu.vector_store %arg4[%c0_5, %c0_6], %9 {strides = array<i32>} : memref<128x64xbf16, #tpu.memory_space<vmem>>, vector<128x64xbf16>,
    return
  }
  func.func @transform_0(%arg0: i32) -> (i32, i32) {
    %c0_i32 = arith.constant 0 : i32
    %c0_i32_0 = arith.constant 0 : i32
    return %arg0, %c0_i32 : i32, i32
  }
  func.func @transform_1(%arg0: i32) -> (i32, i32) {
    %c0_i32 = arith.constant 0 : i32
    %c0_i32_0 = arith.constant 0 : i32
    %c0_i32_1 = arith.constant 0 : i32
    return %c0_i32, %c0_i32_0 : i32, i32
  }
  func.func @transform_2(%arg0: i32) -> (i32, i32) {
    %c0_i32 = arith.constant 0 : i32
    %c0_i32_0 = arith.constant 0 : i32
    %c0_i32_1 = arith.constant 0 : i32
    return %c0_i32, %c0_i32_0 : i32, i32
  }
  func.func @transform_3(%arg0: i32) -> (i32, i32) {
    %c0_i32 = arith.constant 0 : i32
    %c0_i32_0 = arith.constant 0 : i32
    return %arg0, %c0_i32 : i32, i32
  }
}

module attributes {stable_mosaic.version = 11 : i64} {
  func.func @_fused_matmul_kernel(%arg0: i32, %arg1: memref<512x144xbf16, #tpu.memory_space<vmem>>, %arg2: memref<144x32xbf16, #tpu.memory_space<vmem>>, %arg3: memref<512x32xf32, #tpu.memory_space<vmem>>, %arg4: memref<1x2x32xf32, #tpu.memory_space<vmem>>) attributes {dimension_semantics = [#tpu.dimension_semantics<parallel>], iteration_bounds = array<i64: 1>, scalar_prefetch = 0 : i64, scratch_operands = 0 : i64, tpu.core_type = #tpu.core_type<tc>, window_params = [{transform_indices = @transform_0, window_bounds = array<i64: 512, 144>}, {pipeline_mode = #tpu.pipeline_mode<synchronous>, transform_indices = @transform_1, window_bounds = array<i64: 144, 32>}, {transform_indices = @transform_2, window_bounds = array<i64: 512, 32>}, {transform_indices = @transform_3, window_bounds = array<i64: 1, 2, 32>}]} {
    %c0 = arith.constant 0 : index
    %c0_0 = arith.constant 0 : index
    %0 = vector.load %arg1[%c0, %c0_0] : memref<512x144xbf16, #tpu.memory_space<vmem>>, vector<512x144xbf16>
    %c0_1 = arith.constant 0 : index
    %c0_2 = arith.constant 0 : index
    %1 = vector.load %arg2[%c0_1, %c0_2] : memref<144x32xbf16, #tpu.memory_space<vmem>>, vector<144x32xbf16>
    %cst = arith.constant dense<0.000000e+00> : vector<512x32xf32>
    %2 = tpu.matmul %0, %1, %cst {dimension_numbers = #tpu.dot_dimension_numbers<[1], [0], [0], [1], [0, 0, 1, 1], [], []>} : vector<512x144xbf16>, vector<144x32xbf16>, vector<512x32xf32> -> vector<512x32xf32>
    %cst_3 = arith.constant dense<0.000000e+00> : vector<32xf32>
    %3 = vector.multi_reduction <add>, %2, %cst_3 [0] : vector<512x32xf32> to vector<32xf32>
    %4 = vector.shape_cast %3 : vector<32xf32> to vector<1x32xf32>
    %5 = arith.mulf %2, %2 : vector<512x32xf32>
    %cst_4 = arith.constant dense<0.000000e+00> : vector<32xf32>
    %6 = vector.multi_reduction <add>, %5, %cst_4 [0] : vector<512x32xf32> to vector<32xf32>
    %7 = vector.shape_cast %6 : vector<32xf32> to vector<1x32xf32>
    %8 = tpu.concatenate %4, %7 in 0 : vector<1x32xf32>, vector<1x32xf32> -> vector<2x32xf32>
    %9 = vector.shape_cast %8 : vector<2x32xf32> to vector<1x2x32xf32>
    %c0_5 = arith.constant 0 : index
    %c0_6 = arith.constant 0 : index
    %c0_7 = arith.constant 0 : index
    %10 = vector.load %arg4[%c0_5, %c0_6, %c0_7] : memref<1x2x32xf32, #tpu.memory_space<vmem>>, vector<1x2x32xf32>
    tpu.vector_store %arg4[%c0_5, %c0_6, %c0_7], %9 {strides = array<i32>} : memref<1x2x32xf32, #tpu.memory_space<vmem>>, vector<1x2x32xf32>,
    %c0_8 = arith.constant 0 : index
    %c0_9 = arith.constant 0 : index
    %11 = vector.load %arg3[%c0_8, %c0_9] : memref<512x32xf32, #tpu.memory_space<vmem>>, vector<512x32xf32>
    tpu.vector_store %arg3[%c0_8, %c0_9], %2 {strides = array<i32>} : memref<512x32xf32, #tpu.memory_space<vmem>>, vector<512x32xf32>,
    return
  }
  func.func @transform_0(%arg0: i32) -> (i32, i32) {
    %c0_i32 = arith.constant 0 : i32
    %c0_i32_0 = arith.constant 0 : i32
    return %arg0, %c0_i32 : i32, i32
  }
  func.func @transform_1(%arg0: i32) -> (i32, i32) {
    %c0_i32 = arith.constant 0 : i32
    %c0_i32_0 = arith.constant 0 : i32
    %c0_i32_1 = arith.constant 0 : i32
    return %c0_i32, %c0_i32_0 : i32, i32
  }
  func.func @transform_2(%arg0: i32) -> (i32, i32) {
    %c0_i32 = arith.constant 0 : i32
    %c0_i32_0 = arith.constant 0 : i32
    return %arg0, %c0_i32 : i32, i32
  }
  func.func @transform_3(%arg0: i32) -> (i32, i32, i32) {
    %c0_i32 = arith.constant 0 : i32
    %c0_i32_0 = arith.constant 0 : i32
    %c0_i32_1 = arith.constant 0 : i32
    return %arg0, %c0_i32, %c0_i32_0 : i32, i32, i32
  }
}

module attributes {stable_mosaic.version = 11 : i64} {
  func.func @_affine_relu_kernel(%arg0: i32, %arg1: memref<512x32xf32, #tpu.memory_space<vmem>>, %arg2: memref<1x32xf32, #tpu.memory_space<vmem>>, %arg3: memref<1x32xf32, #tpu.memory_space<vmem>>, %arg4: memref<512x32xbf16, #tpu.memory_space<vmem>>) attributes {dimension_semantics = [#tpu.dimension_semantics<parallel>], iteration_bounds = array<i64: 1>, scalar_prefetch = 0 : i64, scratch_operands = 0 : i64, tpu.core_type = #tpu.core_type<tc>, window_params = [{transform_indices = @transform_0, window_bounds = array<i64: 512, 32>}, {pipeline_mode = #tpu.pipeline_mode<synchronous>, transform_indices = @transform_1, window_bounds = array<i64: 1, 32>}, {pipeline_mode = #tpu.pipeline_mode<synchronous>, transform_indices = @transform_2, window_bounds = array<i64: 1, 32>}, {transform_indices = @transform_3, window_bounds = array<i64: 512, 32>}]} {
    %c0 = arith.constant 0 : index
    %c0_0 = arith.constant 0 : index
    %0 = vector.load %arg1[%c0, %c0_0] : memref<512x32xf32, #tpu.memory_space<vmem>>, vector<512x32xf32>
    %c0_1 = arith.constant 0 : index
    %c0_2 = arith.constant 0 : index
    %1 = vector.load %arg2[%c0_1, %c0_2] : memref<1x32xf32, #tpu.memory_space<vmem>>, vector<1x32xf32>
    %2 = vector.broadcast %1 : vector<1x32xf32> to vector<512x32xf32>
    %3 = arith.mulf %0, %2 : vector<512x32xf32>
    %c0_3 = arith.constant 0 : index
    %c0_4 = arith.constant 0 : index
    %4 = vector.load %arg3[%c0_3, %c0_4] : memref<1x32xf32, #tpu.memory_space<vmem>>, vector<1x32xf32>
    %5 = vector.broadcast %4 : vector<1x32xf32> to vector<512x32xf32>
    %6 = arith.addf %3, %5 : vector<512x32xf32>
    %cst = arith.constant 0.000000e+00 : f32
    %7 = vector.broadcast %cst : f32 to vector<512x32xf32>
    %8 = arith.maximumf %6, %7 : vector<512x32xf32>
    %9 = arith.truncf %8 : vector<512x32xf32> to vector<512x32xbf16>
    %c0_5 = arith.constant 0 : index
    %c0_6 = arith.constant 0 : index
    %10 = vector.load %arg4[%c0_5, %c0_6] : memref<512x32xbf16, #tpu.memory_space<vmem>>, vector<512x32xbf16>
    tpu.vector_store %arg4[%c0_5, %c0_6], %9 {strides = array<i32>} : memref<512x32xbf16, #tpu.memory_space<vmem>>, vector<512x32xbf16>,
    return
  }
  func.func @transform_0(%arg0: i32) -> (i32, i32) {
    %c0_i32 = arith.constant 0 : i32
    %c0_i32_0 = arith.constant 0 : i32
    return %arg0, %c0_i32 : i32, i32
  }
  func.func @transform_1(%arg0: i32) -> (i32, i32) {
    %c0_i32 = arith.constant 0 : i32
    %c0_i32_0 = arith.constant 0 : i32
    %c0_i32_1 = arith.constant 0 : i32
    return %c0_i32, %c0_i32_0 : i32, i32
  }
  func.func @transform_2(%arg0: i32) -> (i32, i32) {
    %c0_i32 = arith.constant 0 : i32
    %c0_i32_0 = arith.constant 0 : i32
    %c0_i32_1 = arith.constant 0 : i32
    return %c0_i32, %c0_i32_0 : i32, i32
  }
  func.func @transform_3(%arg0: i32) -> (i32, i32) {
    %c0_i32 = arith.constant 0 : i32
    %c0_i32_0 = arith.constant 0 : i32
    return %arg0, %c0_i32 : i32, i32
  }
}

module attributes {stable_mosaic.version = 11 : i64} {
  func.func @_fused_matmul_kernel(%arg0: i32, %arg1: memref<512x72xbf16, #tpu.memory_space<vmem>>, %arg2: memref<72x12xbf16, #tpu.memory_space<vmem>>, %arg3: memref<512x12xf32, #tpu.memory_space<vmem>>) attributes {dimension_semantics = [#tpu.dimension_semantics<parallel>], iteration_bounds = array<i64: 4>, scalar_prefetch = 0 : i64, scratch_operands = 0 : i64, tpu.core_type = #tpu.core_type<tc>, window_params = [{transform_indices = @transform_0, window_bounds = array<i64: 512, 72>}, {pipeline_mode = #tpu.pipeline_mode<synchronous>, transform_indices = @transform_1, window_bounds = array<i64: 72, 12>}, {transform_indices = @transform_2, window_bounds = array<i64: 512, 12>}]} {
    %c0 = arith.constant 0 : index
    %c0_0 = arith.constant 0 : index
    %0 = vector.load %arg1[%c0, %c0_0] : memref<512x72xbf16, #tpu.memory_space<vmem>>, vector<512x72xbf16>
    %c0_1 = arith.constant 0 : index
    %c0_2 = arith.constant 0 : index
    %1 = vector.load %arg2[%c0_1, %c0_2] : memref<72x12xbf16, #tpu.memory_space<vmem>>, vector<72x12xbf16>
    %cst = arith.constant dense<0.000000e+00> : vector<512x12xf32>
    %2 = tpu.matmul %0, %1, %cst {dimension_numbers = #tpu.dot_dimension_numbers<[1], [0], [0], [1], [0, 0, 1, 1], [], []>} : vector<512x72xbf16>, vector<72x12xbf16>, vector<512x12xf32> -> vector<512x12xf32>
    %3 = math.tanh %2 : vector<512x12xf32>
    %c0_3 = arith.constant 0 : index
    %c0_4 = arith.constant 0 : index
    %4 = vector.load %arg3[%c0_3, %c0_4] : memref<512x12xf32, #tpu.memory_space<vmem>>, vector<512x12xf32>
    tpu.vector_store %arg3[%c0_3, %c0_4], %3 {strides = array<i32>} : memref<512x12xf32, #tpu.memory_space<vmem>>, vector<512x12xf32>,
    return
  }
  func.func @transform_0(%arg0: i32) -> (i32, i32) {
    %c0_i32 = arith.constant 0 : i32
    %c0_i32_0 = arith.constant 0 : i32
    return %arg0, %c0_i32 : i32, i32
  }
  func.func @transform_1(%arg0: i32) -> (i32, i32) {
    %c0_i32 = arith.constant 0 : i32
    %c0_i32_0 = arith.constant 0 : i32
    %c0_i32_1 = arith.constant 0 : i32
    return %c0_i32, %c0_i32_0 : i32, i32
  }
  func.func @transform_2(%arg0: i32) -> (i32, i32) {
    %c0_i32 = arith.constant 0 : i32
    %c0_i32_0 = arith.constant 0 : i32
    return %arg0, %c0_i32 : i32, i32
  }
}

</mosaic_0001>

<llo_original>
// kernel: squeeze.9
$region0: #{squeeze.9}
  %s0 = inlined_call_operand.vmem [shape: f32[1024], index: 0, kind: input, shape index: {}]
  %s1 = inlined_call_operand.vmem [shape: f32[16,64], index: 1, kind: output, shape index: {}]
  %v2 = vld [vmem:[%s0] sm:$0xff]
  %vm3 = vcmask 523264
  %4 = vst.msk [vmem:[%s1] ss:$2 sm:$0xff] %vm3, %v2
  %v5 = vld [vmem:[%s0] sm:$0xff]
  %6 = vrot.lane.b32.xlu0 %v5, 64
  %v7 = vpop.permute.xlu0 %6
  %vm8 = vcmask 523264
  %s9 = scalar_lea.vmem %s1, 1
  %10 = vst.msk [vmem:[%s9] ss:$2 sm:$0xff] %vm8, %v7

// kernel: tile.47
$region0: #{tile.47}
  #allocation0 [shape = 's32[1]{0}', space=sflag, size = 0x4, scoped, tag = 'scoped memory for tile.47']
  %s0 = inlined_call_operand.vmem [shape: f32[64], index: 0, kind: input, shape index: {}]
  %s1 = inlined_call_operand.vmem [shape: f32[16,64], index: 1, kind: output, shape index: {}]
  // Predicated region
  $region2: #{tile.47} parent=0 // pred_check
    _
  $region3: #{tile.47} parent=0 // pred_check_branch
    %3 = sbr.rel (0) target = $region5
  $region4: #{tile.47} parent=0 // pred_region
    _
  $region5: #{tile.47} parent=0 // pred_fallthru
    _
  %v4 = vld [vmem:[%s0] ss:$0 sm:$0xff]
  %5 = vst [vmem:[%s1] sm:$0xff] %v4
  %s6 = scalar_lea.vmem %s1, 8
  %7 = vst [vmem:[%s6] sm:$0xff] %v4

// kernel: tile.49
$region0: #{tile.49}
  %s0 = inlined_call_operand.vmem [shape: f32[16,64], index: 0, kind: input, shape index: {}]
  %s1 = inlined_call_operand.vmem [shape: f32[1,1024], index: 1, kind: output, shape index: {}]
  $region1: #{tile.49} parent=0
    #allocation0 [shape = 'u8[32768]{0}', space=vmem, size = 0x8000, scoped, tag = 'scoped mem for output reshape']
    %v2 = vld [vmem:[%s0] ss:$2 sm:$0xff]
    %vm3 = vcmask 523264
    %4 = vst.msk [vmem:[#allocation0] ss:$8 sm:$0xf] %vm3, %v2
    %5 = vst.msk [vmem:[#allocation0] ss:$8 sm:$0xf0] %vm3, %v2
    %s6 = scalar_lea.vmem %s0, 1
    %v7 = vld [vmem:[%s6] ss:$2 sm:$0xff]
    %8 = vrot.lane.b32.xlu0 %v7, 64
    %v9 = vpop.permute.xlu0 %8
    %vm10 = vcmask 1048064
    %11 = vst.msk [vmem:[#allocation0] ss:$8 sm:$0xf] %vm10, %v9
    %12 = vst.msk [vmem:[#allocation0] ss:$8 sm:$0xf0] %vm10, %v9
    %s14 = sshll.u32 1, 1
    %s15 = ssub.s32 %s14, 1
    %v17 = vld [vmem:[#allocation0] sm:%s15]
    %s18 = sshll.u32 1, 1
    %s19 = ssub.s32 %s18, 1
    %20 = vst [vmem:[%s1] sm:%s19] %v17
    %s21 = scalar_lea.vmem [#allocation0], 8
    %v22 = vld [vmem:[%s21] sm:%s15]
    %s23 = sshll.u32 1, 1
    %s24 = ssub.s32 %s23, 1
    %s25 = scalar_lea.vmem %s1, 1
    %26 = vst [vmem:[%s25] sm:%s24] %v22
    %s27 = scalar_lea.vmem [#allocation0], 16
    %v28 = vld [vmem:[%s27] sm:%s15]
    %s29 = sshll.u32 1, 1
    %s30 = ssub.s32 %s29, 1
    %s31 = smul.addr 1, 2
    %s32 = scalar_lea.vmem %s1, %s31
    %33 = vst [vmem:[%s32] sm:%s30] %v28
    %s34 = scalar_lea.vmem [#allocation0], 24
    %v35 = vld [vmem:[%s34] sm:%s15]
    %s36 = sshll.u32 1, 1
    %s37 = ssub.s32 %s36, 1
    %s38 = smul.addr 1, 3
    %s39 = scalar_lea.vmem %s1, %s38
    %40 = vst [vmem:[%s39] sm:%s37] %v35
    %s41 = scalar_lea.vmem [#allocation0], 32
    %v42 = vld [vmem:[%s41] sm:%s15]
    %s43 = sshll.u32 1, 1
    %s44 = ssub.s32 %s43, 1
    %s45 = smul.addr 1, 4
    %s46 = scalar_lea.vmem %s1, %s45
    %47 = vst [vmem:[%s46] sm:%s44] %v42
    %s48 = scalar_lea.vmem [#allocation0], 40
    %v49 = vld [vmem:[%s48] sm:%s15]
    %s50 = sshll.u32 1, 1
    %s51 = ssub.s32 %s50, 1
    %s52 = smul.addr 1, 5
    %s53 = scalar_lea.vmem %s1, %s52
    %54 = vst [vmem:[%s53] sm:%s51] %v49
    %s55 = scalar_lea.vmem [#allocation0], 48
    %v56 = vld [vmem:[%s55] sm:%s15]
    %s57 = sshll.u32 1, 1
    %s58 = ssub.s32 %s57, 1
    %s59 = smul.addr 1, 6
    %s60 = scalar_lea.vmem %s1, %s59
    %61 = vst [vmem:[%s60] sm:%s58] %v56
    %s62 = scalar_lea.vmem [#allocation0], 56
    %v63 = vld [vmem:[%s62] sm:%s15]
    %s64 = sshll.u32 1, 1
    %s65 = ssub.s32 %s64, 1
    %s66 = smul.addr 1, 7
    %s67 = scalar_lea.vmem %s1, %s66
    %68 = vst [vmem:[%s67] sm:%s65] %v63

// kernel: generator_forward.9
$region0: #{generator_forward.9}
  #allocation0 [shape = 'u32[]', space=smem, size = 0x4, offset = 0x4, fixed_abs, tag = 'smem constant byte address 0x4 - core index']
  #allocation1 [shape = 'u32[144,128]{1,0:T(1,128)}', space=vmem, size = 0x12000, scoped, tag = 'internal scratch']
  %s0 = inlined_call_operand.vmem [shape: bf16[2,16], index: 0, kind: input, shape index: {}]
  %s1 = inlined_call_operand.hbm [shape: bf16[16,1024], index: 1, kind: input, shape index: {}]
  %s2 = inlined_call_operand.vmem [shape: f32[2,1024], index: 2, kind: output, shape index: {0}]
  %s3 = inlined_call_operand.vmem [shape: f32[1,2,1024], index: 3, kind: output, shape index: {1}]
  %4 = xla_tuple %s2, %s3
  %s5 = sld [smem:[#allocation0]]
  $region30: #{generator_forward.9} parent=0
    _
  %s7 = ssub.s32 1, %s5
  %s8 = scalar_select 0, %s7, %s5
  $region1: #{generator_forward.9} parent=0
    #allocation2 [shape = 'u8[32768]{0}', space=vmem, size = 0x8000, scoped, tag = 'input window, operand 1, single buffered']
    #allocation3 [shape = 's32[1]{0}', space=sflag, size = 0x4, scoped, tag = 'scoped memory for generator_forward.9']
    %9 = vsyncpa [#allocation3], 0
    // Predicated region
    $region2: #{generator_forward.9} parent=1 // pred_check
      _
    $region3: #{generator_forward.9} parent=1 // pred_check_branch
      %11 = sbr.rel (0) target = $region5
    $region4: #{generator_forward.9} parent=1 // pred_region
      _
    $region5: #{generator_forward.9} parent=1 // pred_fallthru
      _
    // Predicated region
    $region6: #{generator_forward.9} parent=1 // pred_check
      _
    $region7: #{generator_forward.9} parent=1 // pred_check_branch
      %13 = sbr.rel (0) target = $region9
    $region8: #{generator_forward.9} parent=1 // pred_region
      %s15 = ssub.s32 1024, 1024
      %16 = vsyncadd [#allocation3], %s15
      %s17 = sshll.u32 [#allocation2], 4
      %s18 = int_to_ptr.vmem [resolvable:$true] %s17
      %23 = dma.hbm_to_vmem [thread:$0]  %s1, 1024, %s18, [#allocation3], 512, 512, 32
    $region9: #{generator_forward.9} parent=1 // pred_fallthru
      _
    // Predicated region
    $region10: #{generator_forward.9} parent=1 // pred_check
      _
    $region11: #{generator_forward.9} parent=1 // pred_check_branch
      %25 = sbr.rel (0) target = $region13
    $region12: #{generator_forward.9} parent=1 // pred_region
      %26 = dma.done [#allocation3], 1024
    $region13: #{generator_forward.9} parent=1 // pred_fallthru
      _
    %v28 = vld [vmem:[%s0] sm:$0x1]
    %v29 = vld [vmem:[#allocation2] sm:$0xff]
    %v30 = vld [vmem:[#allocation2 + $0x8] sm:$0xff]
    %v31 = vld [vmem:[#allocation2 + $0x10] sm:$0xff]
    %v32 = vld [vmem:[#allocation2 + $0x18] sm:$0xff]
    %v33 = vld [vmem:[#allocation2 + $0x20] sm:$0xff]
    %v34 = vld [vmem:[#allocation2 + $0x28] sm:$0xff]
    %v35 = vld [vmem:[#allocation2 + $0x30] sm:$0xff]
    %v36 = vld [vmem:[#allocation2 + $0x38] sm:$0xff]
    %v45 = vunpack.c.l.b16 %v29
    %v46 = vunpack.c.h.b16 %v29
    %v47 = vunpack.c.l.b16 %v30
    %v48 = vunpack.c.h.b16 %v30
    %v49 = vunpack.c.l.b16 %v31
    %v50 = vunpack.c.h.b16 %v31
    %v51 = vunpack.c.l.b16 %v32
    %v52 = vunpack.c.h.b16 %v32
    %v53 = vunpack.c.l.b16 %v33
    %v54 = vunpack.c.h.b16 %v33
    %v55 = vunpack.c.l.b16 %v34
    %v56 = vunpack.c.h.b16 %v34
    %v57 = vunpack.c.l.b16 %v35
    %v58 = vunpack.c.h.b16 %v35
    %v59 = vunpack.c.l.b16 %v36
    %v60 = vunpack.c.h.b16 %v36
    %v61 = vpack.c.b16 %v53, %v45
    %v62 = vpack.c.b16 %v54, %v46
    %v63 = vpack.c.b16 %v55, %v47
    %v64 = vpack.c.b16 %v56, %v48
    %v65 = vpack.c.b16 %v57, %v49
    %v66 = vpack.c.b16 %v58, %v50
    %v67 = vpack.c.b16 %v59, %v51
    %v68 = vpack.c.b16 %v60, %v52
    %vm77 = vcmask 130048
    %v79 = vsel %vm77, %v28, 0
    %81 = vmatprep.subr.bf16.mxu0 0
    %82 = vmatpush1.bf16.msra.mxu0 0
    %83 = vmatprep.subr.bf16.mxu0 0
    %84 = vmatpush1.bf16.msra.mxu0 0
    %85 = vmatprep.subr.bf16.mxu0 0
    %86 = vmatpush1.bf16.msra.mxu0 0
    %87 = vmatprep.subr.bf16.mxu0 0
    %88 = vmatpush1.bf16.msra.mxu0 0
    %89 = vmatprep.subr.bf16.mxu0 0
    %90 = vmatpush1.bf16.msra.mxu0 0
    %91 = vmatprep.subr.bf16.mxu0 0
    %92 = vmatpush1.bf16.msra.mxu0 0
    %93 = vmatprep.subr.bf16.mxu0 0
    %94 = vmatpush1.bf16.msra.mxu0 0
    %95 = vmatprep.subr.bf16.mxu0 %v62
    %96 = vmatpush1.bf16.msra.mxu0 %v61
    %97 = vmatprep.subr.bf16.mxu0 0
    %98 = vmatpush2.bf16.msra.mxu0 0
    %99 = vmatprep.subr.bf16.mxu0 0
    %100 = vmatpush2.bf16.msra.mxu0 0
    %101 = vmatprep.subr.bf16.mxu0 0
    %102 = vmatpush2.bf16.msra.mxu0 0
    %103 = vmatprep.subr.bf16.mxu0 0
    %104 = vmatpush2.bf16.msra.mxu0 0
    %105 = vmatprep.subr.bf16.mxu0 0
    %106 = vmatpush2.bf16.msra.mxu0 0
    %107 = vmatprep.subr.bf16.mxu0 0
    %108 = vmatpush2.bf16.msra.mxu0 0
    %109 = vmatprep.subr.bf16.mxu0 0
    %110 = vmatpush2.bf16.msra.mxu0 0
    %111 = vmatprep.subr.bf16.mxu0 0
    %112 = vmatpush2.bf16.msra.mxu0 0
    %113 = vmatprep.mubr.bf16.mxu0 0
    %114 = vmatmul.mubr.bf16.gmra.mxu0 %v79
    %v115 = vpop.f32.mrf.mxu0
    %v116 = vadd.f32 0.0, %v115
    %v117 = vpop.f32.mrf.mxu0
    %v118 = vadd.f32 0.0, %v117
    %v119 = vpop.f32.mrf.mxu0
    %v120 = vpop.f32.mrf.mxu0
    %121 = vdwg.mxu0
    %122 = vmatprep.subr.bf16.mxu0 0
    %123 = vmatpush1.bf16.msra.mxu0 0
    %124 = vmatprep.subr.bf16.mxu0 0
    %125 = vmatpush1.bf16.msra.mxu0 0
    %126 = vmatprep.subr.bf16.mxu0 0
    %127 = vmatpush1.bf16.msra.mxu0 0
    %128 = vmatprep.subr.bf16.mxu0 0
    %129 = vmatpush1.bf16.msra.mxu0 0
    %130 = vmatprep.subr.bf16.mxu0 0
    %131 = vmatpush1.bf16.msra.mxu0 0
    %132 = vmatprep.subr.bf16.mxu0 0
    %133 = vmatpush1.bf16.msra.mxu0 0
    %134 = vmatprep.subr.bf16.mxu0 0
    %135 = vmatpush1.bf16.msra.mxu0 0
    %136 = vmatprep.subr.bf16.mxu0 %v64
    %137 = vmatpush1.bf16.msra.mxu0 %v63
    %138 = vmatprep.subr.bf16.mxu0 0
    %139 = vmatpush2.bf16.msra.mxu0 0
    %140 = vmatprep.subr.bf16.mxu0 0
    %141 = vmatpush2.bf16.msra.mxu0 0
    %142 = vmatprep.subr.bf16.mxu0 0
    %143 = vmatpush2.bf16.msra.mxu0 0
    %144 = vmatprep.subr.bf16.mxu0 0
    %145 = vmatpush2.bf16.msra.mxu0 0
    %146 = vmatprep.subr.bf16.mxu0 0
    %147 = vmatpush2.bf16.msra.mxu0 0
    %148 = vmatprep.subr.bf16.mxu0 0
    %149 = vmatpush2.bf16.msra.mxu0 0
    %150 = vmatprep.subr.bf16.mxu0 0
    %151 = vmatpush2.bf16.msra.mxu0 0
    %152 = vmatprep.subr.bf16.mxu0 0
    %153 = vmatpush2.bf16.msra.mxu0 0
    %154 = vmatprep.mubr.bf16.mxu0 0
    %155 = vmatmul.mubr.bf16.gmra.mxu0 %v79
    %v156 = vpop.f32.mrf.mxu0
    %v157 = vadd.f32 0.0, %v156
    %v158 = vpop.f32.mrf.mxu0
    %v159 = vadd.f32 0.0, %v158
    %v160 = vpop.f32.mrf.mxu0
    %v161 = vpop.f32.mrf.mxu0
    %162 = vdwg.mxu0
    %163 = vmatprep.subr.bf16.mxu0 0
    %164 = vmatpush1.bf16.msra.mxu0 0
    %165 = vmatprep.subr.bf16.mxu0 0
    %166 = vmatpush1.bf16.msra.mxu0 0
    %167 = vmatprep.subr.bf16.mxu0 0
    %168 = vmatpush1.bf16.msra.mxu0 0
    %169 = vmatprep.subr.bf16.mxu0 0
    %170 = vmatpush1.bf16.msra.mxu0 0
    %171 = vmatprep.subr.bf16.mxu0 0
    %172 = vmatpush1.bf16.msra.mxu0 0
    %173 = vmatprep.subr.bf16.mxu0 0
    %174 = vmatpush1.bf16.msra.mxu0 0
    %175 = vmatprep.subr.bf16.mxu0 0
    %176 = vmatpush1.bf16.msra.mxu0 0
    %177 = vmatprep.subr.bf16.mxu0 %v66
    %178 = vmatpush1.bf16.msra.mxu0 %v65
    %179 = vmatprep.subr.bf16.mxu0 0
    %180 = vmatpush2.bf16.msra.mxu0 0
    %181 = vmatprep.subr.bf16.mxu0 0
    %182 = vmatpush2.bf16.msra.mxu0 0
    %183 = vmatprep.subr.bf16.mxu0 0
    %184 = vmatpush2.bf16.msra.mxu0 0
    %185 = vmatprep.subr.bf16.mxu0 0
    %186 = vmatpush2.bf16.msra.mxu0 0
    %187 = vmatprep.subr.bf16.mxu0 0
    %188 = vmatpush2.bf16.msra.mxu0 0
    %189 = vmatprep.subr.bf16.mxu0 0
    %190 = vmatpush2.bf16.msra.mxu0 0
    %191 = vmatprep.subr.bf16.mxu0 0
    %192 = vmatpush2.bf16.msra.mxu0 0
    %193 = vmatprep.subr.bf16.mxu0 0
    %194 = vmatpush2.bf16.msra.mxu0 0
    %195 = vmatprep.mubr.bf16.mxu0 0
    %196 = vmatmul.mubr.bf16.gmra.mxu0 %v79
    %v197 = vpop.f32.mrf.mxu0
    %v198 = vadd.f32 0.0, %v197
    %v199 = vpop.f32.mrf.mxu0
    %v200 = vadd.f32 0.0, %v199
    %v201 = vpop.f32.mrf.mxu0
    %v202 = vpop.f32.mrf.mxu0
    %203 = vdwg.mxu0
    %204 = vmatprep.subr.bf16.mxu0 0
    %205 = vmatpush1.bf16.msra.mxu0 0
    %206 = vmatprep.subr.bf16.mxu0 0
    %207 = vmatpush1.bf16.msra.mxu0 0
    %208 = vmatprep.subr.bf16.mxu0 0
    %209 = vmatpush1.bf16.msra.mxu0 0
    %210 = vmatprep.subr.bf16.mxu0 0
    %211 = vmatpush1.bf16.msra.mxu0 0
    %212 = vmatprep.subr.bf16.mxu0 0
    %213 = vmatpush1.bf16.msra.mxu0 0
    %214 = vmatprep.subr.bf16.mxu0 0
    %215 = vmatpush1.bf16.msra.mxu0 0
    %216 = vmatprep.subr.bf16.mxu0 0
    %217 = vmatpush1.bf16.msra.mxu0 0
    %218 = vmatprep.subr.bf16.mxu0 %v68
    %219 = vmatpush1.bf16.msra.mxu0 %v67
    %220 = vmatprep.subr.bf16.mxu0 0
    %221 = vmatpush2.bf16.msra.mxu0 0
    %222 = vmatprep.subr.bf16.mxu0 0
    %223 = vmatpush2.bf16.msra.mxu0 0
    %224 = vmatprep.subr.bf16.mxu0 0
    %225 = vmatpush2.bf16.msra.mxu0 0
    %226 = vmatprep.subr.bf16.mxu0 0
    %227 = vmatpush2.bf16.msra.mxu0 0
    %228 = vmatprep.subr.bf16.mxu0 0
    %229 = vmatpush2.bf16.msra.mxu0 0
    %230 = vmatprep.subr.bf16.mxu0 0
    %231 = vmatpush2.bf16.msra.mxu0 0
    %232 = vmatprep.subr.bf16.mxu0 0
    %233 = vmatpush2.bf16.msra.mxu0 0
    %234 = vmatprep.subr.bf16.mxu0 0
    %235 = vmatpush2.bf16.msra.mxu0 0
    %236 = vmatprep.mubr.bf16.mxu0 0
    %237 = vmatmul.mubr.bf16.gmra.mxu0 %v79
    %v238 = vpop.f32.mrf.mxu0
    %v239 = vadd.f32 0.0, %v238
    %v240 = vpop.f32.mrf.mxu0
    %v241 = vadd.f32 0.0, %v240
    %v242 = vpop.f32.mrf.mxu0
    %v243 = vpop.f32.mrf.mxu0
    %244 = vdwg.mxu0
    %vm245 = vcmask 1041408
    %v246 = vsel %vm245, %v116, 0.0
    %v247 = vrot.slane %v246, 4
    %v248 = vadd.f32 %v246, %v247
    %v249 = vrot.slane %v248, 2
    %v250 = vadd.f32 %v248, %v249
    %v251 = vrot.slane %v250, 1
    %v252 = vadd.f32 %v250, %v251
    %v253 = vsel %vm245, %v118, 0.0
    %v254 = vrot.slane %v253, 4
    %v255 = vadd.f32 %v253, %v254
    %v256 = vrot.slane %v255, 2
    %v257 = vadd.f32 %v255, %v256
    %v258 = vrot.slane %v257, 1
    %v259 = vadd.f32 %v257, %v258
    %v260 = vsel %vm245, %v157, 0.0
    %v261 = vrot.slane %v260, 4
    %v262 = vadd.f32 %v260, %v261
    %v263 = vrot.slane %v262, 2
    %v264 = vadd.f32 %v262, %v263
    %v265 = vrot.slane %v264, 1
    %v266 = vadd.f32 %v264, %v265
    %v267 = vsel %vm245, %v159, 0.0
    %v268 = vrot.slane %v267, 4
    %v269 = vadd.f32 %v267, %v268
    %v270 = vrot.slane %v269, 2
    %v271 = vadd.f32 %v269, %v270
    %v272 = vrot.slane %v271, 1
    %v273 = vadd.f32 %v271, %v272
    %v274 = vsel %vm245, %v198, 0.0
    %v275 = vrot.slane %v274, 4
    %v276 = vadd.f32 %v274, %v275
    %v277 = vrot.slane %v276, 2
    %v278 = vadd.f32 %v276, %v277
    %v279 = vrot.slane %v278, 1
    %v280 = vadd.f32 %v278, %v279
    %v281 = vsel %vm245, %v200, 0.0
    %v282 = vrot.slane %v281, 4
    %v283 = vadd.f32 %v281, %v282
    %v284 = vrot.slane %v283, 2
    %v285 = vadd.f32 %v283, %v284
    %v286 = vrot.slane %v285, 1
    %v287 = vadd.f32 %v285, %v286
    %v288 = vsel %vm245, %v239, 0.0
    %v289 = vrot.slane %v288, 4
    %v290 = vadd.f32 %v288, %v289
    %v291 = vrot.slane %v290, 2
    %v292 = vadd.f32 %v290, %v291
    %v293 = vrot.slane %v292, 1
    %v294 = vadd.f32 %v292, %v293
    %v295 = vsel %vm245, %v241, 0.0
    %v296 = vrot.slane %v295, 4
    %v297 = vadd.f32 %v295, %v296
    %v298 = vrot.slane %v297, 2
    %v299 = vadd.f32 %v297, %v298
    %v300 = vrot.slane %v299, 1
    %v301 = vadd.f32 %v299, %v300
    %v302 = vmul.f32 %v116, %v116
    %v303 = vmul.f32 %v118, %v118
    %v304 = vmul.f32 %v157, %v157
    %v305 = vmul.f32 %v159, %v159
    %v306 = vmul.f32 %v198, %v198
    %v307 = vmul.f32 %v200, %v200
    %v308 = vmul.f32 %v239, %v239
    %v309 = vmul.f32 %v241, %v241
    %v310 = vsel %vm245, %v302, 0.0
    %v311 = vrot.slane %v310, 4
    %v312 = vadd.f32 %v310, %v311
    %v313 = vrot.slane %v312, 2
    %v314 = vadd.f32 %v312, %v313
    %v315 = vrot.slane %v314, 1
    %v316 = vadd.f32 %v314, %v315
    %v317 = vsel %vm245, %v303, 0.0
    %v318 = vrot.slane %v317, 4
    %v319 = vadd.f32 %v317, %v318
    %v320 = vrot.slane %v319, 2
    %v321 = vadd.f32 %v319, %v320
    %v322 = vrot.slane %v321, 1
    %v323 = vadd.f32 %v321, %v322
    %v324 = vsel %vm245, %v304, 0.0
    %v325 = vrot.slane %v324, 4
    %v326 = vadd.f32 %v324, %v325
    %v327 = vrot.slane %v326, 2
    %v328 = vadd.f32 %v326, %v327
    %v329 = vrot.slane %v328, 1
    %v330 = vadd.f32 %v328, %v329
    %v331 = vsel %vm245, %v305, 0.0
    %v332 = vrot.slane %v331, 4
    %v333 = vadd.f32 %v331, %v332
    %v334 = vrot.slane %v333, 2
    %v335 = vadd.f32 %v333, %v334
    %v336 = vrot.slane %v335, 1
    %v337 = vadd.f32 %v335, %v336
    %v338 = vsel %vm245, %v306, 0.0
    %v339 = vrot.slane %v338, 4
    %v340 = vadd.f32 %v338, %v339
    %v341 = vrot.slane %v340, 2
    %v342 = vadd.f32 %v340, %v341
    %v343 = vrot.slane %v342, 1
    %v344 = vadd.f32 %v342, %v343
    %v345 = vsel %vm245, %v307, 0.0
    %v346 = vrot.slane %v345, 4
    %v347 = vadd.f32 %v345, %v346
    %v348 = vrot.slane %v347, 2
    %v349 = vadd.f32 %v347, %v348
    %v350 = vrot.slane %v349, 1
    %v351 = vadd.f32 %v349, %v350
    %v352 = vsel %vm245, %v308, 0.0
    %v353 = vrot.slane %v352, 4
    %v354 = vadd.f32 %v352, %v353
    %v355 = vrot.slane %v354, 2
    %v356 = vadd.f32 %v354, %v355
    %v357 = vrot.slane %v356, 1
    %v358 = vadd.f32 %v356, %v357
    %v359 = vsel %vm245, %v309, 0.0
    %v360 = vrot.slane %v359, 4
    %v361 = vadd.f32 %v359, %v360
    %v362 = vrot.slane %v361, 2
    %v363 = vadd.f32 %v361, %v362
    %v364 = vrot.slane %v363, 1
    %v365 = vadd.f32 %v363, %v364
    %vm366 = vcmask 1040384
    %v367 = vsel %vm366, %v252, %v316
    %v368 = vsel %vm366, %v259, %v323
    %v369 = vsel %vm366, %v266, %v330
    %v370 = vsel %vm366, %v273, %v337
    %v371 = vsel %vm366, %v280, %v344
    %v372 = vsel %vm366, %v287, %v351
    %v373 = vsel %vm366, %v294, %v358
    %v374 = vsel %vm366, %v301, %v365
    %v383 = vcombine.low %v367, %v368
    %v384 = vcombine.low %v369, %v370
    %v386 = vunpack.c.l.s4 1983009808
    %v387 = vunpack.c.0.s8 %v386
    %v388 = vlaneseq
    %v389 = vshrl.u32 %v388, 7
    %v390 = vsub.s32 %v387, %v389
    %v391 = vrot.slane %v383, %v390
    %v393 = vunpack.c.l.s4 1983009808
    %v394 = vunpack.c.0.s8 %v393
    %v395 = vlaneseq
    %v396 = vshrl.u32 %v395, 7
    %v397 = vsub.s32 %v394, %v396
    %v398 = vrot.slane %v384, %v397
    %v399 = vcombine.low %v391, %v398
    %v400 = vcombine.low %v371, %v372
    %v401 = vcombine.low %v373, %v374
    %v403 = vunpack.c.l.s4 1983009808
    %v404 = vunpack.c.0.s8 %v403
    %v405 = vlaneseq
    %v406 = vshrl.u32 %v405, 7
    %v407 = vsub.s32 %v404, %v406
    %v408 = vrot.slane %v400, %v407
    %v410 = vunpack.c.l.s4 1983009808
    %v411 = vunpack.c.0.s8 %v410
    %v412 = vlaneseq
    %v413 = vshrl.u32 %v412, 7
    %v414 = vsub.s32 %v411, %v413
    %v415 = vrot.slane %v401, %v414
    %v416 = vcombine.low %v408, %v415
    %419 = vst [vmem:[%s3] sm:$0xff] %v399
    %420 = vst [vmem:[%s3 + $0x8] sm:$0xff] %v416
    %v429 = vcombine.low %v116, %v118
    %v430 = vcombine.low %v157, %v159
    %v432 = vunpack.c.l.s4 1983009808
    %v433 = vunpack.c.0.s8 %v432
    %v434 = vlaneseq
    %v435 = vshrl.u32 %v434, 7
    %v436 = vsub.s32 %v433, %v435
    %v437 = vrot.slane %v429, %v436
    %v439 = vunpack.c.l.s4 1983009808
    %v440 = vunpack.c.0.s8 %v439
    %v441 = vlaneseq
    %v442 = vshrl.u32 %v441, 7
    %v443 = vsub.s32 %v440, %v442
    %v444 = vrot.slane %v430, %v443
    %v445 = vcombine.low %v437, %v444
    %v446 = vcombine.low %v198, %v200
    %v447 = vcombine.low %v239, %v241
    %v449 = vunpack.c.l.s4 1983009808
    %v450 = vunpack.c.0.s8 %v449
    %v451 = vlaneseq
    %v452 = vshrl.u32 %v451, 7
    %v453 = vsub.s32 %v450, %v452
    %v454 = vrot.slane %v446, %v453
    %v456 = vunpack.c.l.s4 1983009808
    %v457 = vunpack.c.0.s8 %v456
    %v458 = vlaneseq
    %v459 = vshrl.u32 %v458, 7
    %v460 = vsub.s32 %v457, %v459
    %v461 = vrot.slane %v447, %v460
    %v462 = vcombine.low %v454, %v461
    %465 = vst [vmem:[%s2] sm:$0xff] %v445
    %466 = vst [vmem:[%s2 + $0x8] sm:$0xff] %v462
    // Predicated region
    $region14: #{generator_forward.9} parent=1 // pred_check
      _
    $region15: #{generator_forward.9} parent=1 // pred_check_branch
      %468 = sbr.rel (0) target = $region17
    $region16: #{generator_forward.9} parent=1 // pred_region
      _
    $region17: #{generator_forward.9} parent=1 // pred_fallthru
      _
    // Predicated region
    $region18: #{generator_forward.9} parent=1 // pred_check
      _
    $region19: #{generator_forward.9} parent=1 // pred_check_branch
      %470 = sbr.rel (0) target = $region21
    $region20: #{generator_forward.9} parent=1 // pred_region
      _
    $region21: #{generator_forward.9} parent=1 // pred_fallthru
      _
    // Predicated region
    $region22: #{generator_forward.9} parent=1 // pred_check
      _
    $region23: #{generator_forward.9} parent=1 // pred_check_branch
      %472 = sbr.rel (0) target = $region25
    $region24: #{generator_forward.9} parent=1 // pred_region
      _
    $region25: #{generator_forward.9} parent=1 // pred_fallthru
      _
    // Predicated region
    $region26: #{generator_forward.9} parent=1 // pred_check
      _
    $region27: #{generator_forward.9} parent=1 // pred_check_branch
      %474 = sbr.rel (0) target = $region29
    $region28: #{generator_forward.9} parent=1 // pred_region
      _
    $region29: #{generator_forward.9} parent=1 // pred_fallthru
      _
    %475 = vsyncpa [#allocation3], 1

// kernel: squeeze.10
$region0: #{squeeze.10}
  %s0 = inlined_call_operand.vmem [shape: f32[128], index: 0, kind: input, shape index: {}]
  %s1 = inlined_call_operand.vmem [shape: f32[4,32], index: 1, kind: output, shape index: {}]
  $region1: #{squeeze.10} parent=0
    #allocation0 [shape = 'u8[4096]{0}', space=vmem, size = 0x1000, scoped, tag = 'scoped mem for output reshape']
    #allocation1 [shape = 'u8[4096]{0}', space=vmem, size = 0x1000, scoped, tag = 'scoped mem for input reshape']
    %s3 = sshll.u32 1, 1
    %s4 = ssub.s32 %s3, 1
    %v5 = vld [vmem:[%s0] sm:%s4]
    %6 = vst [vmem:[#allocation1] sm:%s4] %v5
    %v7 = vld [vmem:[#allocation1] sm:$0x1]
    %vm8 = vcmask 261120
    %9 = vst.msk [vmem:[#allocation0] sm:$0x1] %vm8, %v7
    %v10 = vld [vmem:[#allocation1] sm:$0x1]
    %11 = vrot.lane.b32.xlu0 %v10, 96
    %v12 = vpop.permute.xlu0 %11
    %vm13 = vcmask 261120
    %s14 = scalar_lea.vmem [#allocation0], 1
    %15 = vst.msk [vmem:[%s14] sm:$0x1] %vm13, %v12
    %v16 = vld [vmem:[#allocation1] sm:$0x1]
    %17 = vrot.lane.b32.xlu0 %v16, 64
    %v18 = vpop.permute.xlu0 %17
    %vm19 = vcmask 261120
    %s20 = scalar_lea.vmem [#allocation0], 2
    %21 = vst.msk [vmem:[%s20] sm:$0x1] %vm19, %v18
    %v22 = vld [vmem:[#allocation1] sm:$0x1]
    %23 = vrot.lane.b32.xlu0 %v22, 32
    %v24 = vpop.permute.xlu0 %23
    %vm25 = vcmask 261120
    %s26 = scalar_lea.vmem [#allocation0], 3
    %27 = vst.msk [vmem:[%s26] sm:$0x1] %vm25, %v24
    %s29 = sshll.u32 1, 4
    %s30 = ssub.s32 %s29, 1
    %v32 = vld [vmem:[#allocation0] sm:%s30]
    %s33 = sshll.u32 1, 4
    %s34 = ssub.s32 %s33, 1
    %35 = vst [vmem:[%s1] sm:%s34] %v32

// kernel: tile.57
$region0: #{tile.57}
  #allocation0 [shape = 's32[1]{0}', space=sflag, size = 0x4, scoped, tag = 'scoped memory for tile.57']
  %s0 = inlined_call_operand.vmem [shape: f32[32], index: 0, kind: input, shape index: {}]
  %s1 = inlined_call_operand.vmem [shape: f32[4,32], index: 1, kind: output, shape index: {}]
  // Predicated region
  $region2: #{tile.57} parent=0 // pred_check
    _
  $region3: #{tile.57} parent=0 // pred_check_branch
    %3 = sbr.rel (0) target = $region5
  $region4: #{tile.57} parent=0 // pred_region
    _
  $region5: #{tile.57} parent=0 // pred_fallthru
    _
  %v4 = vld [vmem:[%s0] ss:$0 sm:$0xff]
  %5 = vst [vmem:[%s1] sm:$0xf] %v4

// kernel: generator_forward.10
$region0: #{generator_forward.10}
  #allocation0 [shape = 'u32[]', space=smem, size = 0x4, offset = 0x4, fixed_abs, tag = 'smem constant byte address 0x4 - core index']
  #allocation1 [shape = 'u32[144,128]{1,0:T(1,128)}', space=vmem, size = 0x12000, scoped, tag = 'internal scratch']
  %s0 = inlined_call_operand.vmem [shape: f32[2,1024], index: 0, kind: input, shape index: {}]
  %s1 = inlined_call_operand.vmem [shape: f32[1,1024], index: 1, kind: input, shape index: {}]
  %s2 = inlined_call_operand.vmem [shape: f32[1,1024], index: 2, kind: input, shape index: {}]
  %s3 = inlined_call_operand.vmem [shape: bf16[2,1024], index: 3, kind: output, shape index: {}]
  %s4 = sld [smem:[#allocation0]]
  $region22: #{generator_forward.10} parent=0
    _
  %s6 = ssub.s32 1, %s4
  %s7 = scalar_select 0, %s6, %s4
  // Predicated region
  $region2: #{generator_forward.10} parent=0 // pred_check
    _
  $region3: #{generator_forward.10} parent=0 // pred_check_branch
    %9 = sbr.rel (0) target = $region5
  $region4: #{generator_forward.10} parent=0 // pred_region
    _
  $region5: #{generator_forward.10} parent=0 // pred_fallthru
    _
  // Predicated region
  $region6: #{generator_forward.10} parent=0 // pred_check
    _
  $region7: #{generator_forward.10} parent=0 // pred_check_branch
    %11 = sbr.rel (0) target = $region9
  $region8: #{generator_forward.10} parent=0 // pred_region
    _
  $region9: #{generator_forward.10} parent=0 // pred_fallthru
    _
  // Predicated region
  $region10: #{generator_forward.10} parent=0 // pred_check
    _
  $region11: #{generator_forward.10} parent=0 // pred_check_branch
    %13 = sbr.rel (0) target = $region13
  $region12: #{generator_forward.10} parent=0 // pred_region
    _
  $region13: #{generator_forward.10} parent=0 // pred_fallthru
    _
  %v14 = vld [vmem:[%s0] sm:$0xff]
  %v15 = vld [vmem:[%s0 + $0x8] sm:$0xff]
  %v16 = vld [vmem:[%s1] sm:$0xff]
  %v18 = vlaneseq
  %v19 = vshrl.u32 %v18, 7
  %v20 = vsub.s32 0, %v19
  %v21 = vrot.slane %v16, %v20
  %v22 = vlaneseq
  %v23 = vshrl.u32 %v22, 7
  %v24 = vsub.s32 1, %v23
  %v25 = vrot.slane %v16, %v24
  %v26 = vlaneseq
  %v27 = vshrl.u32 %v26, 7
  %v28 = vsub.s32 2, %v27
  %v29 = vrot.slane %v16, %v28
  %v30 = vlaneseq
  %v31 = vshrl.u32 %v30, 7
  %v32 = vsub.s32 3, %v31
  %v33 = vrot.slane %v16, %v32
  %v34 = vlaneseq
  %v35 = vshrl.u32 %v34, 7
  %v36 = vsub.s32 4, %v35
  %v37 = vrot.slane %v16, %v36
  %v38 = vlaneseq
  %v39 = vshrl.u32 %v38, 7
  %v40 = vsub.s32 5, %v39
  %v41 = vrot.slane %v16, %v40
  %v42 = vlaneseq
  %v43 = vshrl.u32 %v42, 7
  %v44 = vsub.s32 6, %v43
  %v45 = vrot.slane %v16, %v44
  %v46 = vlaneseq
  %v47 = vshrl.u32 %v46, 7
  %v48 = vsub.s32 7, %v47
  %v49 = vrot.slane %v16, %v48
  %v50 = vcombine.low %v21, %v25
  %v51 = vcombine.low %v29, %v33
  %v53 = vunpack.c.l.s4 1983009808
  %v54 = vunpack.c.0.s8 %v53
  %v55 = vlaneseq
  %v56 = vshrl.u32 %v55, 7
  %v57 = vsub.s32 %v54, %v56
  %v58 = vrot.slane %v50, %v57
  %v60 = vunpack.c.l.s4 1983009808
  %v61 = vunpack.c.0.s8 %v60
  %v62 = vlaneseq
  %v63 = vshrl.u32 %v62, 7
  %v64 = vsub.s32 %v61, %v63
  %v65 = vrot.slane %v51, %v64
  %v66 = vcombine.low %v58, %v65
  %v67 = vcombine.low %v37, %v41
  %v68 = vcombine.low %v45, %v49
  %v70 = vunpack.c.l.s4 1983009808
  %v71 = vunpack.c.0.s8 %v70
  %v72 = vlaneseq
  %v73 = vshrl.u32 %v72, 7
  %v74 = vsub.s32 %v71, %v73
  %v75 = vrot.slane %v67, %v74
  %v77 = vunpack.c.l.s4 1983009808
  %v78 = vunpack.c.0.s8 %v77
  %v79 = vlaneseq
  %v80 = vshrl.u32 %v79, 7
  %v81 = vsub.s32 %v78, %v80
  %v82 = vrot.slane %v68, %v81
  %v83 = vcombine.low %v75, %v82
  %v86 = vmul.f32 %v14, %v66
  %v87 = vmul.f32 %v15, %v83
  %v88 = vld [vmem:[%s2] sm:$0xff]
  %v90 = vlaneseq
  %v91 = vshrl.u32 %v90, 7
  %v92 = vsub.s32 0, %v91
  %v93 = vrot.slane %v88, %v92
  %v94 = vlaneseq
  %v95 = vshrl.u32 %v94, 7
  %v96 = vsub.s32 1, %v95
  %v97 = vrot.slane %v88, %v96
  %v98 = vlaneseq
  %v99 = vshrl.u32 %v98, 7
  %v100 = vsub.s32 2, %v99
  %v101 = vrot.slane %v88, %v100
  %v102 = vlaneseq
  %v103 = vshrl.u32 %v102, 7
  %v104 = vsub.s32 3, %v103
  %v105 = vrot.slane %v88, %v104
  %v106 = vlaneseq
  %v107 = vshrl.u32 %v106, 7
  %v108 = vsub.s32 4, %v107
  %v109 = vrot.slane %v88, %v108
  %v110 = vlaneseq
  %v111 = vshrl.u32 %v110, 7
  %v112 = vsub.s32 5, %v111
  %v113 = vrot.slane %v88, %v112
  %v114 = vlaneseq
  %v115 = vshrl.u32 %v114, 7
  %v116 = vsub.s32 6, %v115
  %v117 = vrot.slane %v88, %v116
  %v118 = vlaneseq
  %v119 = vshrl.u32 %v118, 7
  %v120 = vsub.s32 7, %v119
  %v121 = vrot.slane %v88, %v120
  %v122 = vcombine.low %v93, %v97
  %v123 = vcombine.low %v101, %v105
  %v125 = vunpack.c.l.s4 1983009808
  %v126 = vunpack.c.0.s8 %v125
  %v127 = vlaneseq
  %v128 = vshrl.u32 %v127, 7
  %v129 = vsub.s32 %v126, %v128
  %v130 = vrot.slane %v122, %v129
  %v132 = vunpack.c.l.s4 1983009808
  %v133 = vunpack.c.0.s8 %v132
  %v134 = vlaneseq
  %v135 = vshrl.u32 %v134, 7
  %v136 = vsub.s32 %v133, %v135
  %v137 = vrot.slane %v123, %v136
  %v138 = vcombine.low %v130, %v137
  %v139 = vcombine.low %v109, %v113
  %v140 = vcombine.low %v117, %v121
  %v142 = vunpack.c.l.s4 1983009808
  %v143 = vunpack.c.0.s8 %v142
  %v144 = vlaneseq
  %v145 = vshrl.u32 %v144, 7
  %v146 = vsub.s32 %v143, %v145
  %v147 = vrot.slane %v139, %v146
  %v149 = vunpack.c.l.s4 1983009808
  %v150 = vunpack.c.0.s8 %v149
  %v151 = vlaneseq
  %v152 = vshrl.u32 %v151, 7
  %v153 = vsub.s32 %v150, %v152
  %v154 = vrot.slane %v140, %v153
  %v155 = vcombine.low %v147, %v154
  %v158 = vadd.f32 %v86, %v138
  %v159 = vadd.f32 %v87, %v155
  %v160 = vmax.f32 %v158, 0.0
  %v161 = vmax.f32 %v159, 0.0
  %v164 = vcombine.high %v160, %v160
  %v166 = vunpack.c.l.s4 1983009808
  %v167 = vunpack.c.0.s8 %v166
  %v168 = vlaneseq
  %v169 = vshrl.u32 %v168, 7
  %v170 = vsub.s32 %v167, %v169
  %v171 = vrot.slane %v160, %v170
  %v173 = vunpack.c.l.s4 1983009808
  %v174 = vunpack.c.0.s8 %v173
  %v175 = vlaneseq
  %v176 = vshrl.u32 %v175, 7
  %v177 = vsub.s32 %v174, %v176
  %v178 = vrot.slane %v164, %v177
  %v179 = vcombine.high %v171, %v171
  %v180 = vcombine.high %v178, %v178
  %v181 = vcombine.high %v161, %v161
  %v183 = vunpack.c.l.s4 1983009808
  %v184 = vunpack.c.0.s8 %v183
  %v185 = vlaneseq
  %v186 = vshrl.u32 %v185, 7
  %v187 = vsub.s32 %v184, %v186
  %v188 = vrot.slane %v161, %v187
  %v190 = vunpack.c.l.s4 1983009808
  %v191 = vunpack.c.0.s8 %v190
  %v192 = vlaneseq
  %v193 = vshrl.u32 %v192, 7
  %v194 = vsub.s32 %v191, %v193
  %v195 = vrot.slane %v181, %v194
  %v196 = vcombine.high %v188, %v188
  %v197 = vcombine.high %v195, %v195
  %v206 = vpack.c.bf16 %v171, %v171
  %v207 = vpack.c.bf16 %v179, %v179
  %v208 = vpack.c.bf16 %v178, %v178
  %v209 = vpack.c.bf16 %v180, %v180
  %v210 = vpack.c.bf16 %v188, %v188
  %v211 = vpack.c.bf16 %v196, %v196
  %v212 = vpack.c.bf16 %v195, %v195
  %v213 = vpack.c.bf16 %v197, %v197
  %v222 = vcombine.low %v206, %v207
  %v223 = vcombine.low %v208, %v209
  %v224 = vcombine.low %v210, %v211
  %v225 = vcombine.low %v212, %v213
  %v227 = vunpack.c.l.s4 1966171168
  %v228 = vunpack.c.0.s8 %v227
  %v229 = vlaneseq
  %v230 = vshrl.u32 %v229, 7
  %v231 = vsub.s32 %v228, %v230
  %v232 = vrot.slane %v222, %v231
  %v234 = vunpack.c.l.s4 1966171168
  %v235 = vunpack.c.0.s8 %v234
  %v236 = vlaneseq
  %v237 = vshrl.u32 %v236, 7
  %v238 = vsub.s32 %v235, %v237
  %v239 = vrot.slane %v223, %v238
  %v241 = vunpack.c.l.s4 1966171168
  %v242 = vunpack.c.0.s8 %v241
  %v243 = vlaneseq
  %v244 = vshrl.u32 %v243, 7
  %v245 = vsub.s32 %v242, %v244
  %v246 = vrot.slane %v224, %v245
  %v248 = vunpack.c.l.s4 1966171168
  %v249 = vunpack.c.0.s8 %v248
  %v250 = vlaneseq
  %v251 = vshrl.u32 %v250, 7
  %v252 = vsub.s32 %v249, %v251
  %v253 = vrot.slane %v225, %v252
  %v254 = vcombine.low %v232, %v239
  %v255 = vcombine.low %v246, %v253
  %v257 = vunpack.c.l.s4 1966171168
  %v258 = vunpack.c.0.s8 %v257
  %v259 = vlaneseq
  %v260 = vshrl.u32 %v259, 7
  %v261 = vsub.s32 %v258, %v260
  %v262 = vrot.slane %v254, %v261
  %v264 = vunpack.c.l.s4 1966171168
  %v265 = vunpack.c.0.s8 %v264
  %v266 = vlaneseq
  %v267 = vshrl.u32 %v266, 7
  %v268 = vsub.s32 %v265, %v267
  %v269 = vrot.slane %v255, %v268
  %v270 = vcombine.low %v262, %v269
  %272 = vst [vmem:[%s3] sm:$0xff] %v270
  // Predicated region
  $region14: #{generator_forward.10} parent=0 // pred_check
    _
  $region15: #{generator_forward.10} parent=0 // pred_check_branch
    %274 = sbr.rel (0) target = $region17
  $region16: #{generator_forward.10} parent=0 // pred_region
    _
  $region17: #{generator_forward.10} parent=0 // pred_fallthru
    _
  // Predicated region
  $region18: #{generator_forward.10} parent=0 // pred_check
    _
  $region19: #{generator_forward.10} parent=0 // pred_check_branch
    %276 = sbr.rel (0) target = $region21
  $region20: #{generator_forward.10} parent=0 // pred_region
    _
  $region21: #{generator_forward.10} parent=0 // pred_fallthru
    _

// kernel: tile.59
$region0: #{tile.59}
  %s0 = inlined_call_operand.vmem [shape: f32[4,32], index: 0, kind: input, shape index: {}]
  %s1 = inlined_call_operand.vmem [shape: f32[1,128], index: 1, kind: output, shape index: {}]
  $region1: #{tile.59} parent=0
    #allocation0 [shape = 'u8[4096]{0}', space=vmem, size = 0x1000, scoped, tag = 'scoped mem for output reshape']
    #allocation1 [shape = 'u8[4096]{0}', space=vmem, size = 0x1000, scoped, tag = 'scoped mem for input reshape']
    %s3 = sshll.u32 1, 4
    %s4 = ssub.s32 %s3, 1
    %v5 = vld [vmem:[%s0] sm:%s4]
    %6 = vst [vmem:[#allocation1] sm:%s4] %v5
    %v7 = vld [vmem:[#allocation1] sm:$0x1]
    %vm8 = vcmask 261120
    %9 = vst.msk [vmem:[#allocation0] sm:$0x1] %vm8, %v7
    %s10 = scalar_lea.vmem [#allocation1], 3
    %v11 = vld [vmem:[%s10] sm:$0x1]
    %12 = vrot.lane.b32.xlu0 %v11, 96
    %v13 = vpop.permute.xlu0 %12
    %vm14 = vcmask 1048320
    %15 = vst.msk [vmem:[#allocation0] sm:$0x1] %vm14, %v13
    %s16 = scalar_lea.vmem [#allocation1], 2
    %v17 = vld [vmem:[%s16] sm:$0x1]
    %18 = vrot.lane.b32.xlu0 %v17, 64
    %v19 = vpop.permute.xlu0 %18
    %vm20 = vcmask 785920
    %21 = vst.msk [vmem:[#allocation0] sm:$0x1] %vm20, %v19
    %s22 = scalar_lea.vmem [#allocation1], 1
    %v23 = vld [vmem:[%s22] sm:$0x1]
    %24 = vrot.lane.b32.xlu0 %v23, 32
    %v25 = vpop.permute.xlu0 %24
    %vm26 = vcmask 523520
    %27 = vst.msk [vmem:[#allocation0] sm:$0x1] %vm26, %v25
    %s29 = sshll.u32 1, 1
    %s30 = ssub.s32 %s29, 1
    %v32 = vld [vmem:[#allocation0] sm:%s30]
    %s33 = sshll.u32 1, 1
    %s34 = ssub.s32 %s33, 1
    %35 = vst [vmem:[%s1] sm:%s34] %v32

// kernel: generator_forward.11
$region0: #{generator_forward.11}
  #allocation0 [shape = 'u32[]', space=smem, size = 0x4, offset = 0x4, fixed_abs, tag = 'smem constant byte address 0x4 - core index']
  #allocation1 [shape = 'u32[144,128]{1,0:T(1,128)}', space=vmem, size = 0x12000, scoped, tag = 'internal scratch']
  %s0 = inlined_call_operand.vmem [shape: bf16[32,576], index: 0, kind: input, shape index: {}]
  %s1 = inlined_call_operand.hbm [shape: bf16[576,128], index: 1, kind: input, shape index: {}]
  %s2 = inlined_call_operand.vmem [shape: f32[32,128], index: 2, kind: output, shape index: {0}]
  %s3 = inlined_call_operand.vmem [shape: f32[1,2,128], index: 3, kind: output, shape index: {1}]
  %4 = xla_tuple %s2, %s3
  %s5 = sld [smem:[#allocation0]]
  $region30: #{generator_forward.11} parent=0
    _
  %s7 = ssub.s32 1, %s5
  %s8 = scalar_select 0, %s7, %s5
  $region1: #{generator_forward.11} parent=0
    #allocation2 [shape = 'u8[147456]{0}', space=vmem, size = 0x24000, scoped, tag = 'input window, operand 1, single buffered']
    #allocation3 [shape = 's32[1]{0}', space=sflag, size = 0x4, scoped, tag = 'scoped memory for generator_forward.11']
    %9 = vsyncpa [#allocation3], 0
    // Predicated region
    $region2: #{generator_forward.11} parent=1 // pred_check
      _
    $region3: #{generator_forward.11} parent=1 // pred_check_branch
      %11 = sbr.rel (0) target = $region5
    $region4: #{generator_forward.11} parent=1 // pred_region
      _
    $region5: #{generator_forward.11} parent=1 // pred_fallthru
      _
    // Predicated region
    $region6: #{generator_forward.11} parent=1 // pred_check
      _
    $region7: #{generator_forward.11} parent=1 // pred_check_branch
      %13 = sbr.rel (0) target = $region9
    $region8: #{generator_forward.11} parent=1 // pred_region
      %s15 = ssub.s32 4608, 4608
      %16 = vsyncadd [#allocation3], %s15
      %s17 = sshll.u32 [#allocation2], 4
      %s18 = int_to_ptr.vmem [resolvable:$true] %s17
      %23 = dma.hbm_to_vmem [thread:$0]  %s1, 4608, %s18, [#allocation3], 64, 64, 4
    $region9: #{generator_forward.11} parent=1 // pred_fallthru
      _
    // Predicated region
    $region10: #{generator_forward.11} parent=1 // pred_check
      _
    $region11: #{generator_forward.11} parent=1 // pred_check_branch
      %25 = sbr.rel (0) target = $region13
    $region12: #{generator_forward.11} parent=1 // pred_region
      %26 = dma.done [#allocation3], 4608
    $region13: #{generator_forward.11} parent=1 // pred_fallthru
      _
    %v28 = vld [vmem:[%s0] sm:$0xff]
    %v29 = vld [vmem:[%s0 + $0x8] sm:$0xff]
    %v30 = vld [vmem:[%s0 + $0x10] sm:$0xf]
    %v31 = vld [vmem:[%s0 + $0x14] sm:$0xff]
    %v32 = vld [vmem:[%s0 + $0x1c] sm:$0xff]
    %v33 = vld [vmem:[%s0 + $0x24] sm:$0xf]
    %v34 = vld [vmem:[%s0 + $0x28] sm:$0xff]
    %v35 = vld [vmem:[%s0 + $0x30] sm:$0xff]
    %v36 = vld [vmem:[%s0 + $0x38] sm:$0xf]
    %v37 = vld [vmem:[%s0 + $0x3c] sm:$0xff]
    %v38 = vld [vmem:[%s0 + $0x44] sm:$0xff]
    %v39 = vld [vmem:[%s0 + $0x4c] sm:$0xf]
    %v40 = vld [vmem:[#allocation2] sm:$0xf]
    %v41 = vld [vmem:[#allocation2 + $0x4] sm:$0xf]
    %v42 = vld [vmem:[#allocation2 + $0x8] sm:$0xf]
    %v43 = vld [vmem:[#allocation2 + $0xc] sm:$0xf]
    %v44 = vld [vmem:[#allocation2 + $0x10] sm:$0xf]
    %v45 = vld [vmem:[#allocation2 + $0x14] sm:$0xf]
    %v46 = vld [vmem:[#allocation2 + $0x18] sm:$0xf]
    %v47 = vld [vmem:[#allocation2 + $0x1c] sm:$0xf]
    %v48 = vld [vmem:[#allocation2 + $0x20] sm:$0xf]
    %v49 = vld [vmem:[#allocation2 + $0x24] sm:$0xf]
    %v50 = vld [vmem:[#allocation2 + $0x28] sm:$0xf]
    %v51 = vld [vmem:[#allocation2 + $0x2c] sm:$0xf]
    %v52 = vld [vmem:[#allocation2 + $0x30] sm:$0xf]
    %v53 = vld [vmem:[#allocation2 + $0x34] sm:$0xf]
    %v54 = vld [vmem:[#allocation2 + $0x38] sm:$0xf]
    %v55 = vld [vmem:[#allocation2 + $0x3c] sm:$0xf]
    %v56 = vld [vmem:[#allocation2 + $0x40] sm:$0xf]
    %v57 = vld [vmem:[#allocation2 + $0x44] sm:$0xf]
    %v58 = vld [vmem:[#allocation2 + $0x48] sm:$0xf]
    %v59 = vld [vmem:[#allocation2 + $0x4c] sm:$0xf]
    %v60 = vld [vmem:[#allocation2 + $0x50] sm:$0xf]
    %v61 = vld [vmem:[#allocation2 + $0x54] sm:$0xf]
    %v62 = vld [vmem:[#allocation2 + $0x58] sm:$0xf]
    %v63 = vld [vmem:[#allocation2 + $0x5c] sm:$0xf]
    %v64 = vld [vmem:[#allocation2 + $0x60] sm:$0xf]
    %v65 = vld [vmem:[#allocation2 + $0x64] sm:$0xf]
    %v66 = vld [vmem:[#allocation2 + $0x68] sm:$0xf]
    %v67 = vld [vmem:[#allocation2 + $0x6c] sm:$0xf]
    %v68 = vld [vmem:[#allocation2 + $0x70] sm:$0xf]
    %v69 = vld [vmem:[#allocation2 + $0x74] sm:$0xf]
    %v70 = vld [vmem:[#allocation2 + $0x78] sm:$0xf]
    %v71 = vld [vmem:[#allocation2 + $0x7c] sm:$0xf]
    %v72 = vld [vmem:[#allocation2 + $0x80] sm:$0xf]
    %v73 = vld [vmem:[#allocation2 + $0x84] sm:$0xf]
    %v74 = vld [vmem:[#allocation2 + $0x88] sm:$0xf]
    %v75 = vld [vmem:[#allocation2 + $0x8c] sm:$0xf]
    %v76 = vld [vmem:[#allocation2 + $0x90] sm:$0xf]
    %v77 = vld [vmem:[#allocation2 + $0x94] sm:$0xf]
    %v78 = vld [vmem:[#allocation2 + $0x98] sm:$0xf]
    %v79 = vld [vmem:[#allocation2 + $0x9c] sm:$0xf]
    %v80 = vld [vmem:[#allocation2 + $0xa0] sm:$0xf]
    %v81 = vld [vmem:[#allocation2 + $0xa4] sm:$0xf]
    %v82 = vld [vmem:[#allocation2 + $0xa8] sm:$0xf]
    %v83 = vld [vmem:[#allocation2 + $0xac] sm:$0xf]
    %v84 = vld [vmem:[#allocation2 + $0xb0] sm:$0xf]
    %v85 = vld [vmem:[#allocation2 + $0xb4] sm:$0xf]
    %v86 = vld [vmem:[#allocation2 + $0xb8] sm:$0xf]
    %v87 = vld [vmem:[#allocation2 + $0xbc] sm:$0xf]
    %v88 = vld [vmem:[#allocation2 + $0xc0] sm:$0xf]
    %v89 = vld [vmem:[#allocation2 + $0xc4] sm:$0xf]
    %v90 = vld [vmem:[#allocation2 + $0xc8] sm:$0xf]
    %v91 = vld [vmem:[#allocation2 + $0xcc] sm:$0xf]
    %v92 = vld [vmem:[#allocation2 + $0xd0] sm:$0xf]
    %v93 = vld [vmem:[#allocation2 + $0xd4] sm:$0xf]
    %v94 = vld [vmem:[#allocation2 + $0xd8] sm:$0xf]
    %v95 = vld [vmem:[#allocation2 + $0xdc] sm:$0xf]
    %v96 = vld [vmem:[#allocation2 + $0xe0] sm:$0xf]
    %v97 = vld [vmem:[#allocation2 + $0xe4] sm:$0xf]
    %v98 = vld [vmem:[#allocation2 + $0xe8] sm:$0xf]
    %v99 = vld [vmem:[#allocation2 + $0xec] sm:$0xf]
    %v100 = vld [vmem:[#allocation2 + $0xf0] sm:$0xf]
    %v101 = vld [vmem:[#allocation2 + $0xf4] sm:$0xf]
    %v102 = vld [vmem:[#allocation2 + $0xf8] sm:$0xf]
    %v103 = vld [vmem:[#allocation2 + $0xfc] sm:$0xf]
    %v104 = vld [vmem:[#allocation2 + $0x100] sm:$0xf]
    %v105 = vld [vmem:[#allocation2 + $0x104] sm:$0xf]
    %v106 = vld [vmem:[#allocation2 + $0x108] sm:$0xf]
    %v107 = vld [vmem:[#allocation2 + $0x10c] sm:$0xf]
    %v108 = vld [vmem:[#allocation2 + $0x110] sm:$0xf]
    %v109 = vld [vmem:[#allocation2 + $0x114] sm:$0xf]
    %v110 = vld [vmem:[#allocation2 + $0x118] sm:$0xf]
    %v111 = vld [vmem:[#allocation2 + $0x11c] sm:$0xf]
    %v124 = vunpack.c.l.b16 %v28
    %v125 = vunpack.c.h.b16 %v28
    %v126 = vunpack.c.l.b16 %v29
    %v127 = vunpack.c.h.b16 %v29
    %v128 = vunpack.c.l.b16 %v30
    %v129 = vunpack.c.l.b16 %v31
    %v130 = vunpack.c.h.b16 %v31
    %v131 = vunpack.c.l.b16 %v32
    %v132 = vunpack.c.h.b16 %v32
    %v133 = vunpack.c.l.b16 %v33
    %v134 = vunpack.c.l.b16 %v34
    %v135 = vunpack.c.h.b16 %v34
    %v136 = vunpack.c.l.b16 %v35
    %v137 = vunpack.c.h.b16 %v35
    %v138 = vunpack.c.l.b16 %v36
    %v139 = vunpack.c.l.b16 %v37
    %v140 = vunpack.c.h.b16 %v37
    %v141 = vunpack.c.l.b16 %v38
    %v142 = vunpack.c.h.b16 %v38
    %v143 = vunpack.c.l.b16 %v39
    %v144 = vpack.c.b16 %v129, %v124
    %v145 = vpack.c.b16 %v130, %v125
    %v146 = vpack.c.b16 %v131, %v126
    %v147 = vpack.c.b16 %v132, %v127
    %v148 = vpack.c.b16 %v133, %v128
    %v149 = vpack.c.b16 %v139, %v134
    %v150 = vpack.c.b16 %v140, %v135
    %v151 = vpack.c.b16 %v141, %v136
    %v152 = vpack.c.b16 %v142, %v137
    %v153 = vpack.c.b16 %v143, %v138
    %v234 = vunpack.c.l.b16 %v40
    %v235 = vunpack.c.l.b16 %v41
    %v236 = vunpack.c.l.b16 %v42
    %v237 = vunpack.c.l.b16 %v43
    %v238 = vunpack.c.l.b16 %v44
    %v239 = vunpack.c.l.b16 %v45
    %v240 = vunpack.c.l.b16 %v46
    %v241 = vunpack.c.l.b16 %v47
    %v242 = vunpack.c.l.b16 %v48
    %v243 = vunpack.c.l.b16 %v49
    %v244 = vunpack.c.l.b16 %v50
    %v245 = vunpack.c.l.b16 %v51
    %v246 = vunpack.c.l.b16 %v52
    %v247 = vunpack.c.l.b16 %v53
    %v248 = vunpack.c.l.b16 %v54
    %v249 = vunpack.c.l.b16 %v55
    %v250 = vunpack.c.l.b16 %v56
    %v251 = vunpack.c.l.b16 %v57
    %v252 = vunpack.c.l.b16 %v58
    %v253 = vunpack.c.l.b16 %v59
    %v254 = vunpack.c.l.b16 %v60
    %v255 = vunpack.c.l.b16 %v61
    %v256 = vunpack.c.l.b16 %v62
    %v257 = vunpack.c.l.b16 %v63
    %v258 = vunpack.c.l.b16 %v64
    %v259 = vunpack.c.l.b16 %v65
    %v260 = vunpack.c.l.b16 %v66
    %v261 = vunpack.c.l.b16 %v67
    %v262 = vunpack.c.l.b16 %v68
    %v263 = vunpack.c.l.b16 %v69
    %v264 = vunpack.c.l.b16 %v70
    %v265 = vunpack.c.l.b16 %v71
    %v266 = vunpack.c.l.b16 %v72
    %v267 = vunpack.c.l.b16 %v73
    %v268 = vunpack.c.l.b16 %v74
    %v269 = vunpack.c.l.b16 %v75
    %v270 = vunpack.c.l.b16 %v76
    %v271 = vunpack.c.l.b16 %v77
    %v272 = vunpack.c.l.b16 %v78
    %v273 = vunpack.c.l.b16 %v79
    %v274 = vunpack.c.l.b16 %v80
    %v275 = vunpack.c.l.b16 %v81
    %v276 = vunpack.c.l.b16 %v82
    %v277 = vunpack.c.l.b16 %v83
    %v278 = vunpack.c.l.b16 %v84
    %v279 = vunpack.c.l.b16 %v85
    %v280 = vunpack.c.l.b16 %v86
    %v281 = vunpack.c.l.b16 %v87
    %v282 = vunpack.c.l.b16 %v88
    %v283 = vunpack.c.l.b16 %v89
    %v284 = vunpack.c.l.b16 %v90
    %v285 = vunpack.c.l.b16 %v91
    %v286 = vunpack.c.l.b16 %v92
    %v287 = vunpack.c.l.b16 %v93
    %v288 = vunpack.c.l.b16 %v94
    %v289 = vunpack.c.l.b16 %v95
    %v290 = vunpack.c.l.b16 %v96
    %v291 = vunpack.c.l.b16 %v97
    %v292 = vunpack.c.l.b16 %v98
    %v293 = vunpack.c.l.b16 %v99
    %v294 = vunpack.c.l.b16 %v100
    %v295 = vunpack.c.l.b16 %v101
    %v296 = vunpack.c.l.b16 %v102
    %v297 = vunpack.c.l.b16 %v103
    %v298 = vunpack.c.l.b16 %v104
    %v299 = vunpack.c.l.b16 %v105
    %v300 = vunpack.c.l.b16 %v106
    %v301 = vunpack.c.l.b16 %v107
    %v302 = vunpack.c.l.b16 %v108
    %v303 = vunpack.c.l.b16 %v109
    %v304 = vunpack.c.l.b16 %v110
    %v305 = vunpack.c.l.b16 %v111
    %v306 = vpack.c.b16 %v235, %v234
    %v307 = vpack.c.b16 %v237, %v236
    %v308 = vpack.c.b16 %v239, %v238
    %v309 = vpack.c.b16 %v241, %v240
    %v310 = vpack.c.b16 %v243, %v242
    %v311 = vpack.c.b16 %v245, %v244
    %v312 = vpack.c.b16 %v247, %v246
    %v313 = vpack.c.b16 %v249, %v248
    %v314 = vpack.c.b16 %v251, %v250
    %v315 = vpack.c.b16 %v253, %v252
    %v316 = vpack.c.b16 %v255, %v254
    %v317 = vpack.c.b16 %v257, %v256
    %v318 = vpack.c.b16 %v259, %v258
    %v319 = vpack.c.b16 %v261, %v260
    %v320 = vpack.c.b16 %v263, %v262
    %v321 = vpack.c.b16 %v265, %v264
    %v322 = vpack.c.b16 %v267, %v266
    %v323 = vpack.c.b16 %v269, %v268
    %v324 = vpack.c.b16 %v271, %v270
    %v325 = vpack.c.b16 %v273, %v272
    %v326 = vpack.c.b16 %v275, %v274
    %v327 = vpack.c.b16 %v277, %v276
    %v328 = vpack.c.b16 %v279, %v278
    %v329 = vpack.c.b16 %v281, %v280
    %v330 = vpack.c.b16 %v283, %v282
    %v331 = vpack.c.b16 %v285, %v284
    %v332 = vpack.c.b16 %v287, %v286
    %v333 = vpack.c.b16 %v289, %v288
    %v334 = vpack.c.b16 %v291, %v290
    %v335 = vpack.c.b16 %v293, %v292
    %v336 = vpack.c.b16 %v295, %v294
    %v337 = vpack.c.b16 %v297, %v296
    %v338 = vpack.c.b16 %v299, %v298
    %v339 = vpack.c.b16 %v301, %v300
    %v340 = vpack.c.b16 %v303, %v302
    %v341 = vpack.c.b16 %v305, %v304
    %vm378 = vcmask 523264
    %v380 = vsel %vm378, %v148, 0
    %v383 = vsel %vm378, %v153, 0
    %385 = vmatprep.subr.bf16.mxu0 0
    %386 = vmatpush1.bf16.msra.mxu0 %v313
    %387 = vmatprep.subr.bf16.mxu0 0
    %388 = vmatpush1.bf16.msra.mxu0 %v312
    %389 = vmatprep.subr.bf16.mxu0 0
    %390 = vmatpush1.bf16.msra.mxu0 %v311
    %391 = vmatprep.subr.bf16.mxu0 0
    %392 = vmatpush1.bf16.msra.mxu0 %v310
    %393 = vmatprep.subr.bf16.mxu0 0
    %394 = vmatpush1.bf16.msra.mxu0 %v309
    %395 = vmatprep.subr.bf16.mxu0 0
    %396 = vmatpush1.bf16.msra.mxu0 %v308
    %397 = vmatprep.subr.bf16.mxu0 0
    %398 = vmatpush1.bf16.msra.mxu0 %v307
    %399 = vmatprep.subr.bf16.mxu0 0
    %400 = vmatpush1.bf16.msra.mxu0 %v306
    %401 = vmatprep.subr.bf16.mxu0 0
    %402 = vmatpush2.bf16.msra.mxu0 %v321
    %403 = vmatprep.subr.bf16.mxu0 0
    %404 = vmatpush2.bf16.msra.mxu0 %v320
    %405 = vmatprep.subr.bf16.mxu0 0
    %406 = vmatpush2.bf16.msra.mxu0 %v319
    %407 = vmatprep.subr.bf16.mxu0 0
    %408 = vmatpush2.bf16.msra.mxu0 %v318
    %409 = vmatprep.subr.bf16.mxu0 0
    %410 = vmatpush2.bf16.msra.mxu0 %v317
    %411 = vmatprep.subr.bf16.mxu0 0
    %412 = vmatpush2.bf16.msra.mxu0 %v316
    %413 = vmatprep.subr.bf16.mxu0 0
    %414 = vmatpush2.bf16.msra.mxu0 %v315
    %415 = vmatprep.subr.bf16.mxu0 0
    %416 = vmatpush2.bf16.msra.mxu0 %v314
    %417 = vmatprep.mubr.bf16.mxu0 %v145
    %418 = vmatmul.mubr.bf16.gmra.mxu0 %v144
    %v419 = vpop.f32.mrf.mxu0
    %v420 = vadd.f32 0.0, %v419
    %v421 = vpop.f32.mrf.mxu0
    %v422 = vpop.f32.mrf.mxu0
    %v423 = vadd.f32 0.0, %v422
    %v424 = vpop.f32.mrf.mxu0
    %425 = vmatprep.mubr.bf16.mxu0 %v150
    %426 = vmatmul.mubr.bf16.gmra.mxu0 %v149
    %v427 = vpop.f32.mrf.mxu0
    %v428 = vadd.f32 0.0, %v427
    %v429 = vpop.f32.mrf.mxu0
    %v430 = vpop.f32.mrf.mxu0
    %v431 = vadd.f32 0.0, %v430
    %v432 = vpop.f32.mrf.mxu0
    %433 = vdwg.mxu0
    %434 = vmatprep.subr.bf16.mxu0 0
    %435 = vmatpush1.bf16.msra.mxu0 %v329
    %436 = vmatprep.subr.bf16.mxu0 0
    %437 = vmatpush1.bf16.msra.mxu0 %v328
    %438 = vmatprep.subr.bf16.mxu0 0
    %439 = vmatpush1.bf16.msra.mxu0 %v327
    %440 = vmatprep.subr.bf16.mxu0 0
    %441 = vmatpush1.bf16.msra.mxu0 %v326
    %442 = vmatprep.subr.bf16.mxu0 0
    %443 = vmatpush1.bf16.msra.mxu0 %v325
    %444 = vmatprep.subr.bf16.mxu0 0
    %445 = vmatpush1.bf16.msra.mxu0 %v324
    %446 = vmatprep.subr.bf16.mxu0 0
    %447 = vmatpush1.bf16.msra.mxu0 %v323
    %448 = vmatprep.subr.bf16.mxu0 0
    %449 = vmatpush1.bf16.msra.mxu0 %v322
    %450 = vmatprep.subr.bf16.mxu0 0
    %451 = vmatpush2.bf16.msra.mxu0 %v337
    %452 = vmatprep.subr.bf16.mxu0 0
    %453 = vmatpush2.bf16.msra.mxu0 %v336
    %454 = vmatprep.subr.bf16.mxu0 0
    %455 = vmatpush2.bf16.msra.mxu0 %v335
    %456 = vmatprep.subr.bf16.mxu0 0
    %457 = vmatpush2.bf16.msra.mxu0 %v334
    %458 = vmatprep.subr.bf16.mxu0 0
    %459 = vmatpush2.bf16.msra.mxu0 %v333
    %460 = vmatprep.subr.bf16.mxu0 0
    %461 = vmatpush2.bf16.msra.mxu0 %v332
    %462 = vmatprep.subr.bf16.mxu0 0
    %463 = vmatpush2.bf16.msra.mxu0 %v331
    %464 = vmatprep.subr.bf16.mxu0 0
    %465 = vmatpush2.bf16.msra.mxu0 %v330
    %466 = vmatprep.mubr.bf16.mxu0 %v147
    %467 = vmatmul.mubr.bf16.gmra.mxu0 %v146
    %v468 = vpop.f32.mrf.mxu0
    %v469 = vadd.f32 %v420, %v468
    %v470 = vpop.f32.mrf.mxu0
    %v471 = vpop.f32.mrf.mxu0
    %v472 = vadd.f32 %v423, %v471
    %v473 = vpop.f32.mrf.mxu0
    %474 = vmatprep.mubr.bf16.mxu0 %v152
    %475 = vmatmul.mubr.bf16.gmra.mxu0 %v151
    %v476 = vpop.f32.mrf.mxu0
    %v477 = vadd.f32 %v428, %v476
    %v478 = vpop.f32.mrf.mxu0
    %v479 = vpop.f32.mrf.mxu0
    %v480 = vadd.f32 %v431, %v479
    %v481 = vpop.f32.mrf.mxu0
    %482 = vdwg.mxu0
    %483 = vmatprep.subr.bf16.mxu0 0
    %484 = vmatpush1.bf16.msra.mxu0 0
    %485 = vmatprep.subr.bf16.mxu0 0
    %486 = vmatpush1.bf16.msra.mxu0 0
    %487 = vmatprep.subr.bf16.mxu0 0
    %488 = vmatpush1.bf16.msra.mxu0 0
    %489 = vmatprep.subr.bf16.mxu0 0
    %490 = vmatpush1.bf16.msra.mxu0 0
    %491 = vmatprep.subr.bf16.mxu0 0
    %492 = vmatpush1.bf16.msra.mxu0 %v341
    %493 = vmatprep.subr.bf16.mxu0 0
    %494 = vmatpush1.bf16.msra.mxu0 %v340
    %495 = vmatprep.subr.bf16.mxu0 0
    %496 = vmatpush1.bf16.msra.mxu0 %v339
    %497 = vmatprep.subr.bf16.mxu0 0
    %498 = vmatpush1.bf16.msra.mxu0 %v338
    %499 = vmatprep.subr.bf16.mxu0 0
    %500 = vmatpush2.bf16.msra.mxu0 0
    %501 = vmatprep.subr.bf16.mxu0 0
    %502 = vmatpush2.bf16.msra.mxu0 0
    %503 = vmatprep.subr.bf16.mxu0 0
    %504 = vmatpush2.bf16.msra.mxu0 0
    %505 = vmatprep.subr.bf16.mxu0 0
    %506 = vmatpush2.bf16.msra.mxu0 0
    %507 = vmatprep.subr.bf16.mxu0 0
    %508 = vmatpush2.bf16.msra.mxu0 0
    %509 = vmatprep.subr.bf16.mxu0 0
    %510 = vmatpush2.bf16.msra.mxu0 0
    %511 = vmatprep.subr.bf16.mxu0 0
    %512 = vmatpush2.bf16.msra.mxu0 0
    %513 = vmatprep.subr.bf16.mxu0 0
    %514 = vmatpush2.bf16.msra.mxu0 0
    %515 = vmatprep.mubr.bf16.mxu0 0
    %516 = vmatmul.mubr.bf16.gmra.mxu0 %v380
    %v517 = vpop.f32.mrf.mxu0
    %v518 = vadd.f32 %v469, %v517
    %v519 = vpop.f32.mrf.mxu0
    %v520 = vpop.f32.mrf.mxu0
    %v521 = vadd.f32 %v472, %v520
    %v522 = vpop.f32.mrf.mxu0
    %523 = vmatprep.mubr.bf16.mxu0 0
    %524 = vmatmul.mubr.bf16.gmra.mxu0 %v383
    %v525 = vpop.f32.mrf.mxu0
    %v526 = vadd.f32 %v477, %v525
    %v527 = vpop.f32.mrf.mxu0
    %v528 = vpop.f32.mrf.mxu0
    %v529 = vadd.f32 %v480, %v528
    %v530 = vpop.f32.mrf.mxu0
    %531 = vdwg.mxu0
    %v532 = vadd.f32 %v518, %v521
    %v533 = vadd.f32 %v532, %v526
    %v534 = vadd.f32 %v533, %v529
    %v535 = vrot.slane %v534, 4
    %v536 = vadd.f32 %v534, %v535
    %v537 = vrot.slane %v536, 2
    %v538 = vadd.f32 %v536, %v537
    %v539 = vrot.slane %v538, 1
    %v540 = vadd.f32 %v538, %v539
    %v541 = vmul.f32 %v518, %v518
    %v542 = vmul.f32 %v521, %v521
    %v543 = vmul.f32 %v526, %v526
    %v544 = vmul.f32 %v529, %v529
    %v545 = vadd.f32 %v541, %v542
    %v546 = vadd.f32 %v545, %v543
    %v547 = vadd.f32 %v546, %v544
    %v548 = vrot.slane %v547, 4
    %v549 = vadd.f32 %v547, %v548
    %v550 = vrot.slane %v549, 2
    %v551 = vadd.f32 %v549, %v550
    %v552 = vrot.slane %v551, 1
    %v553 = vadd.f32 %v551, %v552
    %vm554 = vcmask 1040384
    %v555 = vsel %vm554, %v540, %v553
    %556 = vst [vmem:[%s3] sm:$0x3] %v555
    %557 = vst [vmem:[%s2] sm:$0xff] %v518
    %558 = vst [vmem:[%s2 + $0x8] sm:$0xff] %v521
    %559 = vst [vmem:[%s2 + $0x10] sm:$0xff] %v526
    %560 = vst [vmem:[%s2 + $0x18] sm:$0xff] %v529
    // Predicated region
    $region14: #{generator_forward.11} parent=1 // pred_check
      _
    $region15: #{generator_forward.11} parent=1 // pred_check_branch
      %562 = sbr.rel (0) target = $region17
    $region16: #{generator_forward.11} parent=1 // pred_region
      _
    $region17: #{generator_forward.11} parent=1 // pred_fallthru
      _
    // Predicated region
    $region18: #{generator_forward.11} parent=1 // pred_check
      _
    $region19: #{generator_forward.11} parent=1 // pred_check_branch
      %564 = sbr.rel (0) target = $region21
    $region20: #{generator_forward.11} parent=1 // pred_region
      _
    $region21: #{generator_forward.11} parent=1 // pred_fallthru
      _
    // Predicated region
    $region22: #{generator_forward.11} parent=1 // pred_check
      _
    $region23: #{generator_forward.11} parent=1 // pred_check_branch
      %566 = sbr.rel (0) target = $region25
    $region24: #{generator_forward.11} parent=1 // pred_region
      _
    $region25: #{generator_forward.11} parent=1 // pred_fallthru
      _
    // Predicated region
    $region26: #{generator_forward.11} parent=1 // pred_check
      _
    $region27: #{generator_forward.11} parent=1 // pred_check_branch
      %568 = sbr.rel (0) target = $region29
    $region28: #{generator_forward.11} parent=1 // pred_region
      _
    $region29: #{generator_forward.11} parent=1 // pred_fallthru
      _
    %569 = vsyncpa [#allocation3], 1

// kernel: generator_forward.12
$region0: #{generator_forward.12}
  #allocation0 [shape = 'u32[]', space=smem, size = 0x4, offset = 0x4, fixed_abs, tag = 'smem constant byte address 0x4 - core index']
  #allocation1 [shape = 'u32[144,128]{1,0:T(1,128)}', space=vmem, size = 0x12000, scoped, tag = 'internal scratch']
  %s0 = inlined_call_operand.vmem [shape: f32[32,128], index: 0, kind: input, shape index: {}]
  %s1 = inlined_call_operand.vmem [shape: f32[1,128], index: 1, kind: input, shape index: {}]
  %s2 = inlined_call_operand.vmem [shape: f32[1,128], index: 2, kind: input, shape index: {}]
  %s3 = inlined_call_operand.vmem [shape: bf16[32,128], index: 3, kind: output, shape index: {}]
  %s4 = sld [smem:[#allocation0]]
  $region22: #{generator_forward.12} parent=0
    _
  %s6 = ssub.s32 1, %s4
  %s7 = scalar_select 0, %s6, %s4
  // Predicated region
  $region2: #{generator_forward.12} parent=0 // pred_check
    _
  $region3: #{generator_forward.12} parent=0 // pred_check_branch
    %9 = sbr.rel (0) target = $region5
  $region4: #{generator_forward.12} parent=0 // pred_region
    _
  $region5: #{generator_forward.12} parent=0 // pred_fallthru
    _
  // Predicated region
  $region6: #{generator_forward.12} parent=0 // pred_check
    _
  $region7: #{generator_forward.12} parent=0 // pred_check_branch
    %11 = sbr.rel (0) target = $region9
  $region8: #{generator_forward.12} parent=0 // pred_region
    _
  $region9: #{generator_forward.12} parent=0 // pred_fallthru
    _
  // Predicated region
  $region10: #{generator_forward.12} parent=0 // pred_check
    _
  $region11: #{generator_forward.12} parent=0 // pred_check_branch
    %13 = sbr.rel (0) target = $region13
  $region12: #{generator_forward.12} parent=0 // pred_region
    _
  $region13: #{generator_forward.12} parent=0 // pred_fallthru
    _
  %v14 = vld [vmem:[%s0] sm:$0xff]
  %v15 = vld [vmem:[%s0 + $0x8] sm:$0xff]
  %v16 = vld [vmem:[%s0 + $0x10] sm:$0xff]
  %v17 = vld [vmem:[%s0 + $0x18] sm:$0xff]
  %v18 = vld [vmem:[%s1] sm:$0x1]
  %v20 = vlaneseq
  %v21 = vshrl.u32 %v20, 7
  %v22 = vsub.s32 0, %v21
  %v23 = vrot.slane %v18, %v22
  %v25 = vmul.f32 %v14, %v23
  %v26 = vmul.f32 %v15, %v23
  %v27 = vmul.f32 %v16, %v23
  %v28 = vmul.f32 %v17, %v23
  %v29 = vld [vmem:[%s2] sm:$0x1]
  %v31 = vlaneseq
  %v32 = vshrl.u32 %v31, 7
  %v33 = vsub.s32 0, %v32
  %v34 = vrot.slane %v29, %v33
  %v36 = vadd.f32 %v25, %v34
  %v37 = vadd.f32 %v26, %v34
  %v38 = vadd.f32 %v27, %v34
  %v39 = vadd.f32 %v28, %v34
  %v40 = vmax.f32 %v36, 0.0
  %v41 = vmax.f32 %v37, 0.0
  %v42 = vmax.f32 %v38, 0.0
  %v43 = vmax.f32 %v39, 0.0
  %v44 = vpack.c.bf16 %v41, %v40
  %v45 = vpack.c.bf16 %v43, %v42
  %v48 = vunpack.c.l.b16 %v44
  %v49 = vunpack.c.h.b16 %v44
  %v50 = vunpack.c.l.b16 %v45
  %v51 = vunpack.c.h.b16 %v45
  %v52 = vpack.c.b16 %v48, %v48
  %v53 = vpack.c.b16 %v49, %v49
  %v54 = vpack.c.b16 %v50, %v50
  %v55 = vpack.c.b16 %v51, %v51
  %60 = vst [vmem:[%s3] sm:$0xf] %v52
  %61 = vst [vmem:[%s3 + $0x4] sm:$0xf] %v53
  %62 = vst [vmem:[%s3 + $0x8] sm:$0xf] %v54
  %63 = vst [vmem:[%s3 + $0xc] sm:$0xf] %v55
  // Predicated region
  $region14: #{generator_forward.12} parent=0 // pred_check
    _
  $region15: #{generator_forward.12} parent=0 // pred_check_branch
    %65 = sbr.rel (0) target = $region17
  $region16: #{generator_forward.12} parent=0 // pred_region
    _
  $region17: #{generator_forward.12} parent=0 // pred_fallthru
    _
  // Predicated region
  $region18: #{generator_forward.12} parent=0 // pred_check
    _
  $region19: #{generator_forward.12} parent=0 // pred_check_branch
    %67 = sbr.rel (0) target = $region21
  $region20: #{generator_forward.12} parent=0 // pred_region
    _
  $region21: #{generator_forward.12} parent=0 // pred_fallthru
    _

// kernel: squeeze.12
$region0: #{squeeze.12}
  %s0 = inlined_call_operand.vmem [shape: f32[64], index: 0, kind: input, shape index: {}]
  %s1 = inlined_call_operand.vmem [shape: f32[4,16], index: 1, kind: output, shape index: {}]
  $region1: #{squeeze.12} parent=0
    #allocation0 [shape = 'u8[4096]{0}', space=vmem, size = 0x1000, scoped, tag = 'scoped mem for output reshape']
    #allocation1 [shape = 'u8[4096]{0}', space=vmem, size = 0x1000, scoped, tag = 'scoped mem for input reshape']
    %s3 = sshll.u32 1, 1
    %s4 = ssub.s32 %s3, 1
    %v5 = vld [vmem:[%s0] sm:%s4]
    %6 = vst [vmem:[#allocation1] sm:%s4] %v5
    %v7 = vld [vmem:[#allocation1] sm:$0x1]
    %vm8 = vcmask 130048
    %9 = vst.msk [vmem:[#allocation0] sm:$0x1] %vm8, %v7
    %v10 = vld [vmem:[#allocation1] sm:$0x1]
    %11 = vrot.lane.b32.xlu0 %v10, 112
    %v12 = vpop.permute.xlu0 %11
    %vm13 = vcmask 130048
    %s14 = scalar_lea.vmem [#allocation0], 1
    %15 = vst.msk [vmem:[%s14] sm:$0x1] %vm13, %v12
    %v16 = vld [vmem:[#allocation1] sm:$0x1]
    %17 = vrot.lane.b32.xlu0 %v16, 96
    %v18 = vpop.permute.xlu0 %17
    %vm19 = vcmask 130048
    %s20 = scalar_lea.vmem [#allocation0], 2
    %21 = vst.msk [vmem:[%s20] sm:$0x1] %vm19, %v18
    %v22 = vld [vmem:[#allocation1] sm:$0x1]
    %23 = vrot.lane.b32.xlu0 %v22, 80
    %v24 = vpop.permute.xlu0 %23
    %vm25 = vcmask 130048
    %s26 = scalar_lea.vmem [#allocation0], 3
    %27 = vst.msk [vmem:[%s26] sm:$0x1] %vm25, %v24
    %s29 = sshll.u32 1, 4
    %s30 = ssub.s32 %s29, 1
    %v32 = vld [vmem:[#allocation0] sm:%s30]
    %s33 = sshll.u32 1, 4
    %s34 = ssub.s32 %s33, 1
    %35 = vst [vmem:[%s1] sm:%s34] %v32

// kernel: tile.67
$region0: #{tile.67}
  #allocation0 [shape = 's32[1]{0}', space=sflag, size = 0x4, scoped, tag = 'scoped memory for tile.67']
  %s0 = inlined_call_operand.vmem [shape: f32[16], index: 0, kind: input, shape index: {}]
  %s1 = inlined_call_operand.vmem [shape: f32[4,16], index: 1, kind: output, shape index: {}]
  // Predicated region
  $region2: #{tile.67} parent=0 // pred_check
    _
  $region3: #{tile.67} parent=0 // pred_check_branch
    %3 = sbr.rel (0) target = $region5
  $region4: #{tile.67} parent=0 // pred_region
    _
  $region5: #{tile.67} parent=0 // pred_fallthru
    _
  %v4 = vld [vmem:[%s0] ss:$0 sm:$0xff]
  %5 = vst [vmem:[%s1] sm:$0xf] %v4

// kernel: tile.69
$region0: #{tile.69}
  %s0 = inlined_call_operand.vmem [shape: f32[4,16], index: 0, kind: input, shape index: {}]
  %s1 = inlined_call_operand.vmem [shape: f32[1,64], index: 1, kind: output, shape index: {}]
  $region1: #{tile.69} parent=0
    #allocation0 [shape = 'u8[4096]{0}', space=vmem, size = 0x1000, scoped, tag = 'scoped mem for output reshape']
    #allocation1 [shape = 'u8[4096]{0}', space=vmem, size = 0x1000, scoped, tag = 'scoped mem for input reshape']
    %s3 = sshll.u32 1, 4
    %s4 = ssub.s32 %s3, 1
    %v5 = vld [vmem:[%s0] sm:%s4]
    %6 = vst [vmem:[#allocation1] sm:%s4] %v5
    %v7 = vld [vmem:[#allocation1] sm:$0x1]
    %vm8 = vcmask 130048
    %9 = vst.msk [vmem:[#allocation0] sm:$0x1] %vm8, %v7
    %s10 = scalar_lea.vmem [#allocation1], 3
    %v11 = vld [vmem:[%s10] sm:$0x1]
    %12 = vrot.lane.b32.xlu0 %v11, 48
    %v13 = vpop.permute.xlu0 %12
    %vm14 = vcmask 523648
    %15 = vst.msk [vmem:[#allocation0] sm:$0x1] %vm14, %v13
    %s16 = scalar_lea.vmem [#allocation1], 2
    %v17 = vld [vmem:[%s16] sm:$0x1]
    %18 = vrot.lane.b32.xlu0 %v17, 32
    %v19 = vpop.permute.xlu0 %18
    %vm20 = vcmask 392448
    %21 = vst.msk [vmem:[#allocation0] sm:$0x1] %vm20, %v19
    %s22 = scalar_lea.vmem [#allocation1], 1
    %v23 = vld [vmem:[%s22] sm:$0x1]
    %24 = vrot.lane.b32.xlu0 %v23, 16
    %v25 = vpop.permute.xlu0 %24
    %vm26 = vcmask 261248
    %27 = vst.msk [vmem:[#allocation0] sm:$0x1] %vm26, %v25
    %s29 = sshll.u32 1, 1
    %s30 = ssub.s32 %s29, 1
    %v32 = vld [vmem:[#allocation0] sm:%s30]
    %s33 = sshll.u32 1, 1
    %s34 = ssub.s32 %s33, 1
    %35 = vst [vmem:[%s1] sm:%s34] %v32

// kernel: generator_forward.13
$region0: #{generator_forward.13}
  #allocation0 [shape = 'u32[]', space=smem, size = 0x4, offset = 0x4, fixed_abs, tag = 'smem constant byte address 0x4 - core index']
  #allocation1 [shape = 'u32[144,128]{1,0:T(1,128)}', space=vmem, size = 0x12000, scoped, tag = 'internal scratch']
  %s0 = inlined_call_operand.vmem [shape: bf16[128,288], index: 0, kind: input, shape index: {}]
  %s1 = inlined_call_operand.vmem [shape: bf16[288,64], index: 1, kind: input, shape index: {}]
  %s2 = inlined_call_operand.vmem [shape: f32[128,64], index: 2, kind: output, shape index: {0}]
  %s3 = inlined_call_operand.vmem [shape: f32[1,2,64], index: 3, kind: output, shape index: {1}]
  %4 = xla_tuple %s2, %s3
  %s5 = sld [smem:[#allocation0]]
  $region26: #{generator_forward.13} parent=0
    _
  %s7 = ssub.s32 1, %s5
  %s8 = scalar_select 0, %s7, %s5
  // Predicated region
  $region2: #{generator_forward.13} parent=0 // pred_check
    _
  $region3: #{generator_forward.13} parent=0 // pred_check_branch
    %10 = sbr.rel (0) target = $region5
  $region4: #{generator_forward.13} parent=0 // pred_region
    _
  $region5: #{generator_forward.13} parent=0 // pred_fallthru
    _
  // Predicated region
  $region6: #{generator_forward.13} parent=0 // pred_check
    _
  $region7: #{generator_forward.13} parent=0 // pred_check_branch
    %12 = sbr.rel (0) target = $region9
  $region8: #{generator_forward.13} parent=0 // pred_region
    _
  $region9: #{generator_forward.13} parent=0 // pred_fallthru
    _
  %v14 = vld [vmem:[%s0] sm:$0xff]
  %v15 = vld [vmem:[%s0 + $0x8] sm:$0xf]
  %v16 = vld [vmem:[%s0 + $0xc] sm:$0xff]
  %v17 = vld [vmem:[%s0 + $0x14] sm:$0xf]
  %v18 = vld [vmem:[%s0 + $0x18] sm:$0xff]
  %v19 = vld [vmem:[%s0 + $0x20] sm:$0xf]
  %v20 = vld [vmem:[%s0 + $0x24] sm:$0xff]
  %v21 = vld [vmem:[%s0 + $0x2c] sm:$0xf]
  %v22 = vld [vmem:[%s0 + $0x30] sm:$0xff]
  %v23 = vld [vmem:[%s0 + $0x38] sm:$0xf]
  %v24 = vld [vmem:[%s0 + $0x3c] sm:$0xff]
  %v25 = vld [vmem:[%s0 + $0x44] sm:$0xf]
  %v26 = vld [vmem:[%s0 + $0x48] sm:$0xff]
  %v27 = vld [vmem:[%s0 + $0x50] sm:$0xf]
  %v28 = vld [vmem:[%s0 + $0x54] sm:$0xff]
  %v29 = vld [vmem:[%s0 + $0x5c] sm:$0xf]
  %v30 = vld [vmem:[%s0 + $0x60] sm:$0xff]
  %v31 = vld [vmem:[%s0 + $0x68] sm:$0xf]
  %v32 = vld [vmem:[%s0 + $0x6c] sm:$0xff]
  %v33 = vld [vmem:[%s0 + $0x74] sm:$0xf]
  %v34 = vld [vmem:[%s0 + $0x78] sm:$0xff]
  %v35 = vld [vmem:[%s0 + $0x80] sm:$0xf]
  %v36 = vld [vmem:[%s0 + $0x84] sm:$0xff]
  %v37 = vld [vmem:[%s0 + $0x8c] sm:$0xf]
  %v38 = vld [vmem:[%s0 + $0x90] sm:$0xff]
  %v39 = vld [vmem:[%s0 + $0x98] sm:$0xf]
  %v40 = vld [vmem:[%s0 + $0x9c] sm:$0xff]
  %v41 = vld [vmem:[%s0 + $0xa4] sm:$0xf]
  %v42 = vld [vmem:[%s0 + $0xa8] sm:$0xff]
  %v43 = vld [vmem:[%s0 + $0xb0] sm:$0xf]
  %v44 = vld [vmem:[%s0 + $0xb4] sm:$0xff]
  %v45 = vld [vmem:[%s0 + $0xbc] sm:$0xf]
  %v46 = vld [vmem:[%s1] sm:$0xf]
  %v47 = vld [vmem:[%s1 + $0x4] sm:$0xf]
  %v48 = vld [vmem:[%s1 + $0x8] sm:$0xf]
  %v49 = vld [vmem:[%s1 + $0xc] sm:$0xf]
  %v50 = vld [vmem:[%s1 + $0x10] sm:$0xf]
  %v51 = vld [vmem:[%s1 + $0x14] sm:$0xf]
  %v52 = vld [vmem:[%s1 + $0x18] sm:$0xf]
  %v53 = vld [vmem:[%s1 + $0x1c] sm:$0xf]
  %v54 = vld [vmem:[%s1 + $0x20] sm:$0xf]
  %v55 = vld [vmem:[%s1 + $0x24] sm:$0xf]
  %v56 = vld [vmem:[%s1 + $0x28] sm:$0xf]
  %v57 = vld [vmem:[%s1 + $0x2c] sm:$0xf]
  %v58 = vld [vmem:[%s1 + $0x30] sm:$0xf]
  %v59 = vld [vmem:[%s1 + $0x34] sm:$0xf]
  %v60 = vld [vmem:[%s1 + $0x38] sm:$0xf]
  %v61 = vld [vmem:[%s1 + $0x3c] sm:$0xf]
  %v62 = vld [vmem:[%s1 + $0x40] sm:$0xf]
  %v63 = vld [vmem:[%s1 + $0x44] sm:$0xf]
  %v64 = vld [vmem:[%s1 + $0x48] sm:$0xf]
  %v65 = vld [vmem:[%s1 + $0x4c] sm:$0xf]
  %v66 = vld [vmem:[%s1 + $0x50] sm:$0xf]
  %v67 = vld [vmem:[%s1 + $0x54] sm:$0xf]
  %v68 = vld [vmem:[%s1 + $0x58] sm:$0xf]
  %v69 = vld [vmem:[%s1 + $0x5c] sm:$0xf]
  %v70 = vld [vmem:[%s1 + $0x60] sm:$0xf]
  %v71 = vld [vmem:[%s1 + $0x64] sm:$0xf]
  %v72 = vld [vmem:[%s1 + $0x68] sm:$0xf]
  %v73 = vld [vmem:[%s1 + $0x6c] sm:$0xf]
  %v74 = vld [vmem:[%s1 + $0x70] sm:$0xf]
  %v75 = vld [vmem:[%s1 + $0x74] sm:$0xf]
  %v76 = vld [vmem:[%s1 + $0x78] sm:$0xf]
  %v77 = vld [vmem:[%s1 + $0x7c] sm:$0xf]
  %v78 = vld [vmem:[%s1 + $0x80] sm:$0xf]
  %v79 = vld [vmem:[%s1 + $0x84] sm:$0xf]
  %v80 = vld [vmem:[%s1 + $0x88] sm:$0xf]
  %v81 = vld [vmem:[%s1 + $0x8c] sm:$0xf]
  %v114 = vunpack.c.l.b16 %v14
  %v115 = vunpack.c.h.b16 %v14
  %v116 = vunpack.c.l.b16 %v15
  %v117 = vunpack.c.l.b16 %v16
  %v118 = vunpack.c.h.b16 %v16
  %v119 = vunpack.c.l.b16 %v17
  %v120 = vunpack.c.l.b16 %v18
  %v121 = vunpack.c.h.b16 %v18
  %v122 = vunpack.c.l.b16 %v19
  %v123 = vunpack.c.l.b16 %v20
  %v124 = vunpack.c.h.b16 %v20
  %v125 = vunpack.c.l.b16 %v21
  %v126 = vunpack.c.l.b16 %v22
  %v127 = vunpack.c.h.b16 %v22
  %v128 = vunpack.c.l.b16 %v23
  %v129 = vunpack.c.l.b16 %v24
  %v130 = vunpack.c.h.b16 %v24
  %v131 = vunpack.c.l.b16 %v25
  %v132 = vunpack.c.l.b16 %v26
  %v133 = vunpack.c.h.b16 %v26
  %v134 = vunpack.c.l.b16 %v27
  %v135 = vunpack.c.l.b16 %v28
  %v136 = vunpack.c.h.b16 %v28
  %v137 = vunpack.c.l.b16 %v29
  %v138 = vunpack.c.l.b16 %v30
  %v139 = vunpack.c.h.b16 %v30
  %v140 = vunpack.c.l.b16 %v31
  %v141 = vunpack.c.l.b16 %v32
  %v142 = vunpack.c.h.b16 %v32
  %v143 = vunpack.c.l.b16 %v33
  %v144 = vunpack.c.l.b16 %v34
  %v145 = vunpack.c.h.b16 %v34
  %v146 = vunpack.c.l.b16 %v35
  %v147 = vunpack.c.l.b16 %v36
  %v148 = vunpack.c.h.b16 %v36
  %v149 = vunpack.c.l.b16 %v37
  %v150 = vunpack.c.l.b16 %v38
  %v151 = vunpack.c.h.b16 %v38
  %v152 = vunpack.c.l.b16 %v39
  %v153 = vunpack.c.l.b16 %v40
  %v154 = vunpack.c.h.b16 %v40
  %v155 = vunpack.c.l.b16 %v41
  %v156 = vunpack.c.l.b16 %v42
  %v157 = vunpack.c.h.b16 %v42
  %v158 = vunpack.c.l.b16 %v43
  %v159 = vunpack.c.l.b16 %v44
  %v160 = vunpack.c.h.b16 %v44
  %v161 = vunpack.c.l.b16 %v45
  %v162 = vpack.c.b16 %v117, %v114
  %v163 = vpack.c.b16 %v118, %v115
  %v164 = vpack.c.b16 %v119, %v116
  %v165 = vpack.c.b16 %v123, %v120
  %v166 = vpack.c.b16 %v124, %v121
  %v167 = vpack.c.b16 %v125, %v122
  %v168 = vpack.c.b16 %v129, %v126
  %v169 = vpack.c.b16 %v130, %v127
  %v170 = vpack.c.b16 %v131, %v128
  %v171 = vpack.c.b16 %v135, %v132
  %v172 = vpack.c.b16 %v136, %v133
  %v173 = vpack.c.b16 %v137, %v134
  %v174 = vpack.c.b16 %v141, %v138
  %v175 = vpack.c.b16 %v142, %v139
  %v176 = vpack.c.b16 %v143, %v140
  %v177 = vpack.c.b16 %v147, %v144
  %v178 = vpack.c.b16 %v148, %v145
  %v179 = vpack.c.b16 %v149, %v146
  %v180 = vpack.c.b16 %v153, %v150
  %v181 = vpack.c.b16 %v154, %v151
  %v182 = vpack.c.b16 %v155, %v152
  %v183 = vpack.c.b16 %v159, %v156
  %v184 = vpack.c.b16 %v160, %v157
  %v185 = vpack.c.b16 %v161, %v158
  %v238 = vunpack.c.l.b16 %v46
  %v239 = vunpack.c.l.b16 %v47
  %v240 = vunpack.c.l.b16 %v48
  %v241 = vunpack.c.l.b16 %v49
  %v242 = vunpack.c.l.b16 %v50
  %v243 = vunpack.c.l.b16 %v51
  %v244 = vunpack.c.l.b16 %v52
  %v245 = vunpack.c.l.b16 %v53
  %v246 = vunpack.c.l.b16 %v54
  %v247 = vunpack.c.l.b16 %v55
  %v248 = vunpack.c.l.b16 %v56
  %v249 = vunpack.c.l.b16 %v57
  %v250 = vunpack.c.l.b16 %v58
  %v251 = vunpack.c.l.b16 %v59
  %v252 = vunpack.c.l.b16 %v60
  %v253 = vunpack.c.l.b16 %v61
  %v254 = vunpack.c.l.b16 %v62
  %v255 = vunpack.c.l.b16 %v63
  %v256 = vunpack.c.l.b16 %v64
  %v257 = vunpack.c.l.b16 %v65
  %v258 = vunpack.c.l.b16 %v66
  %v259 = vunpack.c.l.b16 %v67
  %v260 = vunpack.c.l.b16 %v68
  %v261 = vunpack.c.l.b16 %v69
  %v262 = vunpack.c.l.b16 %v70
  %v263 = vunpack.c.l.b16 %v71
  %v264 = vunpack.c.l.b16 %v72
  %v265 = vunpack.c.l.b16 %v73
  %v266 = vunpack.c.l.b16 %v74
  %v267 = vunpack.c.l.b16 %v75
  %v268 = vunpack.c.l.b16 %v76
  %v269 = vunpack.c.l.b16 %v77
  %v270 = vunpack.c.l.b16 %v78
  %v271 = vunpack.c.l.b16 %v79
  %v272 = vunpack.c.l.b16 %v80
  %v273 = vunpack.c.l.b16 %v81
  %v274 = vpack.c.b16 %v239, %v238
  %v275 = vpack.c.b16 %v241, %v240
  %v276 = vpack.c.b16 %v243, %v242
  %v277 = vpack.c.b16 %v245, %v244
  %v278 = vpack.c.b16 %v247, %v246
  %v279 = vpack.c.b16 %v249, %v248
  %v280 = vpack.c.b16 %v251, %v250
  %v281 = vpack.c.b16 %v253, %v252
  %v282 = vpack.c.b16 %v255, %v254
  %v283 = vpack.c.b16 %v257, %v256
  %v284 = vpack.c.b16 %v259, %v258
  %v285 = vpack.c.b16 %v261, %v260
  %v286 = vpack.c.b16 %v263, %v262
  %v287 = vpack.c.b16 %v265, %v264
  %v288 = vpack.c.b16 %v267, %v266
  %v289 = vpack.c.b16 %v269, %v268
  %v290 = vpack.c.b16 %v271, %v270
  %v291 = vpack.c.b16 %v273, %v272
  %vm310 = vcmask 261120
  %v312 = vsel %vm310, %v164, 0
  %v315 = vsel %vm310, %v167, 0
  %v318 = vsel %vm310, %v170, 0
  %v321 = vsel %vm310, %v173, 0
  %v324 = vsel %vm310, %v176, 0
  %v327 = vsel %vm310, %v179, 0
  %v330 = vsel %vm310, %v182, 0
  %v333 = vsel %vm310, %v185, 0
  %335 = vmatprep.subr.bf16.mxu0 0
  %336 = vmatpush1.bf16.msra.mxu0 %v281
  %337 = vmatprep.subr.bf16.mxu0 0
  %338 = vmatpush1.bf16.msra.mxu0 %v280
  %339 = vmatprep.subr.bf16.mxu0 0
  %340 = vmatpush1.bf16.msra.mxu0 %v279
  %341 = vmatprep.subr.bf16.mxu0 0
  %342 = vmatpush1.bf16.msra.mxu0 %v278
  %343 = vmatprep.subr.bf16.mxu0 0
  %344 = vmatpush1.bf16.msra.mxu0 %v277
  %345 = vmatprep.subr.bf16.mxu0 0
  %346 = vmatpush1.bf16.msra.mxu0 %v276
  %347 = vmatprep.subr.bf16.mxu0 0
  %348 = vmatpush1.bf16.msra.mxu0 %v275
  %349 = vmatprep.subr.bf16.mxu0 0
  %350 = vmatpush1.bf16.msra.mxu0 %v274
  %351 = vmatprep.subr.bf16.mxu0 0
  %352 = vmatpush2.bf16.msra.mxu0 %v289
  %353 = vmatprep.subr.bf16.mxu0 0
  %354 = vmatpush2.bf16.msra.mxu0 %v288
  %355 = vmatprep.subr.bf16.mxu0 0
  %356 = vmatpush2.bf16.msra.mxu0 %v287
  %357 = vmatprep.subr.bf16.mxu0 0
  %358 = vmatpush2.bf16.msra.mxu0 %v286
  %359 = vmatprep.subr.bf16.mxu0 0
  %360 = vmatpush2.bf16.msra.mxu0 %v285
  %361 = vmatprep.subr.bf16.mxu0 0
  %362 = vmatpush2.bf16.msra.mxu0 %v284
  %363 = vmatprep.subr.bf16.mxu0 0
  %364 = vmatpush2.bf16.msra.mxu0 %v283
  %365 = vmatprep.subr.bf16.mxu0 0
  %366 = vmatpush2.bf16.msra.mxu0 %v282
  %367 = vmatprep.mubr.bf16.mxu0 %v163
  %368 = vmatmul.mubr.bf16.gmra.mxu0 %v162
  %v369 = vpop.f32.mrf.mxu0
  %v370 = vadd.f32 0.0, %v369
  %v371 = vpop.f32.mrf.mxu0
  %v372 = vpop.f32.mrf.mxu0
  %v373 = vadd.f32 0.0, %v372
  %v374 = vpop.f32.mrf.mxu0
  %375 = vmatprep.mubr.bf16.mxu0 %v166
  %376 = vmatmul.mubr.bf16.gmra.mxu0 %v165
  %v377 = vpop.f32.mrf.mxu0
  %v378 = vadd.f32 0.0, %v377
  %v379 = vpop.f32.mrf.mxu0
  %v380 = vpop.f32.mrf.mxu0
  %v381 = vadd.f32 0.0, %v380
  %v382 = vpop.f32.mrf.mxu0
  %383 = vmatprep.mubr.bf16.mxu0 %v169
  %384 = vmatmul.mubr.bf16.gmra.mxu0 %v168
  %v385 = vpop.f32.mrf.mxu0
  %v386 = vadd.f32 0.0, %v385
  %v387 = vpop.f32.mrf.mxu0
  %v388 = vpop.f32.mrf.mxu0
  %v389 = vadd.f32 0.0, %v388
  %v390 = vpop.f32.mrf.mxu0
  %391 = vmatprep.mubr.bf16.mxu0 %v172
  %392 = vmatmul.mubr.bf16.gmra.mxu0 %v171
  %v393 = vpop.f32.mrf.mxu0
  %v394 = vadd.f32 0.0, %v393
  %v395 = vpop.f32.mrf.mxu0
  %v396 = vpop.f32.mrf.mxu0
  %v397 = vadd.f32 0.0, %v396
  %v398 = vpop.f32.mrf.mxu0
  %399 = vmatprep.mubr.bf16.mxu0 %v175
  %400 = vmatmul.mubr.bf16.gmra.mxu0 %v174
  %v401 = vpop.f32.mrf.mxu0
  %v402 = vadd.f32 0.0, %v401
  %v403 = vpop.f32.mrf.mxu0
  %v404 = vpop.f32.mrf.mxu0
  %v405 = vadd.f32 0.0, %v404
  %v406 = vpop.f32.mrf.mxu0
  %407 = vmatprep.mubr.bf16.mxu0 %v178
  %408 = vmatmul.mubr.bf16.gmra.mxu0 %v177
  %v409 = vpop.f32.mrf.mxu0
  %v410 = vadd.f32 0.0, %v409
  %v411 = vpop.f32.mrf.mxu0
  %v412 = vpop.f32.mrf.mxu0
  %v413 = vadd.f32 0.0, %v412
  %v414 = vpop.f32.mrf.mxu0
  %415 = vmatprep.mubr.bf16.mxu0 %v181
  %416 = vmatmul.mubr.bf16.gmra.mxu0 %v180
  %v417 = vpop.f32.mrf.mxu0
  %v418 = vadd.f32 0.0, %v417
  %v419 = vpop.f32.mrf.mxu0
  %v420 = vpop.f32.mrf.mxu0
  %v421 = vadd.f32 0.0, %v420
  %v422 = vpop.f32.mrf.mxu0
  %423 = vmatprep.mubr.bf16.mxu0 %v184
  %424 = vmatmul.mubr.bf16.gmra.mxu0 %v183
  %v425 = vpop.f32.mrf.mxu0
  %v426 = vadd.f32 0.0, %v425
  %v427 = vpop.f32.mrf.mxu0
  %v428 = vpop.f32.mrf.mxu0
  %v429 = vadd.f32 0.0, %v428
  %v430 = vpop.f32.mrf.mxu0
  %431 = vdwg.mxu0
  %432 = vmatprep.subr.bf16.mxu0 0
  %433 = vmatpush1.bf16.msra.mxu0 0
  %434 = vmatprep.subr.bf16.mxu0 0
  %435 = vmatpush1.bf16.msra.mxu0 0
  %436 = vmatprep.subr.bf16.mxu0 0
  %437 = vmatpush1.bf16.msra.mxu0 0
  %438 = vmatprep.subr.bf16.mxu0 0
  %439 = vmatpush1.bf16.msra.mxu0 0
  %440 = vmatprep.subr.bf16.mxu0 0
  %441 = vmatpush1.bf16.msra.mxu0 0
  %442 = vmatprep.subr.bf16.mxu0 0
  %443 = vmatpush1.bf16.msra.mxu0 0
  %444 = vmatprep.subr.bf16.mxu0 0
  %445 = vmatpush1.bf16.msra.mxu0 %v291
  %446 = vmatprep.subr.bf16.mxu0 0
  %447 = vmatpush1.bf16.msra.mxu0 %v290
  %448 = vmatprep.subr.bf16.mxu0 0
  %449 = vmatpush2.bf16.msra.mxu0 0
  %450 = vmatprep.subr.bf16.mxu0 0
  %451 = vmatpush2.bf16.msra.mxu0 0
  %452 = vmatprep.subr.bf16.mxu0 0
  %453 = vmatpush2.bf16.msra.mxu0 0
  %454 = vmatprep.subr.bf16.mxu0 0
  %455 = vmatpush2.bf16.msra.mxu0 0
  %456 = vmatprep.subr.bf16.mxu0 0
  %457 = vmatpush2.bf16.msra.mxu0 0
  %458 = vmatprep.subr.bf16.mxu0 0
  %459 = vmatpush2.bf16.msra.mxu0 0
  %460 = vmatprep.subr.bf16.mxu0 0
  %461 = vmatpush2.bf16.msra.mxu0 0
  %462 = vmatprep.subr.bf16.mxu0 0
  %463 = vmatpush2.bf16.msra.mxu0 0
  %464 = vmatprep.mubr.bf16.mxu0 0
  %465 = vmatmul.mubr.bf16.gmra.mxu0 %v312
  %v466 = vpop.f32.mrf.mxu0
  %v467 = vadd.f32 %v370, %v466
  %v468 = vpop.f32.mrf.mxu0
  %v469 = vpop.f32.mrf.mxu0
  %v470 = vadd.f32 %v373, %v469
  %v471 = vpop.f32.mrf.mxu0
  %472 = vmatprep.mubr.bf16.mxu0 0
  %473 = vmatmul.mubr.bf16.gmra.mxu0 %v315
  %v474 = vpop.f32.mrf.mxu0
  %v475 = vadd.f32 %v378, %v474
  %v476 = vpop.f32.mrf.mxu0
  %v477 = vpop.f32.mrf.mxu0
  %v478 = vadd.f32 %v381, %v477
  %v479 = vpop.f32.mrf.mxu0
  %480 = vmatprep.mubr.bf16.mxu0 0
  %481 = vmatmul.mubr.bf16.gmra.mxu0 %v318
  %v482 = vpop.f32.mrf.mxu0
  %v483 = vadd.f32 %v386, %v482
  %v484 = vpop.f32.mrf.mxu0
  %v485 = vpop.f32.mrf.mxu0
  %v486 = vadd.f32 %v389, %v485
  %v487 = vpop.f32.mrf.mxu0
  %488 = vmatprep.mubr.bf16.mxu0 0
  %489 = vmatmul.mubr.bf16.gmra.mxu0 %v321
  %v490 = vpop.f32.mrf.mxu0
  %v491 = vadd.f32 %v394, %v490
  %v492 = vpop.f32.mrf.mxu0
  %v493 = vpop.f32.mrf.mxu0
  %v494 = vadd.f32 %v397, %v493
  %v495 = vpop.f32.mrf.mxu0
  %496 = vmatprep.mubr.bf16.mxu0 0
  %497 = vmatmul.mubr.bf16.gmra.mxu0 %v324
  %v498 = vpop.f32.mrf.mxu0
  %v499 = vadd.f32 %v402, %v498
  %v500 = vpop.f32.mrf.mxu0
  %v501 = vpop.f32.mrf.mxu0
  %v502 = vadd.f32 %v405, %v501
  %v503 = vpop.f32.mrf.mxu0
  %504 = vmatprep.mubr.bf16.mxu0 0
  %505 = vmatmul.mubr.bf16.gmra.mxu0 %v327
  %v506 = vpop.f32.mrf.mxu0
  %v507 = vadd.f32 %v410, %v506
  %v508 = vpop.f32.mrf.mxu0
  %v509 = vpop.f32.mrf.mxu0
  %v510 = vadd.f32 %v413, %v509
  %v511 = vpop.f32.mrf.mxu0
  %512 = vmatprep.mubr.bf16.mxu0 0
  %513 = vmatmul.mubr.bf16.gmra.mxu0 %v330
  %v514 = vpop.f32.mrf.mxu0
  %v515 = vadd.f32 %v418, %v514
  %v516 = vpop.f32.mrf.mxu0
  %v517 = vpop.f32.mrf.mxu0
  %v518 = vadd.f32 %v421, %v517
  %v519 = vpop.f32.mrf.mxu0
  %520 = vmatprep.mubr.bf16.mxu0 0
  %521 = vmatmul.mubr.bf16.gmra.mxu0 %v333
  %v522 = vpop.f32.mrf.mxu0
  %v523 = vadd.f32 %v426, %v522
  %v524 = vpop.f32.mrf.mxu0
  %v525 = vpop.f32.mrf.mxu0
  %v526 = vadd.f32 %v429, %v525
  %v527 = vpop.f32.mrf.mxu0
  %528 = vdwg.mxu0
  %vm529 = vcmask 523264
  %v530 = vsel %vm529, %v467, 0.0
  %v531 = vsel %vm529, %v470, 0.0
  %v532 = vadd.f32 %v530, %v531
  %v533 = vsel %vm529, %v475, 0.0
  %v534 = vadd.f32 %v532, %v533
  %v535 = vsel %vm529, %v478, 0.0
  %v536 = vadd.f32 %v534, %v535
  %v537 = vsel %vm529, %v483, 0.0
  %v538 = vadd.f32 %v536, %v537
  %v539 = vsel %vm529, %v486, 0.0
  %v540 = vadd.f32 %v538, %v539
  %v541 = vsel %vm529, %v491, 0.0
  %v542 = vadd.f32 %v540, %v541
  %v543 = vsel %vm529, %v494, 0.0
  %v544 = vadd.f32 %v542, %v543
  %v545 = vsel %vm529, %v499, 0.0
  %v546 = vadd.f32 %v544, %v545
  %v547 = vsel %vm529, %v502, 0.0
  %v548 = vadd.f32 %v546, %v547
  %v549 = vsel %vm529, %v507, 0.0
  %v550 = vadd.f32 %v548, %v549
  %v551 = vsel %vm529, %v510, 0.0
  %v552 = vadd.f32 %v550, %v551
  %v553 = vsel %vm529, %v515, 0.0
  %v554 = vadd.f32 %v552, %v553
  %v555 = vsel %vm529, %v518, 0.0
  %v556 = vadd.f32 %v554, %v555
  %v557 = vsel %vm529, %v523, 0.0
  %v558 = vadd.f32 %v556, %v557
  %v559 = vsel %vm529, %v526, 0.0
  %v560 = vadd.f32 %v558, %v559
  %v561 = vrot.slane %v560, 4
  %v562 = vadd.f32 %v560, %v561
  %v563 = vrot.slane %v562, 2
  %v564 = vadd.f32 %v562, %v563
  %v565 = vrot.slane %v564, 1
  %v566 = vadd.f32 %v564, %v565
  %v567 = vmul.f32 %v467, %v467
  %v568 = vmul.f32 %v470, %v470
  %v569 = vmul.f32 %v475, %v475
  %v570 = vmul.f32 %v478, %v478
  %v571 = vmul.f32 %v483, %v483
  %v572 = vmul.f32 %v486, %v486
  %v573 = vmul.f32 %v491, %v491
  %v574 = vmul.f32 %v494, %v494
  %v575 = vmul.f32 %v499, %v499
  %v576 = vmul.f32 %v502, %v502
  %v577 = vmul.f32 %v507, %v507
  %v578 = vmul.f32 %v510, %v510
  %v579 = vmul.f32 %v515, %v515
  %v580 = vmul.f32 %v518, %v518
  %v581 = vmul.f32 %v523, %v523
  %v582 = vmul.f32 %v526, %v526
  %v583 = vsel %vm529, %v567, 0.0
  %v584 = vsel %vm529, %v568, 0.0
  %v585 = vadd.f32 %v583, %v584
  %v586 = vsel %vm529, %v569, 0.0
  %v587 = vadd.f32 %v585, %v586
  %v588 = vsel %vm529, %v570, 0.0
  %v589 = vadd.f32 %v587, %v588
  %v590 = vsel %vm529, %v571, 0.0
  %v591 = vadd.f32 %v589, %v590
  %v592 = vsel %vm529, %v572, 0.0
  %v593 = vadd.f32 %v591, %v592
  %v594 = vsel %vm529, %v573, 0.0
  %v595 = vadd.f32 %v593, %v594
  %v596 = vsel %vm529, %v574, 0.0
  %v597 = vadd.f32 %v595, %v596
  %v598 = vsel %vm529, %v575, 0.0
  %v599 = vadd.f32 %v597, %v598
  %v600 = vsel %vm529, %v576, 0.0
  %v601 = vadd.f32 %v599, %v600
  %v602 = vsel %vm529, %v577, 0.0
  %v603 = vadd.f32 %v601, %v602
  %v604 = vsel %vm529, %v578, 0.0
  %v605 = vadd.f32 %v603, %v604
  %v606 = vsel %vm529, %v579, 0.0
  %v607 = vadd.f32 %v605, %v606
  %v608 = vsel %vm529, %v580, 0.0
  %v609 = vadd.f32 %v607, %v608
  %v610 = vsel %vm529, %v581, 0.0
  %v611 = vadd.f32 %v609, %v610
  %v612 = vsel %vm529, %v582, 0.0
  %v613 = vadd.f32 %v611, %v612
  %v614 = vrot.slane %v613, 4
  %v615 = vadd.f32 %v613, %v614
  %v616 = vrot.slane %v615, 2
  %v617 = vadd.f32 %v615, %v616
  %v618 = vrot.slane %v617, 1
  %v619 = vadd.f32 %v617, %v618
  %vm620 = vcmask 1040384
  %v621 = vsel %vm620, %v566, %v619
  %vm622 = vcmask 517120
  %623 = vst.msk [vmem:[%s3] sm:$0x3] %vm622, %v621
  %624 = vst.msk [vmem:[%s2] sm:$0xff] %vm529, %v467
  %625 = vst.msk [vmem:[%s2 + $0x8] sm:$0xff] %vm529, %v470
  %626 = vst.msk [vmem:[%s2 + $0x10] sm:$0xff] %vm529, %v475
  %627 = vst.msk [vmem:[%s2 + $0x18] sm:$0xff] %vm529, %v478
  %628 = vst.msk [vmem:[%s2 + $0x20] sm:$0xff] %vm529, %v483
  %629 = vst.msk [vmem:[%s2 + $0x28] sm:$0xff] %vm529, %v486
  %630 = vst.msk [vmem:[%s2 + $0x30] sm:$0xff] %vm529, %v491
  %631 = vst.msk [vmem:[%s2 + $0x38] sm:$0xff] %vm529, %v494
  %632 = vst.msk [vmem:[%s2 + $0x40] sm:$0xff] %vm529, %v499
  %633 = vst.msk [vmem:[%s2 + $0x48] sm:$0xff] %vm529, %v502
  %634 = vst.msk [vmem:[%s2 + $0x50] sm:$0xff] %vm529, %v507
  %635 = vst.msk [vmem:[%s2 + $0x58] sm:$0xff] %vm529, %v510
  %636 = vst.msk [vmem:[%s2 + $0x60] sm:$0xff] %vm529, %v515
  %637 = vst.msk [vmem:[%s2 + $0x68] sm:$0xff] %vm529, %v518
  %638 = vst.msk [vmem:[%s2 + $0x70] sm:$0xff] %vm529, %v523
  %639 = vst.msk [vmem:[%s2 + $0x78] sm:$0xff] %vm529, %v526
  // Predicated region
  $region10: #{generator_forward.13} parent=0 // pred_check
    _
  $region11: #{generator_forward.13} parent=0 // pred_check_branch
    %641 = sbr.rel (0) target = $region13
  $region12: #{generator_forward.13} parent=0 // pred_region
    _
  $region13: #{generator_forward.13} parent=0 // pred_fallthru
    _
  // Predicated region
  $region14: #{generator_forward.13} parent=0 // pred_check
    _
  $region15: #{generator_forward.13} parent=0 // pred_check_branch
    %643 = sbr.rel (0) target = $region17
  $region16: #{generator_forward.13} parent=0 // pred_region
    _
  $region17: #{generator_forward.13} parent=0 // pred_fallthru
    _
  // Predicated region
  $region18: #{generator_forward.13} parent=0 // pred_check
    _
  $region19: #{generator_forward.13} parent=0 // pred_check_branch
    %645 = sbr.rel (0) target = $region21
  $region20: #{generator_forward.13} parent=0 // pred_region
    _
  $region21: #{generator_forward.13} parent=0 // pred_fallthru
    _
  // Predicated region
  $region22: #{generator_forward.13} parent=0 // pred_check
    _
  $region23: #{generator_forward.13} parent=0 // pred_check_branch
    %647 = sbr.rel (0) target = $region25
  $region24: #{generator_forward.13} parent=0 // pred_region
    _
  $region25: #{generator_forward.13} parent=0 // pred_fallthru
    _

// kernel: generator_forward.14
$region0: #{generator_forward.14}
  #allocation0 [shape = 'u32[]', space=smem, size = 0x4, offset = 0x4, fixed_abs, tag = 'smem constant byte address 0x4 - core index']
  #allocation1 [shape = 'u32[144,128]{1,0:T(1,128)}', space=vmem, size = 0x12000, scoped, tag = 'internal scratch']
  %s0 = inlined_call_operand.vmem [shape: f32[128,64], index: 0, kind: input, shape index: {}]
  %s1 = inlined_call_operand.vmem [shape: f32[1,64], index: 1, kind: input, shape index: {}]
  %s2 = inlined_call_operand.vmem [shape: f32[1,64], index: 2, kind: input, shape index: {}]
  %s3 = inlined_call_operand.vmem [shape: bf16[128,64], index: 3, kind: output, shape index: {}]
  %s4 = sld [smem:[#allocation0]]
  $region22: #{generator_forward.14} parent=0
    _
  %s6 = ssub.s32 1, %s4
  %s7 = scalar_select 0, %s6, %s4
  // Predicated region
  $region2: #{generator_forward.14} parent=0 // pred_check
    _
  $region3: #{generator_forward.14} parent=0 // pred_check_branch
    %9 = sbr.rel (0) target = $region5
  $region4: #{generator_forward.14} parent=0 // pred_region
    _
  $region5: #{generator_forward.14} parent=0 // pred_fallthru
    _
  // Predicated region
  $region6: #{generator_forward.14} parent=0 // pred_check
    _
  $region7: #{generator_forward.14} parent=0 // pred_check_branch
    %11 = sbr.rel (0) target = $region9
  $region8: #{generator_forward.14} parent=0 // pred_region
    _
  $region9: #{generator_forward.14} parent=0 // pred_fallthru
    _
  // Predicated region
  $region10: #{generator_forward.14} parent=0 // pred_check
    _
  $region11: #{generator_forward.14} parent=0 // pred_check_branch
    %13 = sbr.rel (0) target = $region13
  $region12: #{generator_forward.14} parent=0 // pred_region
    _
  $region13: #{generator_forward.14} parent=0 // pred_fallthru
    _
  %v14 = vld [vmem:[%s0] sm:$0xff]
  %v15 = vld [vmem:[%s0 + $0x8] sm:$0xff]
  %v16 = vld [vmem:[%s0 + $0x10] sm:$0xff]
  %v17 = vld [vmem:[%s0 + $0x18] sm:$0xff]
  %v18 = vld [vmem:[%s0 + $0x20] sm:$0xff]
  %v19 = vld [vmem:[%s0 + $0x28] sm:$0xff]
  %v20 = vld [vmem:[%s0 + $0x30] sm:$0xff]
  %v21 = vld [vmem:[%s0 + $0x38] sm:$0xff]
  %v22 = vld [vmem:[%s0 + $0x40] sm:$0xff]
  %v23 = vld [vmem:[%s0 + $0x48] sm:$0xff]
  %v24 = vld [vmem:[%s0 + $0x50] sm:$0xff]
  %v25 = vld [vmem:[%s0 + $0x58] sm:$0xff]
  %v26 = vld [vmem:[%s0 + $0x60] sm:$0xff]
  %v27 = vld [vmem:[%s0 + $0x68] sm:$0xff]
  %v28 = vld [vmem:[%s0 + $0x70] sm:$0xff]
  %v29 = vld [vmem:[%s0 + $0x78] sm:$0xff]
  %v30 = vld [vmem:[%s1] sm:$0x1]
  %v32 = vlaneseq
  %v33 = vshrl.u32 %v32, 7
  %v34 = vsub.s32 0, %v33
  %v35 = vrot.slane %v30, %v34
  %v37 = vmul.f32 %v14, %v35
  %v38 = vmul.f32 %v15, %v35
  %v39 = vmul.f32 %v16, %v35
  %v40 = vmul.f32 %v17, %v35
  %v41 = vmul.f32 %v18, %v35
  %v42 = vmul.f32 %v19, %v35
  %v43 = vmul.f32 %v20, %v35
  %v44 = vmul.f32 %v21, %v35
  %v45 = vmul.f32 %v22, %v35
  %v46 = vmul.f32 %v23, %v35
  %v47 = vmul.f32 %v24, %v35
  %v48 = vmul.f32 %v25, %v35
  %v49 = vmul.f32 %v26, %v35
  %v50 = vmul.f32 %v27, %v35
  %v51 = vmul.f32 %v28, %v35
  %v52 = vmul.f32 %v29, %v35
  %v53 = vld [vmem:[%s2] sm:$0x1]
  %v55 = vlaneseq
  %v56 = vshrl.u32 %v55, 7
  %v57 = vsub.s32 0, %v56
  %v58 = vrot.slane %v53, %v57
  %v60 = vadd.f32 %v37, %v58
  %v61 = vadd.f32 %v38, %v58
  %v62 = vadd.f32 %v39, %v58
  %v63 = vadd.f32 %v40, %v58
  %v64 = vadd.f32 %v41, %v58
  %v65 = vadd.f32 %v42, %v58
  %v66 = vadd.f32 %v43, %v58
  %v67 = vadd.f32 %v44, %v58
  %v68 = vadd.f32 %v45, %v58
  %v69 = vadd.f32 %v46, %v58
  %v70 = vadd.f32 %v47, %v58
  %v71 = vadd.f32 %v48, %v58
  %v72 = vadd.f32 %v49, %v58
  %v73 = vadd.f32 %v50, %v58
  %v74 = vadd.f32 %v51, %v58
  %v75 = vadd.f32 %v52, %v58
  %v76 = vmax.f32 %v60, 0.0
  %v77 = vmax.f32 %v61, 0.0
  %v78 = vmax.f32 %v62, 0.0
  %v79 = vmax.f32 %v63, 0.0
  %v80 = vmax.f32 %v64, 0.0
  %v81 = vmax.f32 %v65, 0.0
  %v82 = vmax.f32 %v66, 0.0
  %v83 = vmax.f32 %v67, 0.0
  %v84 = vmax.f32 %v68, 0.0
  %v85 = vmax.f32 %v69, 0.0
  %v86 = vmax.f32 %v70, 0.0
  %v87 = vmax.f32 %v71, 0.0
  %v88 = vmax.f32 %v72, 0.0
  %v89 = vmax.f32 %v73, 0.0
  %v90 = vmax.f32 %v74, 0.0
  %v91 = vmax.f32 %v75, 0.0
  %v92 = vpack.c.bf16 %v77, %v76
  %v93 = vpack.c.bf16 %v79, %v78
  %v94 = vpack.c.bf16 %v81, %v80
  %v95 = vpack.c.bf16 %v83, %v82
  %v96 = vpack.c.bf16 %v85, %v84
  %v97 = vpack.c.bf16 %v87, %v86
  %v98 = vpack.c.bf16 %v89, %v88
  %v99 = vpack.c.bf16 %v91, %v90
  %v108 = vunpack.c.l.b16 %v92
  %v109 = vunpack.c.h.b16 %v92
  %v110 = vunpack.c.l.b16 %v93
  %v111 = vunpack.c.h.b16 %v93
  %v112 = vunpack.c.l.b16 %v94
  %v113 = vunpack.c.h.b16 %v94
  %v114 = vunpack.c.l.b16 %v95
  %v115 = vunpack.c.h.b16 %v95
  %v116 = vunpack.c.l.b16 %v96
  %v117 = vunpack.c.h.b16 %v96
  %v118 = vunpack.c.l.b16 %v97
  %v119 = vunpack.c.h.b16 %v97
  %v120 = vunpack.c.l.b16 %v98
  %v121 = vunpack.c.h.b16 %v98
  %v122 = vunpack.c.l.b16 %v99
  %v123 = vunpack.c.h.b16 %v99
  %v124 = vpack.c.b16 %v108, %v108
  %v125 = vpack.c.b16 %v109, %v109
  %v126 = vpack.c.b16 %v110, %v110
  %v127 = vpack.c.b16 %v111, %v111
  %v128 = vpack.c.b16 %v112, %v112
  %v129 = vpack.c.b16 %v113, %v113
  %v130 = vpack.c.b16 %v114, %v114
  %v131 = vpack.c.b16 %v115, %v115
  %v132 = vpack.c.b16 %v116, %v116
  %v133 = vpack.c.b16 %v117, %v117
  %v134 = vpack.c.b16 %v118, %v118
  %v135 = vpack.c.b16 %v119, %v119
  %v136 = vpack.c.b16 %v120, %v120
  %v137 = vpack.c.b16 %v121, %v121
  %v138 = vpack.c.b16 %v122, %v122
  %v139 = vpack.c.b16 %v123, %v123
  %vm156 = vcmask 519168
  %157 = vst.msk [vmem:[%s3] sm:$0xf] %vm156, %v124
  %158 = vst.msk [vmem:[%s3 + $0x4] sm:$0xf] %vm156, %v125
  %159 = vst.msk [vmem:[%s3 + $0x8] sm:$0xf] %vm156, %v126
  %160 = vst.msk [vmem:[%s3 + $0xc] sm:$0xf] %vm156, %v127
  %161 = vst.msk [vmem:[%s3 + $0x10] sm:$0xf] %vm156, %v128
  %162 = vst.msk [vmem:[%s3 + $0x14] sm:$0xf] %vm156, %v129
  %163 = vst.msk [vmem:[%s3 + $0x18] sm:$0xf] %vm156, %v130
  %164 = vst.msk [vmem:[%s3 + $0x1c] sm:$0xf] %vm156, %v131
  %165 = vst.msk [vmem:[%s3 + $0x20] sm:$0xf] %vm156, %v132
  %166 = vst.msk [vmem:[%s3 + $0x24] sm:$0xf] %vm156, %v133
  %167 = vst.msk [vmem:[%s3 + $0x28] sm:$0xf] %vm156, %v134
  %168 = vst.msk [vmem:[%s3 + $0x2c] sm:$0xf] %vm156, %v135
  %169 = vst.msk [vmem:[%s3 + $0x30] sm:$0xf] %vm156, %v136
  %170 = vst.msk [vmem:[%s3 + $0x34] sm:$0xf] %vm156, %v137
  %171 = vst.msk [vmem:[%s3 + $0x38] sm:$0xf] %vm156, %v138
  %172 = vst.msk [vmem:[%s3 + $0x3c] sm:$0xf] %vm156, %v139
  // Predicated region
  $region14: #{generator_forward.14} parent=0 // pred_check
    _
  $region15: #{generator_forward.14} parent=0 // pred_check_branch
    %174 = sbr.rel (0) target = $region17
  $region16: #{generator_forward.14} parent=0 // pred_region
    _
  $region17: #{generator_forward.14} parent=0 // pred_fallthru
    _
  // Predicated region
  $region18: #{generator_forward.14} parent=0 // pred_check
    _
  $region19: #{generator_forward.14} parent=0 // pred_check_branch
    %176 = sbr.rel (0) target = $region21
  $region20: #{generator_forward.14} parent=0 // pred_region
    _
  $region21: #{generator_forward.14} parent=0 // pred_fallthru
    _

// kernel: squeeze.14
$region0: #{squeeze.14}
  %s0 = inlined_call_operand.vmem [shape: f32[32], index: 0, kind: input, shape index: {}]
  %s1 = inlined_call_operand.vmem [shape: f32[4,8], index: 1, kind: output, shape index: {}]
  $region1: #{squeeze.14} parent=0
    #allocation0 [shape = 'u8[4096]{0}', space=vmem, size = 0x1000, scoped, tag = 'scoped mem for output reshape']
    #allocation1 [shape = 'u8[4096]{0}', space=vmem, size = 0x1000, scoped, tag = 'scoped mem for input reshape']
    %s3 = sshll.u32 1, 1
    %s4 = ssub.s32 %s3, 1
    %v5 = vld [vmem:[%s0] sm:%s4]
    %6 = vst [vmem:[#allocation1] sm:%s4] %v5
    %v7 = vld [vmem:[#allocation1] sm:$0x1]
    %vm8 = vcmask 64512
    %9 = vst.msk [vmem:[#allocation0] sm:$0x1] %vm8, %v7
    %v10 = vld [vmem:[#allocation1] sm:$0x1]
    %11 = vrot.lane.b32.xlu0 %v10, 120
    %v12 = vpop.permute.xlu0 %11
    %vm13 = vcmask 64512
    %s14 = scalar_lea.vmem [#allocation0], 1
    %15 = vst.msk [vmem:[%s14] sm:$0x1] %vm13, %v12
    %v16 = vld [vmem:[#allocation1] sm:$0x1]
    %17 = vrot.lane.b32.xlu0 %v16, 112
    %v18 = vpop.permute.xlu0 %17
    %vm19 = vcmask 64512
    %s20 = scalar_lea.vmem [#allocation0], 2
    %21 = vst.msk [vmem:[%s20] sm:$0x1] %vm19, %v18
    %v22 = vld [vmem:[#allocation1] sm:$0x1]
    %23 = vrot.lane.b32.xlu0 %v22, 104
    %v24 = vpop.permute.xlu0 %23
    %vm25 = vcmask 64512
    %s26 = scalar_lea.vmem [#allocation0], 3
    %27 = vst.msk [vmem:[%s26] sm:$0x1] %vm25, %v24
    %s29 = sshll.u32 1, 4
    %s30 = ssub.s32 %s29, 1
    %v32 = vld [vmem:[#allocation0] sm:%s30]
    %s33 = sshll.u32 1, 4
    %s34 = ssub.s32 %s33, 1
    %35 = vst [vmem:[%s1] sm:%s34] %v32

// kernel: tile.77
$region0: #{tile.77}
  #allocation0 [shape = 's32[1]{0}', space=sflag, size = 0x4, scoped, tag = 'scoped memory for tile.77']
  %s0 = inlined_call_operand.vmem [shape: f32[8], index: 0, kind: input, shape index: {}]
  %s1 = inlined_call_operand.vmem [shape: f32[4,8], index: 1, kind: output, shape index: {}]
  // Predicated region
  $region2: #{tile.77} parent=0 // pred_check
    _
  $region3: #{tile.77} parent=0 // pred_check_branch
    %3 = sbr.rel (0) target = $region5
  $region4: #{tile.77} parent=0 // pred_region
    _
  $region5: #{tile.77} parent=0 // pred_fallthru
    _
  %v4 = vld [vmem:[%s0] ss:$0 sm:$0xff]
  %5 = vst [vmem:[%s1] sm:$0xf] %v4

// kernel: tile.79
$region0: #{tile.79}
  %s0 = inlined_call_operand.vmem [shape: f32[4,8], index: 0, kind: input, shape index: {}]
  %s1 = inlined_call_operand.vmem [shape: f32[1,32], index: 1, kind: output, shape index: {}]
  $region1: #{tile.79} parent=0
    #allocation0 [shape = 'u8[4096]{0}', space=vmem, size = 0x1000, scoped, tag = 'scoped mem for output reshape']
    #allocation1 [shape = 'u8[4096]{0}', space=vmem, size = 0x1000, scoped, tag = 'scoped mem for input reshape']
    %s3 = sshll.u32 1, 4
    %s4 = ssub.s32 %s3, 1
    %v5 = vld [vmem:[%s0] sm:%s4]
    %6 = vst [vmem:[#allocation1] sm:%s4] %v5
    %v7 = vld [vmem:[#allocation1] sm:$0x1]
    %vm8 = vcmask 64512
    %9 = vst.msk [vmem:[#allocation0] sm:$0x1] %vm8, %v7
    %s10 = scalar_lea.vmem [#allocation1], 3
    %v11 = vld [vmem:[%s10] sm:$0x1]
    %12 = vrot.lane.b32.xlu0 %v11, 24
    %v13 = vpop.permute.xlu0 %12
    %vm14 = vcmask 261312
    %15 = vst.msk [vmem:[#allocation0] sm:$0x1] %vm14, %v13
    %s16 = scalar_lea.vmem [#allocation1], 2
    %v17 = vld [vmem:[%s16] sm:$0x1]
    %18 = vrot.lane.b32.xlu0 %v17, 16
    %v19 = vpop.permute.xlu0 %18
    %vm20 = vcmask 195712
    %21 = vst.msk [vmem:[#allocation0] sm:$0x1] %vm20, %v19
    %s22 = scalar_lea.vmem [#allocation1], 1
    %v23 = vld [vmem:[%s22] sm:$0x1]
    %24 = vrot.lane.b32.xlu0 %v23, 8
    %v25 = vpop.permute.xlu0 %24
    %vm26 = vcmask 130112
    %27 = vst.msk [vmem:[#allocation0] sm:$0x1] %vm26, %v25
    %s29 = sshll.u32 1, 1
    %s30 = ssub.s32 %s29, 1
    %v32 = vld [vmem:[#allocation0] sm:%s30]
    %s33 = sshll.u32 1, 1
    %s34 = ssub.s32 %s33, 1
    %35 = vst [vmem:[%s1] sm:%s34] %v32

// kernel: generator_forward.15
$region0: #{generator_forward.15}
  #allocation0 [shape = 'u32[]', space=smem, size = 0x4, offset = 0x4, fixed_abs, tag = 'smem constant byte address 0x4 - core index']
  #allocation1 [shape = 'u32[144,128]{1,0:T(1,128)}', space=vmem, size = 0x12000, scoped, tag = 'internal scratch']
  %s0 = inlined_call_operand.vmem [shape: bf16[512,144], index: 0, kind: input, shape index: {}]
  %s1 = inlined_call_operand.vmem [shape: bf16[144,32], index: 1, kind: input, shape index: {}]
  %s2 = inlined_call_operand.vmem [shape: f32[512,32], index: 2, kind: output, shape index: {0}]
  %s3 = inlined_call_operand.vmem [shape: f32[1,2,32], index: 3, kind: output, shape index: {1}]
  %4 = xla_tuple %s2, %s3
  %s5 = sld [smem:[#allocation0]]
  $region26: #{generator_forward.15} parent=0
    _
  %s7 = ssub.s32 1, %s5
  %s8 = scalar_select 0, %s7, %s5
  // Predicated region
  $region2: #{generator_forward.15} parent=0 // pred_check
    _
  $region3: #{generator_forward.15} parent=0 // pred_check_branch
    %10 = sbr.rel (0) target = $region5
  $region4: #{generator_forward.15} parent=0 // pred_region
    _
  $region5: #{generator_forward.15} parent=0 // pred_fallthru
    _
  // Predicated region
  $region6: #{generator_forward.15} parent=0 // pred_check
    _
  $region7: #{generator_forward.15} parent=0 // pred_check_branch
    %12 = sbr.rel (0) target = $region9
  $region8: #{generator_forward.15} parent=0 // pred_region
    _
  $region9: #{generator_forward.15} parent=0 // pred_fallthru
    _
  %v14 = vld [vmem:[%s0] sm:$0xff]
  %v15 = vld [vmem:[%s0 + $0x8] sm:$0xff]
  %v16 = vld [vmem:[%s0 + $0x10] sm:$0xff]
  %v17 = vld [vmem:[%s0 + $0x18] sm:$0xff]
  %v18 = vld [vmem:[%s0 + $0x20] sm:$0xff]
  %v19 = vld [vmem:[%s0 + $0x28] sm:$0xff]
  %v20 = vld [vmem:[%s0 + $0x30] sm:$0xff]
  %v21 = vld [vmem:[%s0 + $0x38] sm:$0xff]
  %v22 = vld [vmem:[%s0 + $0x40] sm:$0xff]
  %v23 = vld [vmem:[%s0 + $0x48] sm:$0xff]
  %v24 = vld [vmem:[%s0 + $0x50] sm:$0xff]
  %v25 = vld [vmem:[%s0 + $0x58] sm:$0xff]
  %v26 = vld [vmem:[%s0 + $0x60] sm:$0xff]
  %v27 = vld [vmem:[%s0 + $0x68] sm:$0xff]
  %v28 = vld [vmem:[%s0 + $0x70] sm:$0xff]
  %v29 = vld [vmem:[%s0 + $0x78] sm:$0xff]
  %v30 = vld [vmem:[%s0 + $0x80] sm:$0xff]
  %v31 = vld [vmem:[%s0 + $0x88] sm:$0xff]
  %v32 = vld [vmem:[%s0 + $0x90] sm:$0xff]
  %v33 = vld [vmem:[%s0 + $0x98] sm:$0xff]
  %v34 = vld [vmem:[%s0 + $0xa0] sm:$0xff]
  %v35 = vld [vmem:[%s0 + $0xa8] sm:$0xff]
  %v36 = vld [vmem:[%s0 + $0xb0] sm:$0xff]
  %v37 = vld [vmem:[%s0 + $0xb8] sm:$0xff]
  %v38 = vld [vmem:[%s0 + $0xc0] sm:$0xff]
  %v39 = vld [vmem:[%s0 + $0xc8] sm:$0xff]
  %v40 = vld [vmem:[%s0 + $0xd0] sm:$0xff]
  %v41 = vld [vmem:[%s0 + $0xd8] sm:$0xff]
  %v42 = vld [vmem:[%s0 + $0xe0] sm:$0xff]
  %v43 = vld [vmem:[%s0 + $0xe8] sm:$0xff]
  %v44 = vld [vmem:[%s0 + $0xf0] sm:$0xff]
  %v45 = vld [vmem:[%s0 + $0xf8] sm:$0xff]
  %v46 = vld [vmem:[%s0 + $0x100] sm:$0xff]
  %v47 = vld [vmem:[%s0 + $0x108] sm:$0xff]
  %v48 = vld [vmem:[%s0 + $0x110] sm:$0xff]
  %v49 = vld [vmem:[%s0 + $0x118] sm:$0xff]
  %v50 = vld [vmem:[%s0 + $0x120] sm:$0xff]
  %v51 = vld [vmem:[%s0 + $0x128] sm:$0xff]
  %v52 = vld [vmem:[%s0 + $0x130] sm:$0xff]
  %v53 = vld [vmem:[%s0 + $0x138] sm:$0xff]
  %v54 = vld [vmem:[%s0 + $0x140] sm:$0xff]
  %v55 = vld [vmem:[%s0 + $0x148] sm:$0xff]
  %v56 = vld [vmem:[%s0 + $0x150] sm:$0xff]
  %v57 = vld [vmem:[%s0 + $0x158] sm:$0xff]
  %v58 = vld [vmem:[%s0 + $0x160] sm:$0xff]
  %v59 = vld [vmem:[%s0 + $0x168] sm:$0xff]
  %v60 = vld [vmem:[%s0 + $0x170] sm:$0xff]
  %v61 = vld [vmem:[%s0 + $0x178] sm:$0xff]
  %v62 = vld [vmem:[%s0 + $0x180] sm:$0xff]
  %v63 = vld [vmem:[%s0 + $0x188] sm:$0xff]
  %v64 = vld [vmem:[%s0 + $0x190] sm:$0xff]
  %v65 = vld [vmem:[%s0 + $0x198] sm:$0xff]
  %v66 = vld [vmem:[%s0 + $0x1a0] sm:$0xff]
  %v67 = vld [vmem:[%s0 + $0x1a8] sm:$0xff]
  %v68 = vld [vmem:[%s0 + $0x1b0] sm:$0xff]
  %v69 = vld [vmem:[%s0 + $0x1b8] sm:$0xff]
  %v70 = vld [vmem:[%s0 + $0x1c0] sm:$0xff]
  %v71 = vld [vmem:[%s0 + $0x1c8] sm:$0xff]
  %v72 = vld [vmem:[%s0 + $0x1d0] sm:$0xff]
  %v73 = vld [vmem:[%s0 + $0x1d8] sm:$0xff]
  %v74 = vld [vmem:[%s0 + $0x1e0] sm:$0xff]
  %v75 = vld [vmem:[%s0 + $0x1e8] sm:$0xff]
  %v76 = vld [vmem:[%s0 + $0x1f0] sm:$0xff]
  %v77 = vld [vmem:[%s0 + $0x1f8] sm:$0xff]
  %v78 = vld [vmem:[%s1] sm:$0xf]
  %v79 = vld [vmem:[%s1 + $0x4] sm:$0xf]
  %v80 = vld [vmem:[%s1 + $0x8] sm:$0xf]
  %v81 = vld [vmem:[%s1 + $0xc] sm:$0xf]
  %v82 = vld [vmem:[%s1 + $0x10] sm:$0xf]
  %v83 = vld [vmem:[%s1 + $0x14] sm:$0xf]
  %v84 = vld [vmem:[%s1 + $0x18] sm:$0xf]
  %v85 = vld [vmem:[%s1 + $0x1c] sm:$0xf]
  %v86 = vld [vmem:[%s1 + $0x20] sm:$0xf]
  %v87 = vld [vmem:[%s1 + $0x24] sm:$0xf]
  %v88 = vld [vmem:[%s1 + $0x28] sm:$0xf]
  %v89 = vld [vmem:[%s1 + $0x2c] sm:$0xf]
  %v90 = vld [vmem:[%s1 + $0x30] sm:$0xf]
  %v91 = vld [vmem:[%s1 + $0x34] sm:$0xf]
  %v92 = vld [vmem:[%s1 + $0x38] sm:$0xf]
  %v93 = vld [vmem:[%s1 + $0x3c] sm:$0xf]
  %v94 = vld [vmem:[%s1 + $0x40] sm:$0xf]
  %v95 = vld [vmem:[%s1 + $0x44] sm:$0xf]
  %v160 = vunpack.c.l.b16 %v14
  %v161 = vunpack.c.h.b16 %v14
  %v162 = vunpack.c.l.b16 %v15
  %v163 = vunpack.c.h.b16 %v15
  %v164 = vunpack.c.l.b16 %v16
  %v165 = vunpack.c.h.b16 %v16
  %v166 = vunpack.c.l.b16 %v17
  %v167 = vunpack.c.h.b16 %v17
  %v168 = vunpack.c.l.b16 %v18
  %v169 = vunpack.c.h.b16 %v18
  %v170 = vunpack.c.l.b16 %v19
  %v171 = vunpack.c.h.b16 %v19
  %v172 = vunpack.c.l.b16 %v20
  %v173 = vunpack.c.h.b16 %v20
  %v174 = vunpack.c.l.b16 %v21
  %v175 = vunpack.c.h.b16 %v21
  %v176 = vunpack.c.l.b16 %v22
  %v177 = vunpack.c.h.b16 %v22
  %v178 = vunpack.c.l.b16 %v23
  %v179 = vunpack.c.h.b16 %v23
  %v180 = vunpack.c.l.b16 %v24
  %v181 = vunpack.c.h.b16 %v24
  %v182 = vunpack.c.l.b16 %v25
  %v183 = vunpack.c.h.b16 %v25
  %v184 = vunpack.c.l.b16 %v26
  %v185 = vunpack.c.h.b16 %v26
  %v186 = vunpack.c.l.b16 %v27
  %v187 = vunpack.c.h.b16 %v27
  %v188 = vunpack.c.l.b16 %v28
  %v189 = vunpack.c.h.b16 %v28
  %v190 = vunpack.c.l.b16 %v29
  %v191 = vunpack.c.h.b16 %v29
  %v192 = vunpack.c.l.b16 %v30
  %v193 = vunpack.c.h.b16 %v30
  %v194 = vunpack.c.l.b16 %v31
  %v195 = vunpack.c.h.b16 %v31
  %v196 = vunpack.c.l.b16 %v32
  %v197 = vunpack.c.h.b16 %v32
  %v198 = vunpack.c.l.b16 %v33
  %v199 = vunpack.c.h.b16 %v33
  %v200 = vunpack.c.l.b16 %v34
  %v201 = vunpack.c.h.b16 %v34
  %v202 = vunpack.c.l.b16 %v35
  %v203 = vunpack.c.h.b16 %v35
  %v204 = vunpack.c.l.b16 %v36
  %v205 = vunpack.c.h.b16 %v36
  %v206 = vunpack.c.l.b16 %v37
  %v207 = vunpack.c.h.b16 %v37
  %v208 = vunpack.c.l.b16 %v38
  %v209 = vunpack.c.h.b16 %v38
  %v210 = vunpack.c.l.b16 %v39
  %v211 = vunpack.c.h.b16 %v39
  %v212 = vunpack.c.l.b16 %v40
  %v213 = vunpack.c.h.b16 %v40
  %v214 = vunpack.c.l.b16 %v41
  %v215 = vunpack.c.h.b16 %v41
  %v216 = vunpack.c.l.b16 %v42
  %v217 = vunpack.c.h.b16 %v42
  %v218 = vunpack.c.l.b16 %v43
  %v219 = vunpack.c.h.b16 %v43
  %v220 = vunpack.c.l.b16 %v44
  %v221 = vunpack.c.h.b16 %v44
  %v222 = vunpack.c.l.b16 %v45
  %v223 = vunpack.c.h.b16 %v45
  %v224 = vunpack.c.l.b16 %v46
  %v225 = vunpack.c.h.b16 %v46
  %v226 = vunpack.c.l.b16 %v47
  %v227 = vunpack.c.h.b16 %v47
  %v228 = vunpack.c.l.b16 %v48
  %v229 = vunpack.c.h.b16 %v48
  %v230 = vunpack.c.l.b16 %v49
  %v231 = vunpack.c.h.b16 %v49
  %v232 = vunpack.c.l.b16 %v50
  %v233 = vunpack.c.h.b16 %v50
  %v234 = vunpack.c.l.b16 %v51
  %v235 = vunpack.c.h.b16 %v51
  %v236 = vunpack.c.l.b16 %v52
  %v237 = vunpack.c.h.b16 %v52
  %v238 = vunpack.c.l.b16 %v53
  %v239 = vunpack.c.h.b16 %v53
  %v240 = vunpack.c.l.b16 %v54
  %v241 = vunpack.c.h.b16 %v54
  %v242 = vunpack.c.l.b16 %v55
  %v243 = vunpack.c.h.b16 %v55
  %v244 = vunpack.c.l.b16 %v56
  %v245 = vunpack.c.h.b16 %v56
  %v246 = vunpack.c.l.b16 %v57
  %v247 = vunpack.c.h.b16 %v57
  %v248 = vunpack.c.l.b16 %v58
  %v249 = vunpack.c.h.b16 %v58
  %v250 = vunpack.c.l.b16 %v59
  %v251 = vunpack.c.h.b16 %v59
  %v252 = vunpack.c.l.b16 %v60
  %v253 = vunpack.c.h.b16 %v60
  %v254 = vunpack.c.l.b16 %v61
  %v255 = vunpack.c.h.b16 %v61
  %v256 = vunpack.c.l.b16 %v62
  %v257 = vunpack.c.h.b16 %v62
  %v258 = vunpack.c.l.b16 %v63
  %v259 = vunpack.c.h.b16 %v63
  %v260 = vunpack.c.l.b16 %v64
  %v261 = vunpack.c.h.b16 %v64
  %v262 = vunpack.c.l.b16 %v65
  %v263 = vunpack.c.h.b16 %v65
  %v264 = vunpack.c.l.b16 %v66
  %v265 = vunpack.c.h.b16 %v66
  %v266 = vunpack.c.l.b16 %v67
  %v267 = vunpack.c.h.b16 %v67
  %v268 = vunpack.c.l.b16 %v68
  %v269 = vunpack.c.h.b16 %v68
  %v270 = vunpack.c.l.b16 %v69
  %v271 = vunpack.c.h.b16 %v69
  %v272 = vunpack.c.l.b16 %v70
  %v273 = vunpack.c.h.b16 %v70
  %v274 = vunpack.c.l.b16 %v71
  %v275 = vunpack.c.h.b16 %v71
  %v276 = vunpack.c.l.b16 %v72
  %v277 = vunpack.c.h.b16 %v72
  %v278 = vunpack.c.l.b16 %v73
  %v279 = vunpack.c.h.b16 %v73
  %v280 = vunpack.c.l.b16 %v74
  %v281 = vunpack.c.h.b16 %v74
  %v282 = vunpack.c.l.b16 %v75
  %v283 = vunpack.c.h.b16 %v75
  %v284 = vunpack.c.l.b16 %v76
  %v285 = vunpack.c.h.b16 %v76
  %v286 = vunpack.c.l.b16 %v77
  %v287 = vunpack.c.h.b16 %v77
  %v288 = vpack.c.b16 %v162, %v160
  %v289 = vpack.c.b16 %v163, %v161
  %v290 = vpack.c.b16 %v166, %v164
  %v291 = vpack.c.b16 %v167, %v165
  %v292 = vpack.c.b16 %v170, %v168
  %v293 = vpack.c.b16 %v171, %v169
  %v294 = vpack.c.b16 %v174, %v172
  %v295 = vpack.c.b16 %v175, %v173
  %v296 = vpack.c.b16 %v178, %v176
  %v297 = vpack.c.b16 %v179, %v177
  %v298 = vpack.c.b16 %v182, %v180
  %v299 = vpack.c.b16 %v183, %v181
  %v300 = vpack.c.b16 %v186, %v184
  %v301 = vpack.c.b16 %v187, %v185
  %v302 = vpack.c.b16 %v190, %v188
  %v303 = vpack.c.b16 %v191, %v189
  %v304 = vpack.c.b16 %v194, %v192
  %v305 = vpack.c.b16 %v195, %v193
  %v306 = vpack.c.b16 %v198, %v196
  %v307 = vpack.c.b16 %v199, %v197
  %v308 = vpack.c.b16 %v202, %v200
  %v309 = vpack.c.b16 %v203, %v201
  %v310 = vpack.c.b16 %v206, %v204
  %v311 = vpack.c.b16 %v207, %v205
  %v312 = vpack.c.b16 %v210, %v208
  %v313 = vpack.c.b16 %v211, %v209
  %v314 = vpack.c.b16 %v214, %v212
  %v315 = vpack.c.b16 %v215, %v213
  %v316 = vpack.c.b16 %v218, %v216
  %v317 = vpack.c.b16 %v219, %v217
  %v318 = vpack.c.b16 %v222, %v220
  %v319 = vpack.c.b16 %v223, %v221
  %v320 = vpack.c.b16 %v226, %v224
  %v321 = vpack.c.b16 %v227, %v225
  %v322 = vpack.c.b16 %v230, %v228
  %v323 = vpack.c.b16 %v231, %v229
  %v324 = vpack.c.b16 %v234, %v232
  %v325 = vpack.c.b16 %v235, %v233
  %v326 = vpack.c.b16 %v238, %v236
  %v327 = vpack.c.b16 %v239, %v237
  %v328 = vpack.c.b16 %v242, %v240
  %v329 = vpack.c.b16 %v243, %v241
  %v330 = vpack.c.b16 %v246, %v244
  %v331 = vpack.c.b16 %v247, %v245
  %v332 = vpack.c.b16 %v250, %v248
  %v333 = vpack.c.b16 %v251, %v249
  %v334 = vpack.c.b16 %v254, %v252
  %v335 = vpack.c.b16 %v255, %v253
  %v336 = vpack.c.b16 %v258, %v256
  %v337 = vpack.c.b16 %v259, %v257
  %v338 = vpack.c.b16 %v262, %v260
  %v339 = vpack.c.b16 %v263, %v261
  %v340 = vpack.c.b16 %v266, %v264
  %v341 = vpack.c.b16 %v267, %v265
  %v342 = vpack.c.b16 %v270, %v268
  %v343 = vpack.c.b16 %v271, %v269
  %v344 = vpack.c.b16 %v274, %v272
  %v345 = vpack.c.b16 %v275, %v273
  %v346 = vpack.c.b16 %v278, %v276
  %v347 = vpack.c.b16 %v279, %v277
  %v348 = vpack.c.b16 %v282, %v280
  %v349 = vpack.c.b16 %v283, %v281
  %v350 = vpack.c.b16 %v286, %v284
  %v351 = vpack.c.b16 %v287, %v285
  %v402 = vunpack.c.l.b16 %v78
  %v403 = vunpack.c.l.b16 %v79
  %v404 = vunpack.c.l.b16 %v80
  %v405 = vunpack.c.l.b16 %v81
  %v406 = vunpack.c.l.b16 %v82
  %v407 = vunpack.c.l.b16 %v83
  %v408 = vunpack.c.l.b16 %v84
  %v409 = vunpack.c.l.b16 %v85
  %v410 = vunpack.c.l.b16 %v86
  %v411 = vunpack.c.l.b16 %v87
  %v412 = vunpack.c.l.b16 %v88
  %v413 = vunpack.c.l.b16 %v89
  %v414 = vunpack.c.l.b16 %v90
  %v415 = vunpack.c.l.b16 %v91
  %v416 = vunpack.c.l.b16 %v92
  %v417 = vunpack.c.l.b16 %v93
  %v418 = vunpack.c.l.b16 %v94
  %v419 = vunpack.c.l.b16 %v95
  %v420 = vpack.c.b16 %v403, %v402
  %v421 = vpack.c.b16 %v405, %v404
  %v422 = vpack.c.b16 %v407, %v406
  %v423 = vpack.c.b16 %v409, %v408
  %v424 = vpack.c.b16 %v411, %v410
  %v425 = vpack.c.b16 %v413, %v412
  %v426 = vpack.c.b16 %v415, %v414
  %v427 = vpack.c.b16 %v417, %v416
  %v428 = vpack.c.b16 %v419, %v418
  %vm438 = vcmask 130048
  %v440 = vsel %vm438, %v289, 0
  %v443 = vsel %vm438, %v291, 0
  %v446 = vsel %vm438, %v293, 0
  %v449 = vsel %vm438, %v295, 0
  %v452 = vsel %vm438, %v297, 0
  %v455 = vsel %vm438, %v299, 0
  %v458 = vsel %vm438, %v301, 0
  %v461 = vsel %vm438, %v303, 0
  %v464 = vsel %vm438, %v305, 0
  %v467 = vsel %vm438, %v307, 0
  %v470 = vsel %vm438, %v309, 0
  %v473 = vsel %vm438, %v311, 0
  %v476 = vsel %vm438, %v313, 0
  %v479 = vsel %vm438, %v315, 0
  %v482 = vsel %vm438, %v317, 0
  %v485 = vsel %vm438, %v319, 0
  %v488 = vsel %vm438, %v321, 0
  %v491 = vsel %vm438, %v323, 0
  %v494 = vsel %vm438, %v325, 0
  %v497 = vsel %vm438, %v327, 0
  %v500 = vsel %vm438, %v329, 0
  %v503 = vsel %vm438, %v331, 0
  %v506 = vsel %vm438, %v333, 0
  %v509 = vsel %vm438, %v335, 0
  %v512 = vsel %vm438, %v337, 0
  %v515 = vsel %vm438, %v339, 0
  %v518 = vsel %vm438, %v341, 0
  %v521 = vsel %vm438, %v343, 0
  %v524 = vsel %vm438, %v345, 0
  %v527 = vsel %vm438, %v347, 0
  %v530 = vsel %vm438, %v349, 0
  %v533 = vsel %vm438, %v351, 0
  %535 = vmatprep.subr.bf16.mxu0 0
  %536 = vmatpush1.bf16.msra.mxu0 %v427
  %537 = vmatprep.subr.bf16.mxu0 0
  %538 = vmatpush1.bf16.msra.mxu0 %v426
  %539 = vmatprep.subr.bf16.mxu0 0
  %540 = vmatpush1.bf16.msra.mxu0 %v425
  %541 = vmatprep.subr.bf16.mxu0 0
  %542 = vmatpush1.bf16.msra.mxu0 %v424
  %543 = vmatprep.subr.bf16.mxu0 0
  %544 = vmatpush1.bf16.msra.mxu0 %v423
  %545 = vmatprep.subr.bf16.mxu0 0
  %546 = vmatpush1.bf16.msra.mxu0 %v422
  %547 = vmatprep.subr.bf16.mxu0 0
  %548 = vmatpush1.bf16.msra.mxu0 %v421
  %549 = vmatprep.subr.bf16.mxu0 0
  %550 = vmatpush1.bf16.msra.mxu0 %v420
  %551 = vmatprep.subr.bf16.mxu0 0
  %552 = vmatpush2.bf16.msra.mxu0 0
  %553 = vmatprep.subr.bf16.mxu0 0
  %554 = vmatpush2.bf16.msra.mxu0 0
  %555 = vmatprep.subr.bf16.mxu0 0
  %556 = vmatpush2.bf16.msra.mxu0 0
  %557 = vmatprep.subr.bf16.mxu0 0
  %558 = vmatpush2.bf16.msra.mxu0 0
  %559 = vmatprep.subr.bf16.mxu0 0
  %560 = vmatpush2.bf16.msra.mxu0 0
  %561 = vmatprep.subr.bf16.mxu0 0
  %562 = vmatpush2.bf16.msra.mxu0 0
  %563 = vmatprep.subr.bf16.mxu0 0
  %564 = vmatpush2.bf16.msra.mxu0 0
  %565 = vmatprep.subr.bf16.mxu0 0
  %566 = vmatpush2.bf16.msra.mxu0 %v428
  %567 = vmatprep.mubr.bf16.mxu0 %v440
  %568 = vmatmul.mubr.bf16.gmra.mxu0 %v288
  %v569 = vpop.f32.mrf.mxu0
  %v570 = vadd.f32 0.0, %v569
  %v571 = vpop.f32.mrf.mxu0
  %v572 = vpop.f32.mrf.mxu0
  %v573 = vadd.f32 0.0, %v572
  %v574 = vpop.f32.mrf.mxu0
  %575 = vmatprep.mubr.bf16.mxu0 %v443
  %576 = vmatmul.mubr.bf16.gmra.mxu0 %v290
  %v577 = vpop.f32.mrf.mxu0
  %v578 = vadd.f32 0.0, %v577
  %v579 = vpop.f32.mrf.mxu0
  %v580 = vpop.f32.mrf.mxu0
  %v581 = vadd.f32 0.0, %v580
  %v582 = vpop.f32.mrf.mxu0
  %583 = vmatprep.mubr.bf16.mxu0 %v446
  %584 = vmatmul.mubr.bf16.gmra.mxu0 %v292
  %v585 = vpop.f32.mrf.mxu0
  %v586 = vadd.f32 0.0, %v585
  %v587 = vpop.f32.mrf.mxu0
  %v588 = vpop.f32.mrf.mxu0
  %v589 = vadd.f32 0.0, %v588
  %v590 = vpop.f32.mrf.mxu0
  %591 = vmatprep.mubr.bf16.mxu0 %v449
  %592 = vmatmul.mubr.bf16.gmra.mxu0 %v294
  %v593 = vpop.f32.mrf.mxu0
  %v594 = vadd.f32 0.0, %v593
  %v595 = vpop.f32.mrf.mxu0
  %v596 = vpop.f32.mrf.mxu0
  %v597 = vadd.f32 0.0, %v596
  %v598 = vpop.f32.mrf.mxu0
  %599 = vmatprep.mubr.bf16.mxu0 %v452
  %600 = vmatmul.mubr.bf16.gmra.mxu0 %v296
  %v601 = vpop.f32.mrf.mxu0
  %v602 = vadd.f32 0.0, %v601
  %v603 = vpop.f32.mrf.mxu0
  %v604 = vpop.f32.mrf.mxu0
  %v605 = vadd.f32 0.0, %v604
  %v606 = vpop.f32.mrf.mxu0
  %607 = vmatprep.mubr.bf16.mxu0 %v455
  %608 = vmatmul.mubr.bf16.gmra.mxu0 %v298
  %v609 = vpop.f32.mrf.mxu0
  %v610 = vadd.f32 0.0, %v609
  %v611 = vpop.f32.mrf.mxu0
  %v612 = vpop.f32.mrf.mxu0
  %v613 = vadd.f32 0.0, %v612
  %v614 = vpop.f32.mrf.mxu0
  %615 = vmatprep.mubr.bf16.mxu0 %v458
  %616 = vmatmul.mubr.bf16.gmra.mxu0 %v300
  %v617 = vpop.f32.mrf.mxu0
  %v618 = vadd.f32 0.0, %v617
  %v619 = vpop.f32.mrf.mxu0
  %v620 = vpop.f32.mrf.mxu0
  %v621 = vadd.f32 0.0, %v620
  %v622 = vpop.f32.mrf.mxu0
  %623 = vmatprep.mubr.bf16.mxu0 %v461
  %624 = vmatmul.mubr.bf16.gmra.mxu0 %v302
  %v625 = vpop.f32.mrf.mxu0
  %v626 = vadd.f32 0.0, %v625
  %v627 = vpop.f32.mrf.mxu0
  %v628 = vpop.f32.mrf.mxu0
  %v629 = vadd.f32 0.0, %v628
  %v630 = vpop.f32.mrf.mxu0
  %631 = vmatprep.mubr.bf16.mxu0 %v464
  %632 = vmatmul.mubr.bf16.gmra.mxu0 %v304
  %v633 = vpop.f32.mrf.mxu0
  %v634 = vadd.f32 0.0, %v633
  %v635 = vpop.f32.mrf.mxu0
  %v636 = vpop.f32.mrf.mxu0
  %v637 = vadd.f32 0.0, %v636
  %v638 = vpop.f32.mrf.mxu0
  %639 = vmatprep.mubr.bf16.mxu0 %v467
  %640 = vmatmul.mubr.bf16.gmra.mxu0 %v306
  %v641 = vpop.f32.mrf.mxu0
  %v642 = vadd.f32 0.0, %v641
  %v643 = vpop.f32.mrf.mxu0
  %v644 = vpop.f32.mrf.mxu0
  %v645 = vadd.f32 0.0, %v644
  %v646 = vpop.f32.mrf.mxu0
  %647 = vmatprep.mubr.bf16.mxu0 %v470
  %648 = vmatmul.mubr.bf16.gmra.mxu0 %v308
  %v649 = vpop.f32.mrf.mxu0
  %v650 = vadd.f32 0.0, %v649
  %v651 = vpop.f32.mrf.mxu0
  %v652 = vpop.f32.mrf.mxu0
  %v653 = vadd.f32 0.0, %v652
  %v654 = vpop.f32.mrf.mxu0
  %655 = vmatprep.mubr.bf16.mxu0 %v473
  %656 = vmatmul.mubr.bf16.gmra.mxu0 %v310
  %v657 = vpop.f32.mrf.mxu0
  %v658 = vadd.f32 0.0, %v657
  %v659 = vpop.f32.mrf.mxu0
  %v660 = vpop.f32.mrf.mxu0
  %v661 = vadd.f32 0.0, %v660
  %v662 = vpop.f32.mrf.mxu0
  %663 = vmatprep.mubr.bf16.mxu0 %v476
  %664 = vmatmul.mubr.bf16.gmra.mxu0 %v312
  %v665 = vpop.f32.mrf.mxu0
  %v666 = vadd.f32 0.0, %v665
  %v667 = vpop.f32.mrf.mxu0
  %v668 = vpop.f32.mrf.mxu0
  %v669 = vadd.f32 0.0, %v668
  %v670 = vpop.f32.mrf.mxu0
  %671 = vmatprep.mubr.bf16.mxu0 %v479
  %672 = vmatmul.mubr.bf16.gmra.mxu0 %v314
  %v673 = vpop.f32.mrf.mxu0
  %v674 = vadd.f32 0.0, %v673
  %v675 = vpop.f32.mrf.mxu0
  %v676 = vpop.f32.mrf.mxu0
  %v677 = vadd.f32 0.0, %v676
  %v678 = vpop.f32.mrf.mxu0
  %679 = vmatprep.mubr.bf16.mxu0 %v482
  %680 = vmatmul.mubr.bf16.gmra.mxu0 %v316
  %v681 = vpop.f32.mrf.mxu0
  %v682 = vadd.f32 0.0, %v681
  %v683 = vpop.f32.mrf.mxu0
  %v684 = vpop.f32.mrf.mxu0
  %v685 = vadd.f32 0.0, %v684
  %v686 = vpop.f32.mrf.mxu0
  %687 = vmatprep.mubr.bf16.mxu0 %v485
  %688 = vmatmul.mubr.bf16.gmra.mxu0 %v318
  %v689 = vpop.f32.mrf.mxu0
  %v690 = vadd.f32 0.0, %v689
  %v691 = vpop.f32.mrf.mxu0
  %v692 = vpop.f32.mrf.mxu0
  %v693 = vadd.f32 0.0, %v692
  %v694 = vpop.f32.mrf.mxu0
  %695 = vmatprep.mubr.bf16.mxu0 %v488
  %696 = vmatmul.mubr.bf16.gmra.mxu0 %v320
  %v697 = vpop.f32.mrf.mxu0
  %v698 = vadd.f32 0.0, %v697
  %v699 = vpop.f32.mrf.mxu0
  %v700 = vpop.f32.mrf.mxu0
  %v701 = vadd.f32 0.0, %v700
  %v702 = vpop.f32.mrf.mxu0
  %703 = vmatprep.mubr.bf16.mxu0 %v491
  %704 = vmatmul.mubr.bf16.gmra.mxu0 %v322
  %v705 = vpop.f32.mrf.mxu0
  %v706 = vadd.f32 0.0, %v705
  %v707 = vpop.f32.mrf.mxu0
  %v708 = vpop.f32.mrf.mxu0
  %v709 = vadd.f32 0.0, %v708
  %v710 = vpop.f32.mrf.mxu0
  %711 = vmatprep.mubr.bf16.mxu0 %v494
  %712 = vmatmul.mubr.bf16.gmra.mxu0 %v324
  %v713 = vpop.f32.mrf.mxu0
  %v714 = vadd.f32 0.0, %v713
  %v715 = vpop.f32.mrf.mxu0
  %v716 = vpop.f32.mrf.mxu0
  %v717 = vadd.f32 0.0, %v716
  %v718 = vpop.f32.mrf.mxu0
  %719 = vmatprep.mubr.bf16.mxu0 %v497
  %720 = vmatmul.mubr.bf16.gmra.mxu0 %v326
  %v721 = vpop.f32.mrf.mxu0
  %v722 = vadd.f32 0.0, %v721
  %v723 = vpop.f32.mrf.mxu0
  %v724 = vpop.f32.mrf.mxu0
  %v725 = vadd.f32 0.0, %v724
  %v726 = vpop.f32.mrf.mxu0
  %727 = vmatprep.mubr.bf16.mxu0 %v500
  %728 = vmatmul.mubr.bf16.gmra.mxu0 %v328
  %v729 = vpop.f32.mrf.mxu0
  %v730 = vadd.f32 0.0, %v729
  %v731 = vpop.f32.mrf.mxu0
  %v732 = vpop.f32.mrf.mxu0
  %v733 = vadd.f32 0.0, %v732
  %v734 = vpop.f32.mrf.mxu0
  %735 = vmatprep.mubr.bf16.mxu0 %v503
  %736 = vmatmul.mubr.bf16.gmra.mxu0 %v330
  %v737 = vpop.f32.mrf.mxu0
  %v738 = vadd.f32 0.0, %v737
  %v739 = vpop.f32.mrf.mxu0
  %v740 = vpop.f32.mrf.mxu0
  %v741 = vadd.f32 0.0, %v740
  %v742 = vpop.f32.mrf.mxu0
  %743 = vmatprep.mubr.bf16.mxu0 %v506
  %744 = vmatmul.mubr.bf16.gmra.mxu0 %v332
  %v745 = vpop.f32.mrf.mxu0
  %v746 = vadd.f32 0.0, %v745
  %v747 = vpop.f32.mrf.mxu0
  %v748 = vpop.f32.mrf.mxu0
  %v749 = vadd.f32 0.0, %v748
  %v750 = vpop.f32.mrf.mxu0
  %751 = vmatprep.mubr.bf16.mxu0 %v509
  %752 = vmatmul.mubr.bf16.gmra.mxu0 %v334
  %v753 = vpop.f32.mrf.mxu0
  %v754 = vadd.f32 0.0, %v753
  %v755 = vpop.f32.mrf.mxu0
  %v756 = vpop.f32.mrf.mxu0
  %v757 = vadd.f32 0.0, %v756
  %v758 = vpop.f32.mrf.mxu0
  %759 = vmatprep.mubr.bf16.mxu0 %v512
  %760 = vmatmul.mubr.bf16.gmra.mxu0 %v336
  %v761 = vpop.f32.mrf.mxu0
  %v762 = vadd.f32 0.0, %v761
  %v763 = vpop.f32.mrf.mxu0
  %v764 = vpop.f32.mrf.mxu0
  %v765 = vadd.f32 0.0, %v764
  %v766 = vpop.f32.mrf.mxu0
  %767 = vmatprep.mubr.bf16.mxu0 %v515
  %768 = vmatmul.mubr.bf16.gmra.mxu0 %v338
  %v769 = vpop.f32.mrf.mxu0
  %v770 = vadd.f32 0.0, %v769
  %v771 = vpop.f32.mrf.mxu0
  %v772 = vpop.f32.mrf.mxu0
  %v773 = vadd.f32 0.0, %v772
  %v774 = vpop.f32.mrf.mxu0
  %775 = vmatprep.mubr.bf16.mxu0 %v518
  %776 = vmatmul.mubr.bf16.gmra.mxu0 %v340
  %v777 = vpop.f32.mrf.mxu0
  %v778 = vadd.f32 0.0, %v777
  %v779 = vpop.f32.mrf.mxu0
  %v780 = vpop.f32.mrf.mxu0
  %v781 = vadd.f32 0.0, %v780
  %v782 = vpop.f32.mrf.mxu0
  %783 = vmatprep.mubr.bf16.mxu0 %v521
  %784 = vmatmul.mubr.bf16.gmra.mxu0 %v342
  %v785 = vpop.f32.mrf.mxu0
  %v786 = vadd.f32 0.0, %v785
  %v787 = vpop.f32.mrf.mxu0
  %v788 = vpop.f32.mrf.mxu0
  %v789 = vadd.f32 0.0, %v788
  %v790 = vpop.f32.mrf.mxu0
  %791 = vmatprep.mubr.bf16.mxu0 %v524
  %792 = vmatmul.mubr.bf16.gmra.mxu0 %v344
  %v793 = vpop.f32.mrf.mxu0
  %v794 = vadd.f32 0.0, %v793
  %v795 = vpop.f32.mrf.mxu0
  %v796 = vpop.f32.mrf.mxu0
  %v797 = vadd.f32 0.0, %v796
  %v798 = vpop.f32.mrf.mxu0
  %799 = vmatprep.mubr.bf16.mxu0 %v527
  %800 = vmatmul.mubr.bf16.gmra.mxu0 %v346
  %v801 = vpop.f32.mrf.mxu0
  %v802 = vadd.f32 0.0, %v801
  %v803 = vpop.f32.mrf.mxu0
  %v804 = vpop.f32.mrf.mxu0
  %v805 = vadd.f32 0.0, %v804
  %v806 = vpop.f32.mrf.mxu0
  %807 = vmatprep.mubr.bf16.mxu0 %v530
  %808 = vmatmul.mubr.bf16.gmra.mxu0 %v348
  %v809 = vpop.f32.mrf.mxu0
  %v810 = vadd.f32 0.0, %v809
  %v811 = vpop.f32.mrf.mxu0
  %v812 = vpop.f32.mrf.mxu0
  %v813 = vadd.f32 0.0, %v812
  %v814 = vpop.f32.mrf.mxu0
  %815 = vmatprep.mubr.bf16.mxu0 %v533
  %816 = vmatmul.mubr.bf16.gmra.mxu0 %v350
  %v817 = vpop.f32.mrf.mxu0
  %v818 = vadd.f32 0.0, %v817
  %v819 = vpop.f32.mrf.mxu0
  %v820 = vpop.f32.mrf.mxu0
  %v821 = vadd.f32 0.0, %v820
  %v822 = vpop.f32.mrf.mxu0
  %823 = vdwg.mxu0
  %vm824 = vcmask 261120
  %v825 = vsel %vm824, %v570, 0.0
  %v826 = vsel %vm824, %v573, 0.0
  %v827 = vadd.f32 %v825, %v826
  %v828 = vsel %vm824, %v578, 0.0
  %v829 = vadd.f32 %v827, %v828
  %v830 = vsel %vm824, %v581, 0.0
  %v831 = vadd.f32 %v829, %v830
  %v832 = vsel %vm824, %v586, 0.0
  %v833 = vadd.f32 %v831, %v832
  %v834 = vsel %vm824, %v589, 0.0
  %v835 = vadd.f32 %v833, %v834
  %v836 = vsel %vm824, %v594, 0.0
  %v837 = vadd.f32 %v835, %v836
  %v838 = vsel %vm824, %v597, 0.0
  %v839 = vadd.f32 %v837, %v838
  %v840 = vsel %vm824, %v602, 0.0
  %v841 = vadd.f32 %v839, %v840
  %v842 = vsel %vm824, %v605, 0.0
  %v843 = vadd.f32 %v841, %v842
  %v844 = vsel %vm824, %v610, 0.0
  %v845 = vadd.f32 %v843, %v844
  %v846 = vsel %vm824, %v613, 0.0
  %v847 = vadd.f32 %v845, %v846
  %v848 = vsel %vm824, %v618, 0.0
  %v849 = vadd.f32 %v847, %v848
  %v850 = vsel %vm824, %v621, 0.0
  %v851 = vadd.f32 %v849, %v850
  %v852 = vsel %vm824, %v626, 0.0
  %v853 = vadd.f32 %v851, %v852
  %v854 = vsel %vm824, %v629, 0.0
  %v855 = vadd.f32 %v853, %v854
  %v856 = vsel %vm824, %v634, 0.0
  %v857 = vadd.f32 %v855, %v856
  %v858 = vsel %vm824, %v637, 0.0
  %v859 = vadd.f32 %v857, %v858
  %v860 = vsel %vm824, %v642, 0.0
  %v861 = vadd.f32 %v859, %v860
  %v862 = vsel %vm824, %v645, 0.0
  %v863 = vadd.f32 %v861, %v862
  %v864 = vsel %vm824, %v650, 0.0
  %v865 = vadd.f32 %v863, %v864
  %v866 = vsel %vm824, %v653, 0.0
  %v867 = vadd.f32 %v865, %v866
  %v868 = vsel %vm824, %v658, 0.0
  %v869 = vadd.f32 %v867, %v868
  %v870 = vsel %vm824, %v661, 0.0
  %v871 = vadd.f32 %v869, %v870
  %v872 = vsel %vm824, %v666, 0.0
  %v873 = vadd.f32 %v871, %v872
  %v874 = vsel %vm824, %v669, 0.0
  %v875 = vadd.f32 %v873, %v874
  %v876 = vsel %vm824, %v674, 0.0
  %v877 = vadd.f32 %v875, %v876
  %v878 = vsel %vm824, %v677, 0.0
  %v879 = vadd.f32 %v877, %v878
  %v880 = vsel %vm824, %v682, 0.0
  %v881 = vadd.f32 %v879, %v880
  %v882 = vsel %vm824, %v685, 0.0
  %v883 = vadd.f32 %v881, %v882
  %v884 = vsel %vm824, %v690, 0.0
  %v885 = vadd.f32 %v883, %v884
  %v886 = vsel %vm824, %v693, 0.0
  %v887 = vadd.f32 %v885, %v886
  %v888 = vsel %vm824, %v698, 0.0
  %v889 = vadd.f32 %v887, %v888
  %v890 = vsel %vm824, %v701, 0.0
  %v891 = vadd.f32 %v889, %v890
  %v892 = vsel %vm824, %v706, 0.0
  %v893 = vadd.f32 %v891, %v892
  %v894 = vsel %vm824, %v709, 0.0
  %v895 = vadd.f32 %v893, %v894
  %v896 = vsel %vm824, %v714, 0.0
  %v897 = vadd.f32 %v895, %v896
  %v898 = vsel %vm824, %v717, 0.0
  %v899 = vadd.f32 %v897, %v898
  %v900 = vsel %vm824, %v722, 0.0
  %v901 = vadd.f32 %v899, %v900
  %v902 = vsel %vm824, %v725, 0.0
  %v903 = vadd.f32 %v901, %v902
  %v904 = vsel %vm824, %v730, 0.0
  %v905 = vadd.f32 %v903, %v904
  %v906 = vsel %vm824, %v733, 0.0
  %v907 = vadd.f32 %v905, %v906
  %v908 = vsel %vm824, %v738, 0.0
  %v909 = vadd.f32 %v907, %v908
  %v910 = vsel %vm824, %v741, 0.0
  %v911 = vadd.f32 %v909, %v910
  %v912 = vsel %vm824, %v746, 0.0
  %v913 = vadd.f32 %v911, %v912
  %v914 = vsel %vm824, %v749, 0.0
  %v915 = vadd.f32 %v913, %v914
  %v916 = vsel %vm824, %v754, 0.0
  %v917 = vadd.f32 %v915, %v916
  %v918 = vsel %vm824, %v757, 0.0
  %v919 = vadd.f32 %v917, %v918
  %v920 = vsel %vm824, %v762, 0.0
  %v921 = vadd.f32 %v919, %v920
  %v922 = vsel %vm824, %v765, 0.0
  %v923 = vadd.f32 %v921, %v922
  %v924 = vsel %vm824, %v770, 0.0
  %v925 = vadd.f32 %v923, %v924
  %v926 = vsel %vm824, %v773, 0.0
  %v927 = vadd.f32 %v925, %v926
  %v928 = vsel %vm824, %v778, 0.0
  %v929 = vadd.f32 %v927, %v928
  %v930 = vsel %vm824, %v781, 0.0
  %v931 = vadd.f32 %v929, %v930
  %v932 = vsel %vm824, %v786, 0.0
  %v933 = vadd.f32 %v931, %v932
  %v934 = vsel %vm824, %v789, 0.0
  %v935 = vadd.f32 %v933, %v934
  %v936 = vsel %vm824, %v794, 0.0
  %v937 = vadd.f32 %v935, %v936
  %v938 = vsel %vm824, %v797, 0.0
  %v939 = vadd.f32 %v937, %v938
  %v940 = vsel %vm824, %v802, 0.0
  %v941 = vadd.f32 %v939, %v940
  %v942 = vsel %vm824, %v805, 0.0
  %v943 = vadd.f32 %v941, %v942
  %v944 = vsel %vm824, %v810, 0.0
  %v945 = vadd.f32 %v943, %v944
  %v946 = vsel %vm824, %v813, 0.0
  %v947 = vadd.f32 %v945, %v946
  %v948 = vsel %vm824, %v818, 0.0
  %v949 = vadd.f32 %v947, %v948
  %v950 = vsel %vm824, %v821, 0.0
  %v951 = vadd.f32 %v949, %v950
  %v952 = vrot.slane %v951, 4
  %v953 = vadd.f32 %v951, %v952
  %v954 = vrot.slane %v953, 2
  %v955 = vadd.f32 %v953, %v954
  %v956 = vrot.slane %v955, 1
  %v957 = vadd.f32 %v955, %v956
  %v958 = vmul.f32 %v570, %v570
  %v959 = vmul.f32 %v573, %v573
  %v960 = vmul.f32 %v578, %v578
  %v961 = vmul.f32 %v581, %v581
  %v962 = vmul.f32 %v586, %v586
  %v963 = vmul.f32 %v589, %v589
  %v964 = vmul.f32 %v594, %v594
  %v965 = vmul.f32 %v597, %v597
  %v966 = vmul.f32 %v602, %v602
  %v967 = vmul.f32 %v605, %v605
  %v968 = vmul.f32 %v610, %v610
  %v969 = vmul.f32 %v613, %v613
  %v970 = vmul.f32 %v618, %v618
  %v971 = vmul.f32 %v621, %v621
  %v972 = vmul.f32 %v626, %v626
  %v973 = vmul.f32 %v629, %v629
  %v974 = vmul.f32 %v634, %v634
  %v975 = vmul.f32 %v637, %v637
  %v976 = vmul.f32 %v642, %v642
  %v977 = vmul.f32 %v645, %v645
  %v978 = vmul.f32 %v650, %v650
  %v979 = vmul.f32 %v653, %v653
  %v980 = vmul.f32 %v658, %v658
  %v981 = vmul.f32 %v661, %v661
  %v982 = vmul.f32 %v666, %v666
  %v983 = vmul.f32 %v669, %v669
  %v984 = vmul.f32 %v674, %v674
  %v985 = vmul.f32 %v677, %v677
  %v986 = vmul.f32 %v682, %v682
  %v987 = vmul.f32 %v685, %v685
  %v988 = vmul.f32 %v690, %v690
  %v989 = vmul.f32 %v693, %v693
  %v990 = vmul.f32 %v698, %v698
  %v991 = vmul.f32 %v701, %v701
  %v992 = vmul.f32 %v706, %v706
  %v993 = vmul.f32 %v709, %v709
  %v994 = vmul.f32 %v714, %v714
  %v995 = vmul.f32 %v717, %v717
  %v996 = vmul.f32 %v722, %v722
  %v997 = vmul.f32 %v725, %v725
  %v998 = vmul.f32 %v730, %v730
  %v999 = vmul.f32 %v733, %v733
  %v1000 = vmul.f32 %v738, %v738
  %v1001 = vmul.f32 %v741, %v741
  %v1002 = vmul.f32 %v746, %v746
  %v1003 = vmul.f32 %v749, %v749
  %v1004 = vmul.f32 %v754, %v754
  %v1005 = vmul.f32 %v757, %v757
  %v1006 = vmul.f32 %v762, %v762
  %v1007 = vmul.f32 %v765, %v765
  %v1008 = vmul.f32 %v770, %v770
  %v1009 = vmul.f32 %v773, %v773
  %v1010 = vmul.f32 %v778, %v778
  %v1011 = vmul.f32 %v781, %v781
  %v1012 = vmul.f32 %v786, %v786
  %v1013 = vmul.f32 %v789, %v789
  %v1014 = vmul.f32 %v794, %v794
  %v1015 = vmul.f32 %v797, %v797
  %v1016 = vmul.f32 %v802, %v802
  %v1017 = vmul.f32 %v805, %v805
  %v1018 = vmul.f32 %v810, %v810
  %v1019 = vmul.f32 %v813, %v813
  %v1020 = vmul.f32 %v818, %v818
  %v1021 = vmul.f32 %v821, %v821
  %v1022 = vsel %vm824, %v958, 0.0
  %v1023 = vsel %vm824, %v959, 0.0
  %v1024 = vadd.f32 %v1022, %v1023
  %v1025 = vsel %vm824, %v960, 0.0
  %v1026 = vadd.f32 %v1024, %v1025
  %v1027 = vsel %vm824, %v961, 0.0
  %v1028 = vadd.f32 %v1026, %v1027
  %v1029 = vsel %vm824, %v962, 0.0
  %v1030 = vadd.f32 %v1028, %v1029
  %v1031 = vsel %vm824, %v963, 0.0
  %v1032 = vadd.f32 %v1030, %v1031
  %v1033 = vsel %vm824, %v964, 0.0
  %v1034 = vadd.f32 %v1032, %v1033
  %v1035 = vsel %vm824, %v965, 0.0
  %v1036 = vadd.f32 %v1034, %v1035
  %v1037 = vsel %vm824, %v966, 0.0
  %v1038 = vadd.f32 %v1036, %v1037
  %v1039 = vsel %vm824, %v967, 0.0
  %v1040 = vadd.f32 %v1038, %v1039
  %v1041 = vsel %vm824, %v968, 0.0
  %v1042 = vadd.f32 %v1040, %v1041
  %v1043 = vsel %vm824, %v969, 0.0
  %v1044 = vadd.f32 %v1042, %v1043
  %v1045 = vsel %vm824, %v970, 0.0
  %v1046 = vadd.f32 %v1044, %v1045
  %v1047 = vsel %vm824, %v971, 0.0
  %v1048 = vadd.f32 %v1046, %v1047
  %v1049 = vsel %vm824, %v972, 0.0
  %v1050 = vadd.f32 %v1048, %v1049
  %v1051 = vsel %vm824, %v973, 0.0
  %v1052 = vadd.f32 %v1050, %v1051
  %v1053 = vsel %vm824, %v974, 0.0
  %v1054 = vadd.f32 %v1052, %v1053
  %v1055 = vsel %vm824, %v975, 0.0
  %v1056 = vadd.f32 %v1054, %v1055
  %v1057 = vsel %vm824, %v976, 0.0
  %v1058 = vadd.f32 %v1056, %v1057
  %v1059 = vsel %vm824, %v977, 0.0
  %v1060 = vadd.f32 %v1058, %v1059
  %v1061 = vsel %vm824, %v978, 0.0
  %v1062 = vadd.f32 %v1060, %v1061
  %v1063 = vsel %vm824, %v979, 0.0
  %v1064 = vadd.f32 %v1062, %v1063
  %v1065 = vsel %vm824, %v980, 0.0
  %v1066 = vadd.f32 %v1064, %v1065
  %v1067 = vsel %vm824, %v981, 0.0
  %v1068 = vadd.f32 %v1066, %v1067
  %v1069 = vsel %vm824, %v982, 0.0
  %v1070 = vadd.f32 %v1068, %v1069
  %v1071 = vsel %vm824, %v983, 0.0
  %v1072 = vadd.f32 %v1070, %v1071
  %v1073 = vsel %vm824, %v984, 0.0
  %v1074 = vadd.f32 %v1072, %v1073
  %v1075 = vsel %vm824, %v985, 0.0
  %v1076 = vadd.f32 %v1074, %v1075
  %v1077 = vsel %vm824, %v986, 0.0
  %v1078 = vadd.f32 %v1076, %v1077
  %v1079 = vsel %vm824, %v987, 0.0
  %v1080 = vadd.f32 %v1078, %v1079
  %v1081 = vsel %vm824, %v988, 0.0
  %v1082 = vadd.f32 %v1080, %v1081
  %v1083 = vsel %vm824, %v989, 0.0
  %v1084 = vadd.f32 %v1082, %v1083
  %v1085 = vsel %vm824, %v990, 0.0
  %v1086 = vadd.f32 %v1084, %v1085
  %v1087 = vsel %vm824, %v991, 0.0
  %v1088 = vadd.f32 %v1086, %v1087
  %v1089 = vsel %vm824, %v992, 0.0
  %v1090 = vadd.f32 %v1088, %v1089
  %v1091 = vsel %vm824, %v993, 0.0
  %v1092 = vadd.f32 %v1090, %v1091
  %v1093 = vsel %vm824, %v994, 0.0
  %v1094 = vadd.f32 %v1092, %v1093
  %v1095 = vsel %vm824, %v995, 0.0
  %v1096 = vadd.f32 %v1094, %v1095
  %v1097 = vsel %vm824, %v996, 0.0
  %v1098 = vadd.f32 %v1096, %v1097
  %v1099 = vsel %vm824, %v997, 0.0
  %v1100 = vadd.f32 %v1098, %v1099
  %v1101 = vsel %vm824, %v998, 0.0
  %v1102 = vadd.f32 %v1100, %v1101
  %v1103 = vsel %vm824, %v999, 0.0
  %v1104 = vadd.f32 %v1102, %v1103
  %v1105 = vsel %vm824, %v1000, 0.0
  %v1106 = vadd.f32 %v1104, %v1105
  %v1107 = vsel %vm824, %v1001, 0.0
  %v1108 = vadd.f32 %v1106, %v1107
  %v1109 = vsel %vm824, %v1002, 0.0
  %v1110 = vadd.f32 %v1108, %v1109
  %v1111 = vsel %vm824, %v1003, 0.0
  %v1112 = vadd.f32 %v1110, %v1111
  %v1113 = vsel %vm824, %v1004, 0.0
  %v1114 = vadd.f32 %v1112, %v1113
  %v1115 = vsel %vm824, %v1005, 0.0
  %v1116 = vadd.f32 %v1114, %v1115
  %v1117 = vsel %vm824, %v1006, 0.0
  %v1118 = vadd.f32 %v1116, %v1117
  %v1119 = vsel %vm824, %v1007, 0.0
  %v1120 = vadd.f32 %v1118, %v1119
  %v1121 = vsel %vm824, %v1008, 0.0
  %v1122 = vadd.f32 %v1120, %v1121
  %v1123 = vsel %vm824, %v1009, 0.0
  %v1124 = vadd.f32 %v1122, %v1123
  %v1125 = vsel %vm824, %v1010, 0.0
  %v1126 = vadd.f32 %v1124, %v1125
  %v1127 = vsel %vm824, %v1011, 0.0
  %v1128 = vadd.f32 %v1126, %v1127
  %v1129 = vsel %vm824, %v1012, 0.0
  %v1130 = vadd.f32 %v1128, %v1129
  %v1131 = vsel %vm824, %v1013, 0.0
  %v1132 = vadd.f32 %v1130, %v1131
  %v1133 = vsel %vm824, %v1014, 0.0
  %v1134 = vadd.f32 %v1132, %v1133
  %v1135 = vsel %vm824, %v1015, 0.0
  %v1136 = vadd.f32 %v1134, %v1135
  %v1137 = vsel %vm824, %v1016, 0.0
  %v1138 = vadd.f32 %v1136, %v1137
  %v1139 = vsel %vm824, %v1017, 0.0
  %v1140 = vadd.f32 %v1138, %v1139
  %v1141 = vsel %vm824, %v1018, 0.0
  %v1142 = vadd.f32 %v1140, %v1141
  %v1143 = vsel %vm824, %v1019, 0.0
  %v1144 = vadd.f32 %v1142, %v1143
  %v1145 = vsel %vm824, %v1020, 0.0
  %v1146 = vadd.f32 %v1144, %v1145
  %v1147 = vsel %vm824, %v1021, 0.0
  %v1148 = vadd.f32 %v1146, %v1147
  %v1149 = vrot.slane %v1148, 4
  %v1150 = vadd.f32 %v1148, %v1149
  %v1151 = vrot.slane %v1150, 2
  %v1152 = vadd.f32 %v1150, %v1151
  %v1153 = vrot.slane %v1152, 1
  %v1154 = vadd.f32 %v1152, %v1153
  %vm1155 = vcmask 1040384
  %v1156 = vsel %vm1155, %v957, %v1154
  %vm1157 = vcmask 254976
  %1158 = vst.msk [vmem:[%s3] sm:$0x3] %vm1157, %v1156
  %1159 = vst.msk [vmem:[%s2] sm:$0xff] %vm824, %v570
  %1160 = vst.msk [vmem:[%s2 + $0x8] sm:$0xff] %vm824, %v573
  %1161 = vst.msk [vmem:[%s2 + $0x10] sm:$0xff] %vm824, %v578
  %1162 = vst.msk [vmem:[%s2 + $0x18] sm:$0xff] %vm824, %v581
  %1163 = vst.msk [vmem:[%s2 + $0x20] sm:$0xff] %vm824, %v586
  %1164 = vst.msk [vmem:[%s2 + $0x28] sm:$0xff] %vm824, %v589
  %1165 = vst.msk [vmem:[%s2 + $0x30] sm:$0xff] %vm824, %v594
  %1166 = vst.msk [vmem:[%s2 + $0x38] sm:$0xff] %vm824, %v597
  %1167 = vst.msk [vmem:[%s2 + $0x40] sm:$0xff] %vm824, %v602
  %1168 = vst.msk [vmem:[%s2 + $0x48] sm:$0xff] %vm824, %v605
  %1169 = vst.msk [vmem:[%s2 + $0x50] sm:$0xff] %vm824, %v610
  %1170 = vst.msk [vmem:[%s2 + $0x58] sm:$0xff] %vm824, %v613
  %1171 = vst.msk [vmem:[%s2 + $0x60] sm:$0xff] %vm824, %v618
  %1172 = vst.msk [vmem:[%s2 + $0x68] sm:$0xff] %vm824, %v621
  %1173 = vst.msk [vmem:[%s2 + $0x70] sm:$0xff] %vm824, %v626
  %1174 = vst.msk [vmem:[%s2 + $0x78] sm:$0xff] %vm824, %v629
  %1175 = vst.msk [vmem:[%s2 + $0x80] sm:$0xff] %vm824, %v634
  %1176 = vst.msk [vmem:[%s2 + $0x88] sm:$0xff] %vm824, %v637
  %1177 = vst.msk [vmem:[%s2 + $0x90] sm:$0xff] %vm824, %v642
  %1178 = vst.msk [vmem:[%s2 + $0x98] sm:$0xff] %vm824, %v645
  %1179 = vst.msk [vmem:[%s2 + $0xa0] sm:$0xff] %vm824, %v650
  %1180 = vst.msk [vmem:[%s2 + $0xa8] sm:$0xff] %vm824, %v653
  %1181 = vst.msk [vmem:[%s2 + $0xb0] sm:$0xff] %vm824, %v658
  %1182 = vst.msk [vmem:[%s2 + $0xb8] sm:$0xff] %vm824, %v661
  %1183 = vst.msk [vmem:[%s2 + $0xc0] sm:$0xff] %vm824, %v666
  %1184 = vst.msk [vmem:[%s2 + $0xc8] sm:$0xff] %vm824, %v669
  %1185 = vst.msk [vmem:[%s2 + $0xd0] sm:$0xff] %vm824, %v674
  %1186 = vst.msk [vmem:[%s2 + $0xd8] sm:$0xff] %vm824, %v677
  %1187 = vst.msk [vmem:[%s2 + $0xe0] sm:$0xff] %vm824, %v682
  %1188 = vst.msk [vmem:[%s2 + $0xe8] sm:$0xff] %vm824, %v685
  %1189 = vst.msk [vmem:[%s2 + $0xf0] sm:$0xff] %vm824, %v690
  %1190 = vst.msk [vmem:[%s2 + $0xf8] sm:$0xff] %vm824, %v693
  %1191 = vst.msk [vmem:[%s2 + $0x100] sm:$0xff] %vm824, %v698
  %1192 = vst.msk [vmem:[%s2 + $0x108] sm:$0xff] %vm824, %v701
  %1193 = vst.msk [vmem:[%s2 + $0x110] sm:$0xff] %vm824, %v706
  %1194 = vst.msk [vmem:[%s2 + $0x118] sm:$0xff] %vm824, %v709
  %1195 = vst.msk [vmem:[%s2 + $0x120] sm:$0xff] %vm824, %v714
  %1196 = vst.msk [vmem:[%s2 + $0x128] sm:$0xff] %vm824, %v717
  %1197 = vst.msk [vmem:[%s2 + $0x130] sm:$0xff] %vm824, %v722
  %1198 = vst.msk [vmem:[%s2 + $0x138] sm:$0xff] %vm824, %v725
  %1199 = vst.msk [vmem:[%s2 + $0x140] sm:$0xff] %vm824, %v730
  %1200 = vst.msk [vmem:[%s2 + $0x148] sm:$0xff] %vm824, %v733
  %1201 = vst.msk [vmem:[%s2 + $0x150] sm:$0xff] %vm824, %v738
  %1202 = vst.msk [vmem:[%s2 + $0x158] sm:$0xff] %vm824, %v741
  %1203 = vst.msk [vmem:[%s2 + $0x160] sm:$0xff] %vm824, %v746
  %1204 = vst.msk [vmem:[%s2 + $0x168] sm:$0xff] %vm824, %v749
  %1205 = vst.msk [vmem:[%s2 + $0x170] sm:$0xff] %vm824, %v754
  %1206 = vst.msk [vmem:[%s2 + $0x178] sm:$0xff] %vm824, %v757
  %1207 = vst.msk [vmem:[%s2 + $0x180] sm:$0xff] %vm824, %v762
  %1208 = vst.msk [vmem:[%s2 + $0x188] sm:$0xff] %vm824, %v765
  %1209 = vst.msk [vmem:[%s2 + $0x190] sm:$0xff] %vm824, %v770
  %1210 = vst.msk [vmem:[%s2 + $0x198] sm:$0xff] %vm824, %v773
  %1211 = vst.msk [vmem:[%s2 + $0x1a0] sm:$0xff] %vm824, %v778
  %1212 = vst.msk [vmem:[%s2 + $0x1a8] sm:$0xff] %vm824, %v781
  %1213 = vst.msk [vmem:[%s2 + $0x1b0] sm:$0xff] %vm824, %v786
  %1214 = vst.msk [vmem:[%s2 + $0x1b8] sm:$0xff] %vm824, %v789
  %1215 = vst.msk [vmem:[%s2 + $0x1c0] sm:$0xff] %vm824, %v794
  %1216 = vst.msk [vmem:[%s2 + $0x1c8] sm:$0xff] %vm824, %v797
  %1217 = vst.msk [vmem:[%s2 + $0x1d0] sm:$0xff] %vm824, %v802
  %1218 = vst.msk [vmem:[%s2 + $0x1d8] sm:$0xff] %vm824, %v805
  %1219 = vst.msk [vmem:[%s2 + $0x1e0] sm:$0xff] %vm824, %v810
  %1220 = vst.msk [vmem:[%s2 + $0x1e8] sm:$0xff] %vm824, %v813
  %1221 = vst.msk [vmem:[%s2 + $0x1f0] sm:$0xff] %vm824, %v818
  %1222 = vst.msk [vmem:[%s2 + $0x1f8] sm:$0xff] %vm824, %v821
  // Predicated region
  $region10: #{generator_forward.15} parent=0 // pred_check
    _
  $region11: #{generator_forward.15} parent=0 // pred_check_branch
    %1224 = sbr.rel (0) target = $region13
  $region12: #{generator_forward.15} parent=0 // pred_region
    _
  $region13: #{generator_forward.15} parent=0 // pred_fallthru
    _
  // Predicated region
  $region14: #{generator_forward.15} parent=0 // pred_check
    _
  $region15: #{generator_forward.15} parent=0 // pred_check_branch
    %1226 = sbr.rel (0) target = $region17
  $region16: #{generator_forward.15} parent=0 // pred_region
    _
  $region17: #{generator_forward.15} parent=0 // pred_fallthru
    _
  // Predicated region
  $region18: #{generator_forward.15} parent=0 // pred_check
    _
  $region19: #{generator_forward.15} parent=0 // pred_check_branch
    %1228 = sbr.rel (0) target = $region21
  $region20: #{generator_forward.15} parent=0 // pred_region
    _
  $region21: #{generator_forward.15} parent=0 // pred_fallthru
    _
  // Predicated region
  $region22: #{generator_forward.15} parent=0 // pred_check
    _
  $region23: #{generator_forward.15} parent=0 // pred_check_branch
    %1230 = sbr.rel (0) target = $region25
  $region24: #{generator_forward.15} parent=0 // pred_region
    _
  $region25: #{generator_forward.15} parent=0 // pred_fallthru
    _

// kernel: generator_forward.16
$region0: #{generator_forward.16}
  #allocation0 [shape = 'u32[]', space=smem, size = 0x4, offset = 0x4, fixed_abs, tag = 'smem constant byte address 0x4 - core index']
  #allocation1 [shape = 'u32[144,128]{1,0:T(1,128)}', space=vmem, size = 0x12000, scoped, tag = 'internal scratch']
  %s0 = inlined_call_operand.vmem [shape: f32[512,32], index: 0, kind: input, shape index: {}]
  %s1 = inlined_call_operand.vmem [shape: f32[1,32], index: 1, kind: input, shape index: {}]
  %s2 = inlined_call_operand.vmem [shape: f32[1,32], index: 2, kind: input, shape index: {}]
  %s3 = inlined_call_operand.vmem [shape: bf16[512,32], index: 3, kind: output, shape index: {}]
  %s4 = sld [smem:[#allocation0]]
  $region22: #{generator_forward.16} parent=0
    _
  %s6 = ssub.s32 1, %s4
  %s7 = scalar_select 0, %s6, %s4
  // Predicated region
  $region2: #{generator_forward.16} parent=0 // pred_check
    _
  $region3: #{generator_forward.16} parent=0 // pred_check_branch
    %9 = sbr.rel (0) target = $region5
  $region4: #{generator_forward.16} parent=0 // pred_region
    _
  $region5: #{generator_forward.16} parent=0 // pred_fallthru
    _
  // Predicated region
  $region6: #{generator_forward.16} parent=0 // pred_check
    _
  $region7: #{generator_forward.16} parent=0 // pred_check_branch
    %11 = sbr.rel (0) target = $region9
  $region8: #{generator_forward.16} parent=0 // pred_region
    _
  $region9: #{generator_forward.16} parent=0 // pred_fallthru
    _
  // Predicated region
  $region10: #{generator_forward.16} parent=0 // pred_check
    _
  $region11: #{generator_forward.16} parent=0 // pred_check_branch
    %13 = sbr.rel (0) target = $region13
  $region12: #{generator_forward.16} parent=0 // pred_region
    _
  $region13: #{generator_forward.16} parent=0 // pred_fallthru
    _
  %v14 = vld [vmem:[%s0] sm:$0xff]
  %v15 = vld [vmem:[%s0 + $0x8] sm:$0xff]
  %v16 = vld [vmem:[%s0 + $0x10] sm:$0xff]
  %v17 = vld [vmem:[%s0 + $0x18] sm:$0xff]
  %v18 = vld [vmem:[%s0 + $0x20] sm:$0xff]
  %v19 = vld [vmem:[%s0 + $0x28] sm:$0xff]
  %v20 = vld [vmem:[%s0 + $0x30] sm:$0xff]
  %v21 = vld [vmem:[%s0 + $0x38] sm:$0xff]
  %v22 = vld [vmem:[%s0 + $0x40] sm:$0xff]
  %v23 = vld [vmem:[%s0 + $0x48] sm:$0xff]
  %v24 = vld [vmem:[%s0 + $0x50] sm:$0xff]
  %v25 = vld [vmem:[%s0 + $0x58] sm:$0xff]
  %v26 = vld [vmem:[%s0 + $0x60] sm:$0xff]
  %v27 = vld [vmem:[%s0 + $0x68] sm:$0xff]
  %v28 = vld [vmem:[%s0 + $0x70] sm:$0xff]
  %v29 = vld [vmem:[%s0 + $0x78] sm:$0xff]
  %v30 = vld [vmem:[%s0 + $0x80] sm:$0xff]
  %v31 = vld [vmem:[%s0 + $0x88] sm:$0xff]
  %v32 = vld [vmem:[%s0 + $0x90] sm:$0xff]
  %v33 = vld [vmem:[%s0 + $0x98] sm:$0xff]
  %v34 = vld [vmem:[%s0 + $0xa0] sm:$0xff]
  %v35 = vld [vmem:[%s0 + $0xa8] sm:$0xff]
  %v36 = vld [vmem:[%s0 + $0xb0] sm:$0xff]
  %v37 = vld [vmem:[%s0 + $0xb8] sm:$0xff]
  %v38 = vld [vmem:[%s0 + $0xc0] sm:$0xff]
  %v39 = vld [vmem:[%s0 + $0xc8] sm:$0xff]
  %v40 = vld [vmem:[%s0 + $0xd0] sm:$0xff]
  %v41 = vld [vmem:[%s0 + $0xd8] sm:$0xff]
  %v42 = vld [vmem:[%s0 + $0xe0] sm:$0xff]
  %v43 = vld [vmem:[%s0 + $0xe8] sm:$0xff]
  %v44 = vld [vmem:[%s0 + $0xf0] sm:$0xff]
  %v45 = vld [vmem:[%s0 + $0xf8] sm:$0xff]
  %v46 = vld [vmem:[%s0 + $0x100] sm:$0xff]
  %v47 = vld [vmem:[%s0 + $0x108] sm:$0xff]
  %v48 = vld [vmem:[%s0 + $0x110] sm:$0xff]
  %v49 = vld [vmem:[%s0 + $0x118] sm:$0xff]
  %v50 = vld [vmem:[%s0 + $0x120] sm:$0xff]
  %v51 = vld [vmem:[%s0 + $0x128] sm:$0xff]
  %v52 = vld [vmem:[%s0 + $0x130] sm:$0xff]
  %v53 = vld [vmem:[%s0 + $0x138] sm:$0xff]
  %v54 = vld [vmem:[%s0 + $0x140] sm:$0xff]
  %v55 = vld [vmem:[%s0 + $0x148] sm:$0xff]
  %v56 = vld [vmem:[%s0 + $0x150] sm:$0xff]
  %v57 = vld [vmem:[%s0 + $0x158] sm:$0xff]
  %v58 = vld [vmem:[%s0 + $0x160] sm:$0xff]
  %v59 = vld [vmem:[%s0 + $0x168] sm:$0xff]
  %v60 = vld [vmem:[%s0 + $0x170] sm:$0xff]
  %v61 = vld [vmem:[%s0 + $0x178] sm:$0xff]
  %v62 = vld [vmem:[%s0 + $0x180] sm:$0xff]
  %v63 = vld [vmem:[%s0 + $0x188] sm:$0xff]
  %v64 = vld [vmem:[%s0 + $0x190] sm:$0xff]
  %v65 = vld [vmem:[%s0 + $0x198] sm:$0xff]
  %v66 = vld [vmem:[%s0 + $0x1a0] sm:$0xff]
  %v67 = vld [vmem:[%s0 + $0x1a8] sm:$0xff]
  %v68 = vld [vmem:[%s0 + $0x1b0] sm:$0xff]
  %v69 = vld [vmem:[%s0 + $0x1b8] sm:$0xff]
  %v70 = vld [vmem:[%s0 + $0x1c0] sm:$0xff]
  %v71 = vld [vmem:[%s0 + $0x1c8] sm:$0xff]
  %v72 = vld [vmem:[%s0 + $0x1d0] sm:$0xff]
  %v73 = vld [vmem:[%s0 + $0x1d8] sm:$0xff]
  %v74 = vld [vmem:[%s0 + $0x1e0] sm:$0xff]
  %v75 = vld [vmem:[%s0 + $0x1e8] sm:$0xff]
  %v76 = vld [vmem:[%s0 + $0x1f0] sm:$0xff]
  %v77 = vld [vmem:[%s0 + $0x1f8] sm:$0xff]
  %v78 = vld [vmem:[%s1] sm:$0x1]
  %v80 = vlaneseq
  %v81 = vshrl.u32 %v80, 7
  %v82 = vsub.s32 0, %v81
  %v83 = vrot.slane %v78, %v82
  %v85 = vmul.f32 %v14, %v83
  %v86 = vmul.f32 %v15, %v83
  %v87 = vmul.f32 %v16, %v83
  %v88 = vmul.f32 %v17, %v83
  %v89 = vmul.f32 %v18, %v83
  %v90 = vmul.f32 %v19, %v83
  %v91 = vmul.f32 %v20, %v83
  %v92 = vmul.f32 %v21, %v83
  %v93 = vmul.f32 %v22, %v83
  %v94 = vmul.f32 %v23, %v83
  %v95 = vmul.f32 %v24, %v83
  %v96 = vmul.f32 %v25, %v83
  %v97 = vmul.f32 %v26, %v83
  %v98 = vmul.f32 %v27, %v83
  %v99 = vmul.f32 %v28, %v83
  %v100 = vmul.f32 %v29, %v83
  %v101 = vmul.f32 %v30, %v83
  %v102 = vmul.f32 %v31, %v83
  %v103 = vmul.f32 %v32, %v83
  %v104 = vmul.f32 %v33, %v83
  %v105 = vmul.f32 %v34, %v83
  %v106 = vmul.f32 %v35, %v83
  %v107 = vmul.f32 %v36, %v83
  %v108 = vmul.f32 %v37, %v83
  %v109 = vmul.f32 %v38, %v83
  %v110 = vmul.f32 %v39, %v83
  %v111 = vmul.f32 %v40, %v83
  %v112 = vmul.f32 %v41, %v83
  %v113 = vmul.f32 %v42, %v83
  %v114 = vmul.f32 %v43, %v83
  %v115 = vmul.f32 %v44, %v83
  %v116 = vmul.f32 %v45, %v83
  %v117 = vmul.f32 %v46, %v83
  %v118 = vmul.f32 %v47, %v83
  %v119 = vmul.f32 %v48, %v83
  %v120 = vmul.f32 %v49, %v83
  %v121 = vmul.f32 %v50, %v83
  %v122 = vmul.f32 %v51, %v83
  %v123 = vmul.f32 %v52, %v83
  %v124 = vmul.f32 %v53, %v83
  %v125 = vmul.f32 %v54, %v83
  %v126 = vmul.f32 %v55, %v83
  %v127 = vmul.f32 %v56, %v83
  %v128 = vmul.f32 %v57, %v83
  %v129 = vmul.f32 %v58, %v83
  %v130 = vmul.f32 %v59, %v83
  %v131 = vmul.f32 %v60, %v83
  %v132 = vmul.f32 %v61, %v83
  %v133 = vmul.f32 %v62, %v83
  %v134 = vmul.f32 %v63, %v83
  %v135 = vmul.f32 %v64, %v83
  %v136 = vmul.f32 %v65, %v83
  %v137 = vmul.f32 %v66, %v83
  %v138 = vmul.f32 %v67, %v83
  %v139 = vmul.f32 %v68, %v83
  %v140 = vmul.f32 %v69, %v83
  %v141 = vmul.f32 %v70, %v83
  %v142 = vmul.f32 %v71, %v83
  %v143 = vmul.f32 %v72, %v83
  %v144 = vmul.f32 %v73, %v83
  %v145 = vmul.f32 %v74, %v83
  %v146 = vmul.f32 %v75, %v83
  %v147 = vmul.f32 %v76, %v83
  %v148 = vmul.f32 %v77, %v83
  %v149 = vld [vmem:[%s2] sm:$0x1]
  %v151 = vlaneseq
  %v152 = vshrl.u32 %v151, 7
  %v153 = vsub.s32 0, %v152
  %v154 = vrot.slane %v149, %v153
  %v156 = vadd.f32 %v85, %v154
  %v157 = vadd.f32 %v86, %v154
  %v158 = vadd.f32 %v87, %v154
  %v159 = vadd.f32 %v88, %v154
  %v160 = vadd.f32 %v89, %v154
  %v161 = vadd.f32 %v90, %v154
  %v162 = vadd.f32 %v91, %v154
  %v163 = vadd.f32 %v92, %v154
  %v164 = vadd.f32 %v93, %v154
  %v165 = vadd.f32 %v94, %v154
  %v166 = vadd.f32 %v95, %v154
  %v167 = vadd.f32 %v96, %v154
  %v168 = vadd.f32 %v97, %v154
  %v169 = vadd.f32 %v98, %v154
  %v170 = vadd.f32 %v99, %v154
  %v171 = vadd.f32 %v100, %v154
  %v172 = vadd.f32 %v101, %v154
  %v173 = vadd.f32 %v102, %v154
  %v174 = vadd.f32 %v103, %v154
  %v175 = vadd.f32 %v104, %v154
  %v176 = vadd.f32 %v105, %v154
  %v177 = vadd.f32 %v106, %v154
  %v178 = vadd.f32 %v107, %v154
  %v179 = vadd.f32 %v108, %v154
  %v180 = vadd.f32 %v109, %v154
  %v181 = vadd.f32 %v110, %v154
  %v182 = vadd.f32 %v111, %v154
  %v183 = vadd.f32 %v112, %v154
  %v184 = vadd.f32 %v113, %v154
  %v185 = vadd.f32 %v114, %v154
  %v186 = vadd.f32 %v115, %v154
  %v187 = vadd.f32 %v116, %v154
  %v188 = vadd.f32 %v117, %v154
  %v189 = vadd.f32 %v118, %v154
  %v190 = vadd.f32 %v119, %v154
  %v191 = vadd.f32 %v120, %v154
  %v192 = vadd.f32 %v121, %v154
  %v193 = vadd.f32 %v122, %v154
  %v194 = vadd.f32 %v123, %v154
  %v195 = vadd.f32 %v124, %v154
  %v196 = vadd.f32 %v125, %v154
  %v197 = vadd.f32 %v126, %v154
  %v198 = vadd.f32 %v127, %v154
  %v199 = vadd.f32 %v128, %v154
  %v200 = vadd.f32 %v129, %v154
  %v201 = vadd.f32 %v130, %v154
  %v202 = vadd.f32 %v131, %v154
  %v203 = vadd.f32 %v132, %v154
  %v204 = vadd.f32 %v133, %v154
  %v205 = vadd.f32 %v134, %v154
  %v206 = vadd.f32 %v135, %v154
  %v207 = vadd.f32 %v136, %v154
  %v208 = vadd.f32 %v137, %v154
  %v209 = vadd.f32 %v138, %v154
  %v210 = vadd.f32 %v139, %v154
  %v211 = vadd.f32 %v140, %v154
  %v212 = vadd.f32 %v141, %v154
  %v213 = vadd.f32 %v142, %v154
  %v214 = vadd.f32 %v143, %v154
  %v215 = vadd.f32 %v144, %v154
  %v216 = vadd.f32 %v145, %v154
  %v217 = vadd.f32 %v146, %v154
  %v218 = vadd.f32 %v147, %v154
  %v219 = vadd.f32 %v148, %v154
  %v220 = vmax.f32 %v156, 0.0
  %v221 = vmax.f32 %v157, 0.0
  %v222 = vmax.f32 %v158, 0.0
  %v223 = vmax.f32 %v159, 0.0
  %v224 = vmax.f32 %v160, 0.0
  %v225 = vmax.f32 %v161, 0.0
  %v226 = vmax.f32 %v162, 0.0
  %v227 = vmax.f32 %v163, 0.0
  %v228 = vmax.f32 %v164, 0.0
  %v229 = vmax.f32 %v165, 0.0
  %v230 = vmax.f32 %v166, 0.0
  %v231 = vmax.f32 %v167, 0.0
  %v232 = vmax.f32 %v168, 0.0
  %v233 = vmax.f32 %v169, 0.0
  %v234 = vmax.f32 %v170, 0.0
  %v235 = vmax.f32 %v171, 0.0
  %v236 = vmax.f32 %v172, 0.0
  %v237 = vmax.f32 %v173, 0.0
  %v238 = vmax.f32 %v174, 0.0
  %v239 = vmax.f32 %v175, 0.0
  %v240 = vmax.f32 %v176, 0.0
  %v241 = vmax.f32 %v177, 0.0
  %v242 = vmax.f32 %v178, 0.0
  %v243 = vmax.f32 %v179, 0.0
  %v244 = vmax.f32 %v180, 0.0
  %v245 = vmax.f32 %v181, 0.0
  %v246 = vmax.f32 %v182, 0.0
  %v247 = vmax.f32 %v183, 0.0
  %v248 = vmax.f32 %v184, 0.0
  %v249 = vmax.f32 %v185, 0.0
  %v250 = vmax.f32 %v186, 0.0
  %v251 = vmax.f32 %v187, 0.0
  %v252 = vmax.f32 %v188, 0.0
  %v253 = vmax.f32 %v189, 0.0
  %v254 = vmax.f32 %v190, 0.0
  %v255 = vmax.f32 %v191, 0.0
  %v256 = vmax.f32 %v192, 0.0
  %v257 = vmax.f32 %v193, 0.0
  %v258 = vmax.f32 %v194, 0.0
  %v259 = vmax.f32 %v195, 0.0
  %v260 = vmax.f32 %v196, 0.0
  %v261 = vmax.f32 %v197, 0.0
  %v262 = vmax.f32 %v198, 0.0
  %v263 = vmax.f32 %v199, 0.0
  %v264 = vmax.f32 %v200, 0.0
  %v265 = vmax.f32 %v201, 0.0
  %v266 = vmax.f32 %v202, 0.0
  %v267 = vmax.f32 %v203, 0.0
  %v268 = vmax.f32 %v204, 0.0
  %v269 = vmax.f32 %v205, 0.0
  %v270 = vmax.f32 %v206, 0.0
  %v271 = vmax.f32 %v207, 0.0
  %v272 = vmax.f32 %v208, 0.0
  %v273 = vmax.f32 %v209, 0.0
  %v274 = vmax.f32 %v210, 0.0
  %v275 = vmax.f32 %v211, 0.0
  %v276 = vmax.f32 %v212, 0.0
  %v277 = vmax.f32 %v213, 0.0
  %v278 = vmax.f32 %v214, 0.0
  %v279 = vmax.f32 %v215, 0.0
  %v280 = vmax.f32 %v216, 0.0
  %v281 = vmax.f32 %v217, 0.0
  %v282 = vmax.f32 %v218, 0.0
  %v283 = vmax.f32 %v219, 0.0
  %v284 = vpack.c.bf16 %v221, %v220
  %v285 = vpack.c.bf16 %v223, %v222
  %v286 = vpack.c.bf16 %v225, %v224
  %v287 = vpack.c.bf16 %v227, %v226
  %v288 = vpack.c.bf16 %v229, %v228
  %v289 = vpack.c.bf16 %v231, %v230
  %v290 = vpack.c.bf16 %v233, %v232
  %v291 = vpack.c.bf16 %v235, %v234
  %v292 = vpack.c.bf16 %v237, %v236
  %v293 = vpack.c.bf16 %v239, %v238
  %v294 = vpack.c.bf16 %v241, %v240
  %v295 = vpack.c.bf16 %v243, %v242
  %v296 = vpack.c.bf16 %v245, %v244
  %v297 = vpack.c.bf16 %v247, %v246
  %v298 = vpack.c.bf16 %v249, %v248
  %v299 = vpack.c.bf16 %v251, %v250
  %v300 = vpack.c.bf16 %v253, %v252
  %v301 = vpack.c.bf16 %v255, %v254
  %v302 = vpack.c.bf16 %v257, %v256
  %v303 = vpack.c.bf16 %v259, %v258
  %v304 = vpack.c.bf16 %v261, %v260
  %v305 = vpack.c.bf16 %v263, %v262
  %v306 = vpack.c.bf16 %v265, %v264
  %v307 = vpack.c.bf16 %v267, %v266
  %v308 = vpack.c.bf16 %v269, %v268
  %v309 = vpack.c.bf16 %v271, %v270
  %v310 = vpack.c.bf16 %v273, %v272
  %v311 = vpack.c.bf16 %v275, %v274
  %v312 = vpack.c.bf16 %v277, %v276
  %v313 = vpack.c.bf16 %v279, %v278
  %v314 = vpack.c.bf16 %v281, %v280
  %v315 = vpack.c.bf16 %v283, %v282
  %v348 = vunpack.c.l.b16 %v284
  %v349 = vunpack.c.h.b16 %v284
  %v350 = vunpack.c.l.b16 %v285
  %v351 = vunpack.c.h.b16 %v285
  %v352 = vunpack.c.l.b16 %v286
  %v353 = vunpack.c.h.b16 %v286
  %v354 = vunpack.c.l.b16 %v287
  %v355 = vunpack.c.h.b16 %v287
  %v356 = vunpack.c.l.b16 %v288
  %v357 = vunpack.c.h.b16 %v288
  %v358 = vunpack.c.l.b16 %v289
  %v359 = vunpack.c.h.b16 %v289
  %v360 = vunpack.c.l.b16 %v290
  %v361 = vunpack.c.h.b16 %v290
  %v362 = vunpack.c.l.b16 %v291
  %v363 = vunpack.c.h.b16 %v291
  %v364 = vunpack.c.l.b16 %v292
  %v365 = vunpack.c.h.b16 %v292
  %v366 = vunpack.c.l.b16 %v293
  %v367 = vunpack.c.h.b16 %v293
  %v368 = vunpack.c.l.b16 %v294
  %v369 = vunpack.c.h.b16 %v294
  %v370 = vunpack.c.l.b16 %v295
  %v371 = vunpack.c.h.b16 %v295
  %v372 = vunpack.c.l.b16 %v296
  %v373 = vunpack.c.h.b16 %v296
  %v374 = vunpack.c.l.b16 %v297
  %v375 = vunpack.c.h.b16 %v297
  %v376 = vunpack.c.l.b16 %v298
  %v377 = vunpack.c.h.b16 %v298
  %v378 = vunpack.c.l.b16 %v299
  %v379 = vunpack.c.h.b16 %v299
  %v380 = vunpack.c.l.b16 %v300
  %v381 = vunpack.c.h.b16 %v300
  %v382 = vunpack.c.l.b16 %v301
  %v383 = vunpack.c.h.b16 %v301
  %v384 = vunpack.c.l.b16 %v302
  %v385 = vunpack.c.h.b16 %v302
  %v386 = vunpack.c.l.b16 %v303
  %v387 = vunpack.c.h.b16 %v303
  %v388 = vunpack.c.l.b16 %v304
  %v389 = vunpack.c.h.b16 %v304
  %v390 = vunpack.c.l.b16 %v305
  %v391 = vunpack.c.h.b16 %v305
  %v392 = vunpack.c.l.b16 %v306
  %v393 = vunpack.c.h.b16 %v306
  %v394 = vunpack.c.l.b16 %v307
  %v395 = vunpack.c.h.b16 %v307
  %v396 = vunpack.c.l.b16 %v308
  %v397 = vunpack.c.h.b16 %v308
  %v398 = vunpack.c.l.b16 %v309
  %v399 = vunpack.c.h.b16 %v309
  %v400 = vunpack.c.l.b16 %v310
  %v401 = vunpack.c.h.b16 %v310
  %v402 = vunpack.c.l.b16 %v311
  %v403 = vunpack.c.h.b16 %v311
  %v404 = vunpack.c.l.b16 %v312
  %v405 = vunpack.c.h.b16 %v312
  %v406 = vunpack.c.l.b16 %v313
  %v407 = vunpack.c.h.b16 %v313
  %v408 = vunpack.c.l.b16 %v314
  %v409 = vunpack.c.h.b16 %v314
  %v410 = vunpack.c.l.b16 %v315
  %v411 = vunpack.c.h.b16 %v315
  %v412 = vpack.c.b16 %v348, %v348
  %v413 = vpack.c.b16 %v349, %v349
  %v414 = vpack.c.b16 %v350, %v350
  %v415 = vpack.c.b16 %v351, %v351
  %v416 = vpack.c.b16 %v352, %v352
  %v417 = vpack.c.b16 %v353, %v353
  %v418 = vpack.c.b16 %v354, %v354
  %v419 = vpack.c.b16 %v355, %v355
  %v420 = vpack.c.b16 %v356, %v356
  %v421 = vpack.c.b16 %v357, %v357
  %v422 = vpack.c.b16 %v358, %v358
  %v423 = vpack.c.b16 %v359, %v359
  %v424 = vpack.c.b16 %v360, %v360
  %v425 = vpack.c.b16 %v361, %v361
  %v426 = vpack.c.b16 %v362, %v362
  %v427 = vpack.c.b16 %v363, %v363
  %v428 = vpack.c.b16 %v364, %v364
  %v429 = vpack.c.b16 %v365, %v365
  %v430 = vpack.c.b16 %v366, %v366
  %v431 = vpack.c.b16 %v367, %v367
  %v432 = vpack.c.b16 %v368, %v368
  %v433 = vpack.c.b16 %v369, %v369
  %v434 = vpack.c.b16 %v370, %v370
  %v435 = vpack.c.b16 %v371, %v371
  %v436 = vpack.c.b16 %v372, %v372
  %v437 = vpack.c.b16 %v373, %v373
  %v438 = vpack.c.b16 %v374, %v374
  %v439 = vpack.c.b16 %v375, %v375
  %v440 = vpack.c.b16 %v376, %v376
  %v441 = vpack.c.b16 %v377, %v377
  %v442 = vpack.c.b16 %v378, %v378
  %v443 = vpack.c.b16 %v379, %v379
  %v444 = vpack.c.b16 %v380, %v380
  %v445 = vpack.c.b16 %v381, %v381
  %v446 = vpack.c.b16 %v382, %v382
  %v447 = vpack.c.b16 %v383, %v383
  %v448 = vpack.c.b16 %v384, %v384
  %v449 = vpack.c.b16 %v385, %v385
  %v450 = vpack.c.b16 %v386, %v386
  %v451 = vpack.c.b16 %v387, %v387
  %v452 = vpack.c.b16 %v388, %v388
  %v453 = vpack.c.b16 %v389, %v389
  %v454 = vpack.c.b16 %v390, %v390
  %v455 = vpack.c.b16 %v391, %v391
  %v456 = vpack.c.b16 %v392, %v392
  %v457 = vpack.c.b16 %v393, %v393
  %v458 = vpack.c.b16 %v394, %v394
  %v459 = vpack.c.b16 %v395, %v395
  %v460 = vpack.c.b16 %v396, %v396
  %v461 = vpack.c.b16 %v397, %v397
  %v462 = vpack.c.b16 %v398, %v398
  %v463 = vpack.c.b16 %v399, %v399
  %v464 = vpack.c.b16 %v400, %v400
  %v465 = vpack.c.b16 %v401, %v401
  %v466 = vpack.c.b16 %v402, %v402
  %v467 = vpack.c.b16 %v403, %v403
  %v468 = vpack.c.b16 %v404, %v404
  %v469 = vpack.c.b16 %v405, %v405
  %v470 = vpack.c.b16 %v406, %v406
  %v471 = vpack.c.b16 %v407, %v407
  %v472 = vpack.c.b16 %v408, %v408
  %v473 = vpack.c.b16 %v409, %v409
  %v474 = vpack.c.b16 %v410, %v410
  %v475 = vpack.c.b16 %v411, %v411
  %vm540 = vcmask 257024
  %541 = vst.msk [vmem:[%s3] sm:$0xf] %vm540, %v412
  %542 = vst.msk [vmem:[%s3 + $0x4] sm:$0xf] %vm540, %v413
  %543 = vst.msk [vmem:[%s3 + $0x8] sm:$0xf] %vm540, %v414
  %544 = vst.msk [vmem:[%s3 + $0xc] sm:$0xf] %vm540, %v415
  %545 = vst.msk [vmem:[%s3 + $0x10] sm:$0xf] %vm540, %v416
  %546 = vst.msk [vmem:[%s3 + $0x14] sm:$0xf] %vm540, %v417
  %547 = vst.msk [vmem:[%s3 + $0x18] sm:$0xf] %vm540, %v418
  %548 = vst.msk [vmem:[%s3 + $0x1c] sm:$0xf] %vm540, %v419
  %549 = vst.msk [vmem:[%s3 + $0x20] sm:$0xf] %vm540, %v420
  %550 = vst.msk [vmem:[%s3 + $0x24] sm:$0xf] %vm540, %v421
  %551 = vst.msk [vmem:[%s3 + $0x28] sm:$0xf] %vm540, %v422
  %552 = vst.msk [vmem:[%s3 + $0x2c] sm:$0xf] %vm540, %v423
  %553 = vst.msk [vmem:[%s3 + $0x30] sm:$0xf] %vm540, %v424
  %554 = vst.msk [vmem:[%s3 + $0x34] sm:$0xf] %vm540, %v425
  %555 = vst.msk [vmem:[%s3 + $0x38] sm:$0xf] %vm540, %v426
  %556 = vst.msk [vmem:[%s3 + $0x3c] sm:$0xf] %vm540, %v427
  %557 = vst.msk [vmem:[%s3 + $0x40] sm:$0xf] %vm540, %v428
  %558 = vst.msk [vmem:[%s3 + $0x44] sm:$0xf] %vm540, %v429
  %559 = vst.msk [vmem:[%s3 + $0x48] sm:$0xf] %vm540, %v430
  %560 = vst.msk [vmem:[%s3 + $0x4c] sm:$0xf] %vm540, %v431
  %561 = vst.msk [vmem:[%s3 + $0x50] sm:$0xf] %vm540, %v432
  %562 = vst.msk [vmem:[%s3 + $0x54] sm:$0xf] %vm540, %v433
  %563 = vst.msk [vmem:[%s3 + $0x58] sm:$0xf] %vm540, %v434
  %564 = vst.msk [vmem:[%s3 + $0x5c] sm:$0xf] %vm540, %v435
  %565 = vst.msk [vmem:[%s3 + $0x60] sm:$0xf] %vm540, %v436
  %566 = vst.msk [vmem:[%s3 + $0x64] sm:$0xf] %vm540, %v437
  %567 = vst.msk [vmem:[%s3 + $0x68] sm:$0xf] %vm540, %v438
  %568 = vst.msk [vmem:[%s3 + $0x6c] sm:$0xf] %vm540, %v439
  %569 = vst.msk [vmem:[%s3 + $0x70] sm:$0xf] %vm540, %v440
  %570 = vst.msk [vmem:[%s3 + $0x74] sm:$0xf] %vm540, %v441
  %571 = vst.msk [vmem:[%s3 + $0x78] sm:$0xf] %vm540, %v442
  %572 = vst.msk [vmem:[%s3 + $0x7c] sm:$0xf] %vm540, %v443
  %573 = vst.msk [vmem:[%s3 + $0x80] sm:$0xf] %vm540, %v444
  %574 = vst.msk [vmem:[%s3 + $0x84] sm:$0xf] %vm540, %v445
  %575 = vst.msk [vmem:[%s3 + $0x88] sm:$0xf] %vm540, %v446
  %576 = vst.msk [vmem:[%s3 + $0x8c] sm:$0xf] %vm540, %v447
  %577 = vst.msk [vmem:[%s3 + $0x90] sm:$0xf] %vm540, %v448
  %578 = vst.msk [vmem:[%s3 + $0x94] sm:$0xf] %vm540, %v449
  %579 = vst.msk [vmem:[%s3 + $0x98] sm:$0xf] %vm540, %v450
  %580 = vst.msk [vmem:[%s3 + $0x9c] sm:$0xf] %vm540, %v451
  %581 = vst.msk [vmem:[%s3 + $0xa0] sm:$0xf] %vm540, %v452
  %582 = vst.msk [vmem:[%s3 + $0xa4] sm:$0xf] %vm540, %v453
  %583 = vst.msk [vmem:[%s3 + $0xa8] sm:$0xf] %vm540, %v454
  %584 = vst.msk [vmem:[%s3 + $0xac] sm:$0xf] %vm540, %v455
  %585 = vst.msk [vmem:[%s3 + $0xb0] sm:$0xf] %vm540, %v456
  %586 = vst.msk [vmem:[%s3 + $0xb4] sm:$0xf] %vm540, %v457
  %587 = vst.msk [vmem:[%s3 + $0xb8] sm:$0xf] %vm540, %v458
  %588 = vst.msk [vmem:[%s3 + $0xbc] sm:$0xf] %vm540, %v459
  %589 = vst.msk [vmem:[%s3 + $0xc0] sm:$0xf] %vm540, %v460
  %590 = vst.msk [vmem:[%s3 + $0xc4] sm:$0xf] %vm540, %v461
  %591 = vst.msk [vmem:[%s3 + $0xc8] sm:$0xf] %vm540, %v462
  %592 = vst.msk [vmem:[%s3 + $0xcc] sm:$0xf] %vm540, %v463
  %593 = vst.msk [vmem:[%s3 + $0xd0] sm:$0xf] %vm540, %v464
  %594 = vst.msk [vmem:[%s3 + $0xd4] sm:$0xf] %vm540, %v465
  %595 = vst.msk [vmem:[%s3 + $0xd8] sm:$0xf] %vm540, %v466
  %596 = vst.msk [vmem:[%s3 + $0xdc] sm:$0xf] %vm540, %v467
  %597 = vst.msk [vmem:[%s3 + $0xe0] sm:$0xf] %vm540, %v468
  %598 = vst.msk [vmem:[%s3 + $0xe4] sm:$0xf] %vm540, %v469
  %599 = vst.msk [vmem:[%s3 + $0xe8] sm:$0xf] %vm540, %v470
  %600 = vst.msk [vmem:[%s3 + $0xec] sm:$0xf] %vm540, %v471
  %601 = vst.msk [vmem:[%s3 + $0xf0] sm:$0xf] %vm540, %v472
  %602 = vst.msk [vmem:[%s3 + $0xf4] sm:$0xf] %vm540, %v473
  %603 = vst.msk [vmem:[%s3 + $0xf8] sm:$0xf] %vm540, %v474
  %604 = vst.msk [vmem:[%s3 + $0xfc] sm:$0xf] %vm540, %v475
  // Predicated region
  $region14: #{generator_forward.16} parent=0 // pred_check
    _
  $region15: #{generator_forward.16} parent=0 // pred_check_branch
    %606 = sbr.rel (0) target = $region17
  $region16: #{generator_forward.16} parent=0 // pred_region
    _
  $region17: #{generator_forward.16} parent=0 // pred_fallthru
    _
  // Predicated region
  $region18: #{generator_forward.16} parent=0 // pred_check
    _
  $region19: #{generator_forward.16} parent=0 // pred_check_branch
    %608 = sbr.rel (0) target = $region21
  $region20: #{generator_forward.16} parent=0 // pred_region
    _
  $region21: #{generator_forward.16} parent=0 // pred_fallthru
    _

// kernel: generator_forward.17
$region0: #{generator_forward.17}
  #allocation0 [shape = 'u32[]', space=smem, size = 0x4, offset = 0x4, fixed_abs, tag = 'smem constant byte address 0x4 - core index']
  #allocation1 [shape = 'u32[144,128]{1,0:T(1,128)}', space=vmem, size = 0x12000, scoped, tag = 'internal scratch']
  %s0 = inlined_call_operand.vmem [shape: bf16[2048,72], index: 0, kind: input, shape index: {}]
  %s1 = inlined_call_operand.vmem [shape: bf16[72,12], index: 1, kind: input, shape index: {}]
  %s2 = inlined_call_operand.vmem [shape: f32[2048,12], index: 2, kind: output, shape index: {}]
  %s3 = sld [smem:[#allocation0]]
  $region41: #{generator_forward.17} parent=0
    _
  %s5 = ssub.s32 1, %s3
  %s6 = scalar_select 0, %s5, %s3
  loop: start=0, step=1, limit=6
  $region2: #{generator_forward.17} parent=0 // loop_pre_header
    _
  $region3: #{generator_forward.17} parent=0 // loop_header
    %s8 = sphi 0, %s12
    %p9 = scmp.ge.s32.totalorder %s8, 6
    %s18 = sphi 0, %s20
    %s21 = sphi 0, %s18
    %s22 = sphi 0, %s21
    %s38 = sphi 0, %s22
    %s42 = sphi 0, %s42
    %s44 = sphi 0, %s42
    %s45 = sphi 0, %s44
    %s59 = sphi 0, %s45
    %s65 = sphi 0, %s67
    %s68 = sphi 0, %s65
    %s69 = sphi 0, %s68
    %s85 = sphi 0, %s69
  $region4: #{generator_forward.17} parent=0 // loop_header_branch
    %11 = sbr.rel (%p9) target = $region8
  $region5: #{generator_forward.17} parent=0 // loop_body
    %s13 = ssub.s32 %s8, 1
    %s14 = ssub.s32 %s8, 2
    %s15 = sadd.s32 %s8, 1
    %s16 = ssub.s32 %s8, %s15
    %p17 = scmp.eq.s32.totalorder %s16, 0
    %s19 = sadd.s32 %s18, 1
    %s20 = scalar_select %p17, %s18, %s19
    %p23 = pneg %p17
    %p24 = scmp.eq.s32.totalorder %s8, 3
    %p25 = por %p23, %p24
    %p26 = scmp.ne.s32.totalorder %s18, %s21
    %p27 = scmp.eq.s32.totalorder %s8, 0
    %p28 = por %p26, %p27
    %p29 = scmp.ne.s32.totalorder %s18, %s21
    %p30 = scmp.eq.s32.totalorder %s13, 3
    %p31 = por %p29, %p30
    %p32 = scmp.ne.s32.totalorder %s21, %s22
    %p33 = scmp.eq.s32.totalorder %s13, 0
    %p34 = por %p32, %p33
    %p35 = scmp.ne.s32.totalorder %s21, %s22
    %p36 = scmp.eq.s32.totalorder %s14, 3
    %p37 = por %p35, %p36
    %p39 = scmp.ne.s32.totalorder %s22, %s38
    %p40 = scmp.eq.s32.totalorder %s14, 0
    %p41 = por %p39, %p40
    %s43 = sadd.s32 %s42, 1
    %p46 = scmp.eq.s32.totalorder %s8, 3
    %p47 = scmp.ne.s32.totalorder %s42, %s44
    %p48 = scmp.eq.s32.totalorder %s8, 0
    %p49 = por %p47, %p48
    %p50 = scmp.ne.s32.totalorder %s42, %s44
    %p51 = scmp.eq.s32.totalorder %s13, 3
    %p52 = por %p50, %p51
    %p53 = scmp.ne.s32.totalorder %s44, %s45
    %p54 = scmp.eq.s32.totalorder %s13, 0
    %p55 = por %p53, %p54
    %p56 = scmp.ne.s32.totalorder %s44, %s45
    %p57 = scmp.eq.s32.totalorder %s14, 3
    %p58 = por %p56, %p57
    %p60 = scmp.ne.s32.totalorder %s45, %s59
    %p61 = scmp.eq.s32.totalorder %s14, 0
    %p62 = por %p60, %p61
    %s63 = ssub.s32 %s8, %s15
    %p64 = scmp.eq.s32.totalorder %s63, 0
    %s66 = sadd.s32 %s65, 1
    %s67 = scalar_select %p64, %s65, %s66
    %p70 = pneg %p64
    %p71 = scmp.eq.s32.totalorder %s8, 3
    %p72 = por %p70, %p71
    %p73 = scmp.ne.s32.totalorder %s65, %s68
    %p74 = scmp.eq.s32.totalorder %s8, 0
    %p75 = por %p73, %p74
    %p76 = scmp.ne.s32.totalorder %s65, %s68
    %p77 = scmp.eq.s32.totalorder %s13, 3
    %p78 = por %p76, %p77
    %p79 = scmp.ne.s32.totalorder %s68, %s69
    %p80 = scmp.eq.s32.totalorder %s13, 0
    %p81 = por %p79, %p80
    %p82 = scmp.ne.s32.totalorder %s68, %s69
    %p83 = scmp.eq.s32.totalorder %s14, 3
    %p84 = por %p82, %p83
    %p86 = scmp.ne.s32.totalorder %s69, %s85
    %p87 = scmp.eq.s32.totalorder %s14, 0
    %p88 = por %p86, %p87
    %p89 = scmp.le.s32.totalorder 1, %s8
    %p90 = scmp.lt.s32.totalorder %s8, 5
    %p91 = pnand %p89, %p90
    %p92 = pneg %p91
    // Predicated region
    $region9: #{generator_forward.17} parent=5 // pred_check
      _
    $region10: #{generator_forward.17} parent=5 // pred_check_branch
      %94 = sbr.rel (%p91) target = $region12
    $region11: #{generator_forward.17} parent=5 // pred_region
      %s95 = ssub.s32 %s8, 1
      // Predicated region
      $region13: #{generator_forward.17} parent=11 // pred_check
        %p96 = pneg %p55
      $region14: #{generator_forward.17} parent=11 // pred_check_branch
        %98 = sbr.rel (%p96) target = $region16
      $region15: #{generator_forward.17} parent=11 // pred_region
        _
      $region16: #{generator_forward.17} parent=11 // pred_fallthru
        _
    $region12: #{generator_forward.17} parent=5 // pred_fallthru
      _
    %p99 = scmp.lt.s32.totalorder %s8, 4
    // Predicated region
    $region17: #{generator_forward.17} parent=5 // pred_check
      %p100 = pneg %p99
    $region18: #{generator_forward.17} parent=5 // pred_check_branch
      %102 = sbr.rel (%p100) target = $region20
    $region19: #{generator_forward.17} parent=5 // pred_region
      // Predicated region
      $region21: #{generator_forward.17} parent=19 // pred_check
        %p103 = pneg %p28
      $region22: #{generator_forward.17} parent=19 // pred_check_branch
        %105 = sbr.rel (%p103) target = $region24
      $region23: #{generator_forward.17} parent=19 // pred_region
        %s106 = smul.u32 64, %s8
        %p107 = scmp.lt.s32.totalorder %s106, 255
        %s108 = scalar_select %p107, %s106, 255
        %s109 = smul.addr %s108, 4
        %s110 = scalar_lea.vmem %s0, %s109
        %s111 = smul.u32 64, %s8
      $region24: #{generator_forward.17} parent=19 // pred_fallthru
        _
    $region20: #{generator_forward.17} parent=5 // pred_fallthru
      _
    %p112 = scmp.le.s32.totalorder 1, %s8
    %p113 = scmp.lt.s32.totalorder %s8, 5
    %p114 = pnand %p112, %p113
    %p115 = pneg %p114
    // Predicated region
    $region25: #{generator_forward.17} parent=5 // pred_check
      _
    $region26: #{generator_forward.17} parent=5 // pred_check_branch
      %117 = sbr.rel (%p114) target = $region28
    $region27: #{generator_forward.17} parent=5 // pred_region
      %s118 = ssub.s32 %s8, 1
      %s119 = smul.u32 64, %s13
      %p120 = scmp.lt.s32.totalorder %s119, 255
      %s121 = scalar_select %p120, %s119, 255
      %s122 = smul.addr %s121, 4
      %s123 = scalar_lea.vmem %s0, %s122
      %p124 = pneg %p34
      %p125 = pneg %p31
      %p126 = pneg %p55
      %p127 = pneg %p52
      %p128 = pneg %p81
      %p129 = pneg %p78
      %s130 = smul.u32 64, %s13
      %p131 = scmp.lt.s32.totalorder %s130, 255
      %s132 = scalar_select %p131, %s130, 255
      %s133 = smul.addr %s132, 8
      %s134 = scalar_lea.vmem %s2, %s133
      %s135 = smul.u32 64, %s13
      %p136 = scmp.lt.s32.totalorder %s135, 255
      %s137 = scalar_select %p136, %s135, 255
      %s138 = smul.addr %s137, 4
      %s139 = scalar_lea.vmem %s0, %s138
      %s140 = smul.u32 64, %s13
      %s141 = smul.u32 64, %s13
      %p142 = scmp.lt.s32.totalorder %s141, 255
      %s143 = scalar_select %p142, %s141, 255
      %s144 = smul.addr %s143, 8
      %s145 = scalar_lea.vmem %s2, %s144
      %s146 = smul.u32 64, %s13
      %v148 = vld [vmem:[%s139] sm:$0xf]
      %v149 = vld [vmem:[%s139 + $0x4] sm:$0xf]
      %v150 = vld [vmem:[%s139 + $0x8] sm:$0xf]
      %v151 = vld [vmem:[%s139 + $0xc] sm:$0xf]
      %v152 = vld [vmem:[%s139 + $0x10] sm:$0xf]
      %v153 = vld [vmem:[%s139 + $0x14] sm:$0xf]
      %v154 = vld [vmem:[%s139 + $0x18] sm:$0xf]
      %v155 = vld [vmem:[%s139 + $0x1c] sm:$0xf]
      %v156 = vld [vmem:[%s139 + $0x20] sm:$0xf]
      %v157 = vld [vmem:[%s139 + $0x24] sm:$0xf]
      %v158 = vld [vmem:[%s139 + $0x28] sm:$0xf]
      %v159 = vld [vmem:[%s139 + $0x2c] sm:$0xf]
      %v160 = vld [vmem:[%s139 + $0x30] sm:$0xf]
      %v161 = vld [vmem:[%s139 + $0x34] sm:$0xf]
      %v162 = vld [vmem:[%s139 + $0x38] sm:$0xf]
      %v163 = vld [vmem:[%s139 + $0x3c] sm:$0xf]
      %v164 = vld [vmem:[%s139 + $0x40] sm:$0xf]
      %v165 = vld [vmem:[%s139 + $0x44] sm:$0xf]
      %v166 = vld [vmem:[%s139 + $0x48] sm:$0xf]
      %v167 = vld [vmem:[%s139 + $0x4c] sm:$0xf]
      %v168 = vld [vmem:[%s139 + $0x50] sm:$0xf]
      %v169 = vld [vmem:[%s139 + $0x54] sm:$0xf]
      %v170 = vld [vmem:[%s139 + $0x58] sm:$0xf]
      %v171 = vld [vmem:[%s139 + $0x5c] sm:$0xf]
      %v172 = vld [vmem:[%s139 + $0x60] sm:$0xf]
      %v173 = vld [vmem:[%s139 + $0x64] sm:$0xf]
      %v174 = vld [vmem:[%s139 + $0x68] sm:$0xf]
      %v175 = vld [vmem:[%s139 + $0x6c] sm:$0xf]
      %v176 = vld [vmem:[%s139 + $0x70] sm:$0xf]
      %v177 = vld [vmem:[%s139 + $0x74] sm:$0xf]
      %v178 = vld [vmem:[%s139 + $0x78] sm:$0xf]
      %v179 = vld [vmem:[%s139 + $0x7c] sm:$0xf]
      %v180 = vld [vmem:[%s139 + $0x80] sm:$0xf]
      %v181 = vld [vmem:[%s139 + $0x84] sm:$0xf]
      %v182 = vld [vmem:[%s139 + $0x88] sm:$0xf]
      %v183 = vld [vmem:[%s139 + $0x8c] sm:$0xf]
      %v184 = vld [vmem:[%s139 + $0x90] sm:$0xf]
      %v185 = vld [vmem:[%s139 + $0x94] sm:$0xf]
      %v186 = vld [vmem:[%s139 + $0x98] sm:$0xf]
      %v187 = vld [vmem:[%s139 + $0x9c] sm:$0xf]
      %v188 = vld [vmem:[%s139 + $0xa0] sm:$0xf]
      %v189 = vld [vmem:[%s139 + $0xa4] sm:$0xf]
      %v190 = vld [vmem:[%s139 + $0xa8] sm:$0xf]
      %v191 = vld [vmem:[%s139 + $0xac] sm:$0xf]
      %v192 = vld [vmem:[%s139 + $0xb0] sm:$0xf]
      %v193 = vld [vmem:[%s139 + $0xb4] sm:$0xf]
      %v194 = vld [vmem:[%s139 + $0xb8] sm:$0xf]
      %v195 = vld [vmem:[%s139 + $0xbc] sm:$0xf]
      %v196 = vld [vmem:[%s139 + $0xc0] sm:$0xf]
      %v197 = vld [vmem:[%s139 + $0xc4] sm:$0xf]
      %v198 = vld [vmem:[%s139 + $0xc8] sm:$0xf]
      %v199 = vld [vmem:[%s139 + $0xcc] sm:$0xf]
      %v200 = vld [vmem:[%s139 + $0xd0] sm:$0xf]
      %v201 = vld [vmem:[%s139 + $0xd4] sm:$0xf]
      %v202 = vld [vmem:[%s139 + $0xd8] sm:$0xf]
      %v203 = vld [vmem:[%s139 + $0xdc] sm:$0xf]
      %v204 = vld [vmem:[%s139 + $0xe0] sm:$0xf]
      %v205 = vld [vmem:[%s139 + $0xe4] sm:$0xf]
      %v206 = vld [vmem:[%s139 + $0xe8] sm:$0xf]
      %v207 = vld [vmem:[%s139 + $0xec] sm:$0xf]
      %v208 = vld [vmem:[%s139 + $0xf0] sm:$0xf]
      %v209 = vld [vmem:[%s139 + $0xf4] sm:$0xf]
      %v210 = vld [vmem:[%s139 + $0xf8] sm:$0xf]
      %v211 = vld [vmem:[%s139 + $0xfc] sm:$0xf]
      %v212 = vld [vmem:[%s1] sm:$0xf]
      %v213 = vld [vmem:[%s1 + $0x4] sm:$0xf]
      %v214 = vld [vmem:[%s1 + $0x8] sm:$0xf]
      %v215 = vld [vmem:[%s1 + $0xc] sm:$0xf]
      %v216 = vld [vmem:[%s1 + $0x10] sm:$0xf]
      %v217 = vld [vmem:[%s1 + $0x14] sm:$0xf]
      %v218 = vld [vmem:[%s1 + $0x18] sm:$0xf]
      %v219 = vld [vmem:[%s1 + $0x1c] sm:$0xf]
      %v220 = vld [vmem:[%s1 + $0x20] sm:$0xf]
      %v285 = vunpack.c.l.b16 %v148
      %v286 = vunpack.c.l.b16 %v149
      %v287 = vunpack.c.l.b16 %v150
      %v288 = vunpack.c.l.b16 %v151
      %v289 = vunpack.c.l.b16 %v152
      %v290 = vunpack.c.l.b16 %v153
      %v291 = vunpack.c.l.b16 %v154
      %v292 = vunpack.c.l.b16 %v155
      %v293 = vunpack.c.l.b16 %v156
      %v294 = vunpack.c.l.b16 %v157
      %v295 = vunpack.c.l.b16 %v158
      %v296 = vunpack.c.l.b16 %v159
      %v297 = vunpack.c.l.b16 %v160
      %v298 = vunpack.c.l.b16 %v161
      %v299 = vunpack.c.l.b16 %v162
      %v300 = vunpack.c.l.b16 %v163
      %v301 = vunpack.c.l.b16 %v164
      %v302 = vunpack.c.l.b16 %v165
      %v303 = vunpack.c.l.b16 %v166
      %v304 = vunpack.c.l.b16 %v167
      %v305 = vunpack.c.l.b16 %v168
      %v306 = vunpack.c.l.b16 %v169
      %v307 = vunpack.c.l.b16 %v170
      %v308 = vunpack.c.l.b16 %v171
      %v309 = vunpack.c.l.b16 %v172
      %v310 = vunpack.c.l.b16 %v173
      %v311 = vunpack.c.l.b16 %v174
      %v312 = vunpack.c.l.b16 %v175
      %v313 = vunpack.c.l.b16 %v176
      %v314 = vunpack.c.l.b16 %v177
      %v315 = vunpack.c.l.b16 %v178
      %v316 = vunpack.c.l.b16 %v179
      %v317 = vunpack.c.l.b16 %v180
      %v318 = vunpack.c.l.b16 %v181
      %v319 = vunpack.c.l.b16 %v182
      %v320 = vunpack.c.l.b16 %v183
      %v321 = vunpack.c.l.b16 %v184
      %v322 = vunpack.c.l.b16 %v185
      %v323 = vunpack.c.l.b16 %v186
      %v324 = vunpack.c.l.b16 %v187
      %v325 = vunpack.c.l.b16 %v188
      %v326 = vunpack.c.l.b16 %v189
      %v327 = vunpack.c.l.b16 %v190
      %v328 = vunpack.c.l.b16 %v191
      %v329 = vunpack.c.l.b16 %v192
      %v330 = vunpack.c.l.b16 %v193
      %v331 = vunpack.c.l.b16 %v194
      %v332 = vunpack.c.l.b16 %v195
      %v333 = vunpack.c.l.b16 %v196
      %v334 = vunpack.c.l.b16 %v197
      %v335 = vunpack.c.l.b16 %v198
      %v336 = vunpack.c.l.b16 %v199
      %v337 = vunpack.c.l.b16 %v200
      %v338 = vunpack.c.l.b16 %v201
      %v339 = vunpack.c.l.b16 %v202
      %v340 = vunpack.c.l.b16 %v203
      %v341 = vunpack.c.l.b16 %v204
      %v342 = vunpack.c.l.b16 %v205
      %v343 = vunpack.c.l.b16 %v206
      %v344 = vunpack.c.l.b16 %v207
      %v345 = vunpack.c.l.b16 %v208
      %v346 = vunpack.c.l.b16 %v209
      %v347 = vunpack.c.l.b16 %v210
      %v348 = vunpack.c.l.b16 %v211
      %v349 = vpack.c.b16 %v286, %v285
      %v350 = vpack.c.b16 %v288, %v287
      %v351 = vpack.c.b16 %v290, %v289
      %v352 = vpack.c.b16 %v292, %v291
      %v353 = vpack.c.b16 %v294, %v293
      %v354 = vpack.c.b16 %v296, %v295
      %v355 = vpack.c.b16 %v298, %v297
      %v356 = vpack.c.b16 %v300, %v299
      %v357 = vpack.c.b16 %v302, %v301
      %v358 = vpack.c.b16 %v304, %v303
      %v359 = vpack.c.b16 %v306, %v305
      %v360 = vpack.c.b16 %v308, %v307
      %v361 = vpack.c.b16 %v310, %v309
      %v362 = vpack.c.b16 %v312, %v311
      %v363 = vpack.c.b16 %v314, %v313
      %v364 = vpack.c.b16 %v316, %v315
      %v365 = vpack.c.b16 %v318, %v317
      %v366 = vpack.c.b16 %v320, %v319
      %v367 = vpack.c.b16 %v322, %v321
      %v368 = vpack.c.b16 %v324, %v323
      %v369 = vpack.c.b16 %v326, %v325
      %v370 = vpack.c.b16 %v328, %v327
      %v371 = vpack.c.b16 %v330, %v329
      %v372 = vpack.c.b16 %v332, %v331
      %v373 = vpack.c.b16 %v334, %v333
      %v374 = vpack.c.b16 %v336, %v335
      %v375 = vpack.c.b16 %v338, %v337
      %v376 = vpack.c.b16 %v340, %v339
      %v377 = vpack.c.b16 %v342, %v341
      %v378 = vpack.c.b16 %v344, %v343
      %v379 = vpack.c.b16 %v346, %v345
      %v380 = vpack.c.b16 %v348, %v347
      %v390 = vunpack.c.l.b16 %v212
      %v391 = vunpack.c.l.b16 %v213
      %v392 = vunpack.c.l.b16 %v214
      %v393 = vunpack.c.l.b16 %v215
      %v394 = vunpack.c.l.b16 %v216
      %v395 = vunpack.c.l.b16 %v217
      %v396 = vunpack.c.l.b16 %v218
      %v397 = vunpack.c.l.b16 %v219
      %v398 = vunpack.c.l.b16 %v220
      %v399 = vpack.c.b16 %v391, %v390
      %v400 = vpack.c.b16 %v393, %v392
      %v401 = vpack.c.b16 %v395, %v394
      %v402 = vpack.c.b16 %v397, %v396
      %v403 = vpack.c.b16 %v398, %v398
      %vm408 = vcmask 588800
      %v410 = vsel %vm408, %v349, 0
      %v413 = vsel %vm408, %v350, 0
      %v416 = vsel %vm408, %v351, 0
      %v419 = vsel %vm408, %v352, 0
      %v422 = vsel %vm408, %v353, 0
      %v425 = vsel %vm408, %v354, 0
      %v428 = vsel %vm408, %v355, 0
      %v431 = vsel %vm408, %v356, 0
      %v434 = vsel %vm408, %v357, 0
      %v437 = vsel %vm408, %v358, 0
      %v440 = vsel %vm408, %v359, 0
      %v443 = vsel %vm408, %v360, 0
      %v446 = vsel %vm408, %v361, 0
      %v449 = vsel %vm408, %v362, 0
      %v452 = vsel %vm408, %v363, 0
      %v455 = vsel %vm408, %v364, 0
      %v458 = vsel %vm408, %v365, 0
      %v461 = vsel %vm408, %v366, 0
      %v464 = vsel %vm408, %v367, 0
      %v467 = vsel %vm408, %v368, 0
      %v470 = vsel %vm408, %v369, 0
      %v473 = vsel %vm408, %v370, 0
      %v476 = vsel %vm408, %v371, 0
      %v479 = vsel %vm408, %v372, 0
      %v482 = vsel %vm408, %v373, 0
      %v485 = vsel %vm408, %v374, 0
      %v488 = vsel %vm408, %v375, 0
      %v491 = vsel %vm408, %v376, 0
      %v494 = vsel %vm408, %v377, 0
      %v497 = vsel %vm408, %v378, 0
      %v500 = vsel %vm408, %v379, 0
      %v503 = vsel %vm408, %v380, 0
      %vm505 = vcmask 1043456
      %v507 = vsel %vm505, %v403, 0
      %509 = vmatprep.subr.bf16.mxu0 0
      %510 = vmatpush1.bf16.msra.mxu0 0
      %511 = vmatprep.subr.bf16.mxu0 0
      %512 = vmatpush1.bf16.msra.mxu0 0
      %513 = vmatprep.subr.bf16.mxu0 0
      %514 = vmatpush1.bf16.msra.mxu0 0
      %515 = vmatprep.subr.bf16.mxu0 0
      %516 = vmatpush1.bf16.msra.mxu0 %v507
      %517 = vmatprep.subr.bf16.mxu0 0
      %518 = vmatpush1.bf16.msra.mxu0 %v402
      %519 = vmatprep.subr.bf16.mxu0 0
      %520 = vmatpush1.bf16.msra.mxu0 %v401
      %521 = vmatprep.subr.bf16.mxu0 0
      %522 = vmatpush1.bf16.msra.mxu0 %v400
      %523 = vmatprep.subr.bf16.mxu0 0
      %524 = vmatpush1.bf16.msra.mxu0 %v399
      %525 = vmatprep.subr.bf16.mxu0 0
      %526 = vmatpush2.bf16.msra.mxu0 0
      %527 = vmatprep.subr.bf16.mxu0 0
      %528 = vmatpush2.bf16.msra.mxu0 0
      %529 = vmatprep.subr.bf16.mxu0 0
      %530 = vmatpush2.bf16.msra.mxu0 0
      %531 = vmatprep.subr.bf16.mxu0 0
      %532 = vmatpush2.bf16.msra.mxu0 0
      %533 = vmatprep.subr.bf16.mxu0 0
      %534 = vmatpush2.bf16.msra.mxu0 0
      %535 = vmatprep.subr.bf16.mxu0 0
      %536 = vmatpush2.bf16.msra.mxu0 0
      %537 = vmatprep.subr.bf16.mxu0 0
      %538 = vmatpush2.bf16.msra.mxu0 0
      %539 = vmatprep.subr.bf16.mxu0 0
      %540 = vmatpush2.bf16.msra.mxu0 0
      %541 = vmatprep.mubr.bf16.mxu0 0
      %542 = vmatmul.mubr.bf16.gmra.mxu0 %v410
      %v543 = vpop.f32.mrf.mxu0
      %v544 = vadd.f32 0.0, %v543
      %v545 = vpop.f32.mrf.mxu0
      %v546 = vpop.f32.mrf.mxu0
      %v547 = vadd.f32 0.0, %v546
      %v548 = vpop.f32.mrf.mxu0
      %549 = vmatprep.mubr.bf16.mxu0 0
      %550 = vmatmul.mubr.bf16.gmra.mxu0 %v413
      %v551 = vpop.f32.mrf.mxu0
      %v552 = vadd.f32 0.0, %v551
      %v553 = vpop.f32.mrf.mxu0
      %v554 = vpop.f32.mrf.mxu0
      %v555 = vadd.f32 0.0, %v554
      %v556 = vpop.f32.mrf.mxu0
      %557 = vmatprep.mubr.bf16.mxu0 0
      %558 = vmatmul.mubr.bf16.gmra.mxu0 %v416
      %v559 = vpop.f32.mrf.mxu0
      %v560 = vadd.f32 0.0, %v559
      %v561 = vpop.f32.mrf.mxu0
      %v562 = vpop.f32.mrf.mxu0
      %v563 = vadd.f32 0.0, %v562
      %v564 = vpop.f32.mrf.mxu0
      %565 = vmatprep.mubr.bf16.mxu0 0
      %566 = vmatmul.mubr.bf16.gmra.mxu0 %v419
      %v567 = vpop.f32.mrf.mxu0
      %v568 = vadd.f32 0.0, %v567
      %v569 = vpop.f32.mrf.mxu0
      %v570 = vpop.f32.mrf.mxu0
      %v571 = vadd.f32 0.0, %v570
      %v572 = vpop.f32.mrf.mxu0
      %573 = vmatprep.mubr.bf16.mxu0 0
      %574 = vmatmul.mubr.bf16.gmra.mxu0 %v422
      %v575 = vpop.f32.mrf.mxu0
      %v576 = vadd.f32 0.0, %v575
      %v577 = vpop.f32.mrf.mxu0
      %v578 = vpop.f32.mrf.mxu0
      %v579 = vadd.f32 0.0, %v578
      %v580 = vpop.f32.mrf.mxu0
      %581 = vmatprep.mubr.bf16.mxu0 0
      %582 = vmatmul.mubr.bf16.gmra.mxu0 %v425
      %v583 = vpop.f32.mrf.mxu0
      %v584 = vadd.f32 0.0, %v583
      %v585 = vpop.f32.mrf.mxu0
      %v586 = vpop.f32.mrf.mxu0
      %v587 = vadd.f32 0.0, %v586
      %v588 = vpop.f32.mrf.mxu0
      %589 = vmatprep.mubr.bf16.mxu0 0
      %590 = vmatmul.mubr.bf16.gmra.mxu0 %v428
      %v591 = vpop.f32.mrf.mxu0
      %v592 = vadd.f32 0.0, %v591
      %v593 = vpop.f32.mrf.mxu0
      %v594 = vpop.f32.mrf.mxu0
      %v595 = vadd.f32 0.0, %v594
      %v596 = vpop.f32.mrf.mxu0
      %597 = vmatprep.mubr.bf16.mxu0 0
      %598 = vmatmul.mubr.bf16.gmra.mxu0 %v431
      %v599 = vpop.f32.mrf.mxu0
      %v600 = vadd.f32 0.0, %v599
      %v601 = vpop.f32.mrf.mxu0
      %v602 = vpop.f32.mrf.mxu0
      %v603 = vadd.f32 0.0, %v602
      %v604 = vpop.f32.mrf.mxu0
      %605 = vmatprep.mubr.bf16.mxu0 0
      %606 = vmatmul.mubr.bf16.gmra.mxu0 %v434
      %v607 = vpop.f32.mrf.mxu0
      %v608 = vadd.f32 0.0, %v607
      %v609 = vpop.f32.mrf.mxu0
      %v610 = vpop.f32.mrf.mxu0
      %v611 = vadd.f32 0.0, %v610
      %v612 = vpop.f32.mrf.mxu0
      %613 = vmatprep.mubr.bf16.mxu0 0
      %614 = vmatmul.mubr.bf16.gmra.mxu0 %v437
      %v615 = vpop.f32.mrf.mxu0
      %v616 = vadd.f32 0.0, %v615
      %v617 = vpop.f32.mrf.mxu0
      %v618 = vpop.f32.mrf.mxu0
      %v619 = vadd.f32 0.0, %v618
      %v620 = vpop.f32.mrf.mxu0
      %621 = vmatprep.mubr.bf16.mxu0 0
      %622 = vmatmul.mubr.bf16.gmra.mxu0 %v440
      %v623 = vpop.f32.mrf.mxu0
      %v624 = vadd.f32 0.0, %v623
      %v625 = vpop.f32.mrf.mxu0
      %v626 = vpop.f32.mrf.mxu0
      %v627 = vadd.f32 0.0, %v626
      %v628 = vpop.f32.mrf.mxu0
      %629 = vmatprep.mubr.bf16.mxu0 0
      %630 = vmatmul.mubr.bf16.gmra.mxu0 %v443
      %v631 = vpop.f32.mrf.mxu0
      %v632 = vadd.f32 0.0, %v631
      %v633 = vpop.f32.mrf.mxu0
      %v634 = vpop.f32.mrf.mxu0
      %v635 = vadd.f32 0.0, %v634
      %v636 = vpop.f32.mrf.mxu0
      %637 = vmatprep.mubr.bf16.mxu0 0
      %638 = vmatmul.mubr.bf16.gmra.mxu0 %v446
      %v639 = vpop.f32.mrf.mxu0
      %v640 = vadd.f32 0.0, %v639
      %v641 = vpop.f32.mrf.mxu0
      %v642 = vpop.f32.mrf.mxu0
      %v643 = vadd.f32 0.0, %v642
      %v644 = vpop.f32.mrf.mxu0
      %645 = vmatprep.mubr.bf16.mxu0 0
      %646 = vmatmul.mubr.bf16.gmra.mxu0 %v449
      %v647 = vpop.f32.mrf.mxu0
      %v648 = vadd.f32 0.0, %v647
      %v649 = vpop.f32.mrf.mxu0
      %v650 = vpop.f32.mrf.mxu0
      %v651 = vadd.f32 0.0, %v650
      %v652 = vpop.f32.mrf.mxu0
      %653 = vmatprep.mubr.bf16.mxu0 0
      %654 = vmatmul.mubr.bf16.gmra.mxu0 %v452
      %v655 = vpop.f32.mrf.mxu0
      %v656 = vadd.f32 0.0, %v655
      %v657 = vpop.f32.mrf.mxu0
      %v658 = vpop.f32.mrf.mxu0
      %v659 = vadd.f32 0.0, %v658
      %v660 = vpop.f32.mrf.mxu0
      %661 = vmatprep.mubr.bf16.mxu0 0
      %662 = vmatmul.mubr.bf16.gmra.mxu0 %v455
      %v663 = vpop.f32.mrf.mxu0
      %v664 = vadd.f32 0.0, %v663
      %v665 = vpop.f32.mrf.mxu0
      %v666 = vpop.f32.mrf.mxu0
      %v667 = vadd.f32 0.0, %v666
      %v668 = vpop.f32.mrf.mxu0
      %669 = vmatprep.mubr.bf16.mxu0 0
      %670 = vmatmul.mubr.bf16.gmra.mxu0 %v458
      %v671 = vpop.f32.mrf.mxu0
      %v672 = vadd.f32 0.0, %v671
      %v673 = vpop.f32.mrf.mxu0
      %v674 = vpop.f32.mrf.mxu0
      %v675 = vadd.f32 0.0, %v674
      %v676 = vpop.f32.mrf.mxu0
      %677 = vmatprep.mubr.bf16.mxu0 0
      %678 = vmatmul.mubr.bf16.gmra.mxu0 %v461
      %v679 = vpop.f32.mrf.mxu0
      %v680 = vadd.f32 0.0, %v679
      %v681 = vpop.f32.mrf.mxu0
      %v682 = vpop.f32.mrf.mxu0
      %v683 = vadd.f32 0.0, %v682
      %v684 = vpop.f32.mrf.mxu0
      %685 = vmatprep.mubr.bf16.mxu0 0
      %686 = vmatmul.mubr.bf16.gmra.mxu0 %v464
      %v687 = vpop.f32.mrf.mxu0
      %v688 = vadd.f32 0.0, %v687
      %v689 = vpop.f32.mrf.mxu0
      %v690 = vpop.f32.mrf.mxu0
      %v691 = vadd.f32 0.0, %v690
      %v692 = vpop.f32.mrf.mxu0
      %693 = vmatprep.mubr.bf16.mxu0 0
      %694 = vmatmul.mubr.bf16.gmra.mxu0 %v467
      %v695 = vpop.f32.mrf.mxu0
      %v696 = vadd.f32 0.0, %v695
      %v697 = vpop.f32.mrf.mxu0
      %v698 = vpop.f32.mrf.mxu0
      %v699 = vadd.f32 0.0, %v698
      %v700 = vpop.f32.mrf.mxu0
      %701 = vmatprep.mubr.bf16.mxu0 0
      %702 = vmatmul.mubr.bf16.gmra.mxu0 %v470
      %v703 = vpop.f32.mrf.mxu0
      %v704 = vadd.f32 0.0, %v703
      %v705 = vpop.f32.mrf.mxu0
      %v706 = vpop.f32.mrf.mxu0
      %v707 = vadd.f32 0.0, %v706
      %v708 = vpop.f32.mrf.mxu0
      %709 = vmatprep.mubr.bf16.mxu0 0
      %710 = vmatmul.mubr.bf16.gmra.mxu0 %v473
      %v711 = vpop.f32.mrf.mxu0
      %v712 = vadd.f32 0.0, %v711
      %v713 = vpop.f32.mrf.mxu0
      %v714 = vpop.f32.mrf.mxu0
      %v715 = vadd.f32 0.0, %v714
      %v716 = vpop.f32.mrf.mxu0
      %717 = vmatprep.mubr.bf16.mxu0 0
      %718 = vmatmul.mubr.bf16.gmra.mxu0 %v476
      %v719 = vpop.f32.mrf.mxu0
      %v720 = vadd.f32 0.0, %v719
      %v721 = vpop.f32.mrf.mxu0
      %v722 = vpop.f32.mrf.mxu0
      %v723 = vadd.f32 0.0, %v722
      %v724 = vpop.f32.mrf.mxu0
      %725 = vmatprep.mubr.bf16.mxu0 0
      %726 = vmatmul.mubr.bf16.gmra.mxu0 %v479
      %v727 = vpop.f32.mrf.mxu0
      %v728 = vadd.f32 0.0, %v727
      %v729 = vpop.f32.mrf.mxu0
      %v730 = vpop.f32.mrf.mxu0
      %v731 = vadd.f32 0.0, %v730
      %v732 = vpop.f32.mrf.mxu0
      %733 = vmatprep.mubr.bf16.mxu0 0
      %734 = vmatmul.mubr.bf16.gmra.mxu0 %v482
      %v735 = vpop.f32.mrf.mxu0
      %v736 = vadd.f32 0.0, %v735
      %v737 = vpop.f32.mrf.mxu0
      %v738 = vpop.f32.mrf.mxu0
      %v739 = vadd.f32 0.0, %v738
      %v740 = vpop.f32.mrf.mxu0
      %741 = vmatprep.mubr.bf16.mxu0 0
      %742 = vmatmul.mubr.bf16.gmra.mxu0 %v485
      %v743 = vpop.f32.mrf.mxu0
      %v744 = vadd.f32 0.0, %v743
      %v745 = vpop.f32.mrf.mxu0
      %v746 = vpop.f32.mrf.mxu0
      %v747 = vadd.f32 0.0, %v746
      %v748 = vpop.f32.mrf.mxu0
      %749 = vmatprep.mubr.bf16.mxu0 0
      %750 = vmatmul.mubr.bf16.gmra.mxu0 %v488
      %v751 = vpop.f32.mrf.mxu0
      %v752 = vadd.f32 0.0, %v751
      %v753 = vpop.f32.mrf.mxu0
      %v754 = vpop.f32.mrf.mxu0
      %v755 = vadd.f32 0.0, %v754
      %v756 = vpop.f32.mrf.mxu0
      %757 = vmatprep.mubr.bf16.mxu0 0
      %758 = vmatmul.mubr.bf16.gmra.mxu0 %v491
      %v759 = vpop.f32.mrf.mxu0
      %v760 = vadd.f32 0.0, %v759
      %v761 = vpop.f32.mrf.mxu0
      %v762 = vpop.f32.mrf.mxu0
      %v763 = vadd.f32 0.0, %v762
      %v764 = vpop.f32.mrf.mxu0
      %765 = vmatprep.mubr.bf16.mxu0 0
      %766 = vmatmul.mubr.bf16.gmra.mxu0 %v494
      %v767 = vpop.f32.mrf.mxu0
      %v768 = vadd.f32 0.0, %v767
      %v769 = vpop.f32.mrf.mxu0
      %v770 = vpop.f32.mrf.mxu0
      %v771 = vadd.f32 0.0, %v770
      %v772 = vpop.f32.mrf.mxu0
      %773 = vmatprep.mubr.bf16.mxu0 0
      %774 = vmatmul.mubr.bf16.gmra.mxu0 %v497
      %v775 = vpop.f32.mrf.mxu0
      %v776 = vadd.f32 0.0, %v775
      %v777 = vpop.f32.mrf.mxu0
      %v778 = vpop.f32.mrf.mxu0
      %v779 = vadd.f32 0.0, %v778
      %v780 = vpop.f32.mrf.mxu0
      %781 = vmatprep.mubr.bf16.mxu0 0
      %782 = vmatmul.mubr.bf16.gmra.mxu0 %v500
      %v783 = vpop.f32.mrf.mxu0
      %v784 = vadd.f32 0.0, %v783
      %v785 = vpop.f32.mrf.mxu0
      %v786 = vpop.f32.mrf.mxu0
      %v787 = vadd.f32 0.0, %v786
      %v788 = vpop.f32.mrf.mxu0
      %789 = vmatprep.mubr.bf16.mxu0 0
      %790 = vmatmul.mubr.bf16.gmra.mxu0 %v503
      %v791 = vpop.f32.mrf.mxu0
      %v792 = vadd.f32 0.0, %v791
      %v793 = vpop.f32.mrf.mxu0
      %v794 = vpop.f32.mrf.mxu0
      %v795 = vadd.f32 0.0, %v794
      %v796 = vpop.f32.mrf.mxu0
      %797 = vdwg.mxu0
      %v798 = vtanh.pop %v544
      %v799 = vtanh.pop %v547
      %v800 = vtanh.pop %v552
      %v801 = vtanh.pop %v555
      %v802 = vtanh.pop %v560
      %v803 = vtanh.pop %v563
      %v804 = vtanh.pop %v568
      %v805 = vtanh.pop %v571
      %v806 = vtanh.pop %v576
      %v807 = vtanh.pop %v579
      %v808 = vtanh.pop %v584
      %v809 = vtanh.pop %v587
      %v810 = vtanh.pop %v592
      %v811 = vtanh.pop %v595
      %v812 = vtanh.pop %v600
      %v813 = vtanh.pop %v603
      %v814 = vtanh.pop %v608
      %v815 = vtanh.pop %v611
      %v816 = vtanh.pop %v616
      %v817 = vtanh.pop %v619
      %v818 = vtanh.pop %v624
      %v819 = vtanh.pop %v627
      %v820 = vtanh.pop %v632
      %v821 = vtanh.pop %v635
      %v822 = vtanh.pop %v640
      %v823 = vtanh.pop %v643
      %v824 = vtanh.pop %v648
      %v825 = vtanh.pop %v651
      %v826 = vtanh.pop %v656
      %v827 = vtanh.pop %v659
      %v828 = vtanh.pop %v664
      %v829 = vtanh.pop %v667
      %v830 = vtanh.pop %v672
      %v831 = vtanh.pop %v675
      %v832 = vtanh.pop %v680
      %v833 = vtanh.pop %v683
      %v834 = vtanh.pop %v688
      %v835 = vtanh.pop %v691
      %v836 = vtanh.pop %v696
      %v837 = vtanh.pop %v699
      %v838 = vtanh.pop %v704
      %v839 = vtanh.pop %v707
      %v840 = vtanh.pop %v712
      %v841 = vtanh.pop %v715
      %v842 = vtanh.pop %v720
      %v843 = vtanh.pop %v723
      %v844 = vtanh.pop %v728
      %v845 = vtanh.pop %v731
      %v846 = vtanh.pop %v736
      %v847 = vtanh.pop %v739
      %v848 = vtanh.pop %v744
      %v849 = vtanh.pop %v747
      %v850 = vtanh.pop %v752
      %v851 = vtanh.pop %v755
      %v852 = vtanh.pop %v760
      %v853 = vtanh.pop %v763
      %v854 = vtanh.pop %v768
      %v855 = vtanh.pop %v771
      %v856 = vtanh.pop %v776
      %v857 = vtanh.pop %v779
      %v858 = vtanh.pop %v784
      %v859 = vtanh.pop %v787
      %v860 = vtanh.pop %v792
      %v861 = vtanh.pop %v795
      %vm862 = vcmask 97280
      %863 = vst.msk [vmem:[%s145] sm:$0xff] %vm862, %v798
      %864 = vst.msk [vmem:[%s145 + $0x8] sm:$0xff] %vm862, %v799
      %865 = vst.msk [vmem:[%s145 + $0x10] sm:$0xff] %vm862, %v800
      %866 = vst.msk [vmem:[%s145 + $0x18] sm:$0xff] %vm862, %v801
      %867 = vst.msk [vmem:[%s145 + $0x20] sm:$0xff] %vm862, %v802
      %868 = vst.msk [vmem:[%s145 + $0x28] sm:$0xff] %vm862, %v803
      %869 = vst.msk [vmem:[%s145 + $0x30] sm:$0xff] %vm862, %v804
      %870 = vst.msk [vmem:[%s145 + $0x38] sm:$0xff] %vm862, %v805
      %871 = vst.msk [vmem:[%s145 + $0x40] sm:$0xff] %vm862, %v806
      %872 = vst.msk [vmem:[%s145 + $0x48] sm:$0xff] %vm862, %v807
      %873 = vst.msk [vmem:[%s145 + $0x50] sm:$0xff] %vm862, %v808
      %874 = vst.msk [vmem:[%s145 + $0x58] sm:$0xff] %vm862, %v809
      %875 = vst.msk [vmem:[%s145 + $0x60] sm:$0xff] %vm862, %v810
      %876 = vst.msk [vmem:[%s145 + $0x68] sm:$0xff] %vm862, %v811
      %877 = vst.msk [vmem:[%s145 + $0x70] sm:$0xff] %vm862, %v812
      %878 = vst.msk [vmem:[%s145 + $0x78] sm:$0xff] %vm862, %v813
      %879 = vst.msk [vmem:[%s145 + $0x80] sm:$0xff] %vm862, %v814
      %880 = vst.msk [vmem:[%s145 + $0x88] sm:$0xff] %vm862, %v815
      %881 = vst.msk [vmem:[%s145 + $0x90] sm:$0xff] %vm862, %v816
      %882 = vst.msk [vmem:[%s145 + $0x98] sm:$0xff] %vm862, %v817
      %883 = vst.msk [vmem:[%s145 + $0xa0] sm:$0xff] %vm862, %v818
      %884 = vst.msk [vmem:[%s145 + $0xa8] sm:$0xff] %vm862, %v819
      %885 = vst.msk [vmem:[%s145 + $0xb0] sm:$0xff] %vm862, %v820
      %886 = vst.msk [vmem:[%s145 + $0xb8] sm:$0xff] %vm862, %v821
      %887 = vst.msk [vmem:[%s145 + $0xc0] sm:$0xff] %vm862, %v822
      %888 = vst.msk [vmem:[%s145 + $0xc8] sm:$0xff] %vm862, %v823
      %889 = vst.msk [vmem:[%s145 + $0xd0] sm:$0xff] %vm862, %v824
      %890 = vst.msk [vmem:[%s145 + $0xd8] sm:$0xff] %vm862, %v825
      %891 = vst.msk [vmem:[%s145 + $0xe0] sm:$0xff] %vm862, %v826
      %892 = vst.msk [vmem:[%s145 + $0xe8] sm:$0xff] %vm862, %v827
      %893 = vst.msk [vmem:[%s145 + $0xf0] sm:$0xff] %vm862, %v828
      %894 = vst.msk [vmem:[%s145 + $0xf8] sm:$0xff] %vm862, %v829
      %895 = vst.msk [vmem:[%s145 + $0x100] sm:$0xff] %vm862, %v830
      %896 = vst.msk [vmem:[%s145 + $0x108] sm:$0xff] %vm862, %v831
      %897 = vst.msk [vmem:[%s145 + $0x110] sm:$0xff] %vm862, %v832
      %898 = vst.msk [vmem:[%s145 + $0x118] sm:$0xff] %vm862, %v833
      %899 = vst.msk [vmem:[%s145 + $0x120] sm:$0xff] %vm862, %v834
      %900 = vst.msk [vmem:[%s145 + $0x128] sm:$0xff] %vm862, %v835
      %901 = vst.msk [vmem:[%s145 + $0x130] sm:$0xff] %vm862, %v836
      %902 = vst.msk [vmem:[%s145 + $0x138] sm:$0xff] %vm862, %v837
      %903 = vst.msk [vmem:[%s145 + $0x140] sm:$0xff] %vm862, %v838
      %904 = vst.msk [vmem:[%s145 + $0x148] sm:$0xff] %vm862, %v839
      %905 = vst.msk [vmem:[%s145 + $0x150] sm:$0xff] %vm862, %v840
      %906 = vst.msk [vmem:[%s145 + $0x158] sm:$0xff] %vm862, %v841
      %907 = vst.msk [vmem:[%s145 + $0x160] sm:$0xff] %vm862, %v842
      %908 = vst.msk [vmem:[%s145 + $0x168] sm:$0xff] %vm862, %v843
      %909 = vst.msk [vmem:[%s145 + $0x170] sm:$0xff] %vm862, %v844
      %910 = vst.msk [vmem:[%s145 + $0x178] sm:$0xff] %vm862, %v845
      %911 = vst.msk [vmem:[%s145 + $0x180] sm:$0xff] %vm862, %v846
      %912 = vst.msk [vmem:[%s145 + $0x188] sm:$0xff] %vm862, %v847
      %913 = vst.msk [vmem:[%s145 + $0x190] sm:$0xff] %vm862, %v848
      %914 = vst.msk [vmem:[%s145 + $0x198] sm:$0xff] %vm862, %v849
      %915 = vst.msk [vmem:[%s145 + $0x1a0] sm:$0xff] %vm862, %v850
      %916 = vst.msk [vmem:[%s145 + $0x1a8] sm:$0xff] %vm862, %v851
      %917 = vst.msk [vmem:[%s145 + $0x1b0] sm:$0xff] %vm862, %v852
      %918 = vst.msk [vmem:[%s145 + $0x1b8] sm:$0xff] %vm862, %v853
      %919 = vst.msk [vmem:[%s145 + $0x1c0] sm:$0xff] %vm862, %v854
      %920 = vst.msk [vmem:[%s145 + $0x1c8] sm:$0xff] %vm862, %v855
      %921 = vst.msk [vmem:[%s145 + $0x1d0] sm:$0xff] %vm862, %v856
      %922 = vst.msk [vmem:[%s145 + $0x1d8] sm:$0xff] %vm862, %v857
      %923 = vst.msk [vmem:[%s145 + $0x1e0] sm:$0xff] %vm862, %v858
      %924 = vst.msk [vmem:[%s145 + $0x1e8] sm:$0xff] %vm862, %v859
      %925 = vst.msk [vmem:[%s145 + $0x1f0] sm:$0xff] %vm862, %v860
      %926 = vst.msk [vmem:[%s145 + $0x1f8] sm:$0xff] %vm862, %v861
      %s927 = smul.u32 64, %s13
      %p928 = scmp.lt.s32.totalorder %s927, 255
      %s929 = scalar_select %p928, %s927, 255
      %s930 = smul.addr %s929, 8
      %s931 = scalar_lea.vmem %s2, %s930
      // Predicated region
      $region29: #{generator_forward.17} parent=27 // pred_check
        %p932 = pneg %p78
      $region30: #{generator_forward.17} parent=27 // pred_check_branch
        %934 = sbr.rel (%p932) target = $region32
      $region31: #{generator_forward.17} parent=27 // pred_region
        %s935 = smul.u32 64, %s13
      $region32: #{generator_forward.17} parent=27 // pred_fallthru
        _
    $region28: #{generator_forward.17} parent=5 // pred_fallthru
      _
    %p936 = scmp.le.s32.totalorder 2, %s8
    // Predicated region
    $region33: #{generator_forward.17} parent=5 // pred_check
      %p937 = pneg %p936
    $region34: #{generator_forward.17} parent=5 // pred_check_branch
      %939 = sbr.rel (%p937) target = $region36
    $region35: #{generator_forward.17} parent=5 // pred_region
      %s940 = ssub.s32 %s8, 2
      // Predicated region
      $region37: #{generator_forward.17} parent=35 // pred_check
        %p941 = pneg %p84
      $region38: #{generator_forward.17} parent=35 // pred_check_branch
        %943 = sbr.rel (%p941) target = $region40
      $region39: #{generator_forward.17} parent=35 // pred_region
        %s944 = smul.u32 64, %s14
        %p945 = scmp.lt.s32.totalorder %s944, 255
        %s946 = scalar_select %p945, %s944, 255
        %s947 = smul.addr %s946, 8
        %s948 = scalar_lea.vmem %s2, %s947
      $region40: #{generator_forward.17} parent=35 // pred_fallthru
        _
    $region36: #{generator_forward.17} parent=5 // pred_fallthru
      _
  $region6: #{generator_forward.17} parent=0 // loop_footer
    %s12 = sadd.s32 1, %s8
  $region7: #{generator_forward.17} parent=0 // loop_footer_branch
    %7 = sbr.rel target = $region3
  $region8: #{generator_forward.17} parent=0 // loop_exit
    _

</llo_original>
